<compile_context>
chip_gen: v7x
topology: tpu7x:2x2x1
jax: 0.10.0
libtpu: 0.0.40
codegen_flags: <defaults>
</compile_context>

<pallas_src>
import math

import jax
import jax.numpy as jnp
from jax import lax
from jax.experimental import pallas as pl
from jax.experimental.pallas import tpu as pltpu

EPS = 1e-5
NEG = -1e30
CHUNK = 8                            # GRU time steps per grid iteration (static unroll)
VMEM_LIMIT = 32 * 1024 * 1024
HEAD_VMEM_BUDGET = 24 * 1024 * 1024
_SINGLE = pl.Buffered(1)             # single-buffer time-invariant (constant index) blocks


def _round_up(x, m):
    return (x + m - 1) // m * m


# ----------------------------------------------------------------------------
# Embedding-side BatchNorm statistics, computed algebraically from token counts
# (exact, O(V*E), no pass over the activations) -- plain XLA, tiny.
# ----------------------------------------------------------------------------
def _embed_bn_stats(table, tokens):
    V = table.shape[0]
    n = tokens.size
    counts = jnp.bincount(tokens.reshape(-1), length=V).astype(jnp.float32)
    mean = (counts @ table) / n
    meansq = (counts @ (table * table)) / n
    var = jnp.maximum(meansq - mean * mean, 0.0)
    return mean, var


# ----------------------------------------------------------------------------
# Parameter prep (tiny, plain JAX): fold BN into W_ih / the head Linear, fold
# b_hr/b_hz into the x-side bias, pad hidden to Hp, pre-cast weights to bf16.
# ----------------------------------------------------------------------------
def _pack_fold_gru(w_ih, w_hh, b_ih, b_hh, gamma, beta, mean, var, Hp):
    """w_ih: (3,E,H), w_hh: (3,H,H), b_*: (3,1,H) in (r,z,n) order.
    Returns wih (E,3Hp) bf16, bih (1,3Hp) f32, whh (Hp,3Hp) bf16, bhn (1,Hp) f32."""
    H = w_hh.shape[-1]
    ph = Hp - H
    scale = gamma * lax.rsqrt(jnp.maximum(var, 0.0) + EPS)        # (E,)
    shift = beta - mean * scale                                    # (E,)

    def fold_gate(g, add_bhh):
        w = w_ih[g] * scale[:, None]                               # (E, H)
        b = b_ih[g] + (shift @ w_ih[g])[None, :]                   # (1, H)
        if add_bhh:                                                # b_hr / b_hz fold here
            b = b + b_hh[g]
        return jnp.pad(w, ((0, 0), (0, ph))), jnp.pad(b, ((0, 0), (0, ph)))

    wr, br = fold_gate(0, True)
    wz, bz = fold_gate(1, True)
    wn, bn_ = fold_gate(2, False)                                  # b_hn stays in the loop
    wih = jnp.concatenate([wr, wz, wn], axis=-1)                   # (E, 3Hp)
    bih = jnp.concatenate([br, bz, bn_], axis=-1)                  # (1, 3Hp)
    whh = jnp.concatenate(
        [jnp.pad(w_hh[g], ((0, ph), (0, ph))) for g in range(3)], axis=-1)  # (Hp, 3Hp)
    bhn = jnp.pad(b_hh[2], ((0, 0), (0, ph)))                      # (1, Hp)
    return wih.astype(jnp.bfloat16), bih, whh.astype(jnp.bfloat16), bhn


def _fold_head(lin_w, lin_b, gamma, beta, mean, var, Hp, Vp):
    """Fold BN2 into the Linear. Returns w (Hp,Vp) bf16, b (1,Vp) f32 (pad bias = -1e30)."""
    H, V = lin_w.shape
    scale = gamma * lax.rsqrt(jnp.maximum(var, 0.0) + EPS)
    shift = beta - mean * scale
    w = lin_w * scale[:, None]                                     # (H, V)
    b = lin_b + (shift @ lin_w)[None, :].reshape(1, V)             # (1, V)
    w = jnp.pad(w, ((0, Hp - H), (0, Vp - V)))
    b = jnp.pad(b, ((0, 0), (0, Vp - V)), constant_values=NEG)
    return w.astype(jnp.bfloat16), b


# ----------------------------------------------------------------------------
# Kernel 1: fused GRU layer.
#   - BN-folded input projection for a whole chunk (one MXU matmul),
#   - recurrence: one (BB,Hp)x(Hp,3Hp) matmul per step, f32 gate math,
#   - optional BN2 sum/sumsq accumulation (padded rows/steps masked),
#   - emits either the full hidden sequence (bf16) or only the final hidden (f32).
# Grid: (batch_blocks "parallel", time_chunks "arbitrary").
# ----------------------------------------------------------------------------
def _make_gru_kernel(*, chunk, Hp, BB, seq_len, seq_pad, batch,
                     emit_sequence, collect_stats):
    has_tail = seq_pad != seq_len
    tail_start = seq_len % chunk           # first chunk slot that can be a padded step

    def kernel(x_ref, h0_ref, wih_ref, bih_ref, whh_ref, bhn_ref, *rest):
        if collect_stats:
            out_ref, sum_ref, sq_ref, h_scr = rest
        else:
            out_ref, h_scr = rest

        t = pl.program_id(1)

        @pl.when(t == 0)
        def _():
            h_scr[...] = h0_ref[...]
            if collect_stats:
                sum_ref[...] = jnp.zeros_like(sum_ref)
                sq_ref[...] = jnp.zeros_like(sq_ref)

        wih = wih_ref[...]                                    # (E, 3Hp)  bf16, pre-cast
        whh = whh_ref[...]                                    # (Hp, 3Hp) bf16, pre-cast
        bhn = jnp.broadcast_to(bhn_ref[...], (BB, Hp))        # hoisted broadcast, f32

        # Fused BN-folded input projection for the whole chunk: one MXU matmul.
        xe = x_ref[...].reshape(chunk * BB, x_ref.shape[-1])  # bf16
        gx_all = (jnp.dot(xe, wih, preferred_element_type=jnp.float32)
                  + bih_ref[...]).reshape(chunk, BB, 3 * Hp)  # f32

        if collect_stats:
            row = (lax.broadcasted_iota(jnp.int32, (BB, 1), 0)
                   + pl.program_id(0) * BB)
            bmask = (row < batch).astype(jnp.float32)         # mask padded batch rows
            ssum = jnp.zeros((1, Hp), jnp.float32)
            ssq = jnp.zeros((1, Hp), jnp.float32)

        h = h_scr[...]                                        # (BB, Hp) f32 state
        for i in range(chunk):                                # static unroll
            gx = gx_all[i]                                    # (BB, 3Hp) f32
            gh = jnp.dot(h.astype(jnp.bfloat16), whh,
                         preferred_element_type=jnp.float32)  # (BB, 3Hp) f32
            # b_hr / b_hz are folded into bih; b_hn must stay inside r * (...).
            r = jax.nn.sigmoid(gx[:, :Hp] + gh[:, :Hp])
            z = jax.nn.sigmoid(gx[:, Hp:2 * Hp] + gh[:, Hp:2 * Hp])
            n = jnp.tanh(gx[:, 2 * Hp:] + r * (gh[:, 2 * Hp:] + bhn))
            h_new = (1.0 - z) * n + z * h

            maybe_pad_step = has_tail and i >= tail_start
            if maybe_pad_step:
                valid = (t * chunk + i) < seq_len             # freeze h on padded steps
                h = jnp.where(valid, h_new, h)
            else:
                h = h_new

            if collect_stats:
                m = bmask
                if maybe_pad_step:
                    m = m * valid.astype(jnp.float32)
                hm = h_new * m
                ssum = ssum + jnp.sum(hm, axis=0, keepdims=True)
                ssq = ssq + jnp.sum(hm * hm, axis=0, keepdims=True)

            if emit_sequence:
                out_ref[i] = h.astype(out_ref.dtype)          # bf16 hseq

        h_scr[...] = h
        if not emit_sequence:
            out_ref[...] = h                                  # resident final hidden (f32)
        if collect_stats:
            sum_ref[...] += ssum.reshape(1, 1, Hp)
            sq_ref[...] += ssq.reshape(1, 1, Hp)

    return kernel


def gru_layer(x, h0, wih, bih, whh, bhn, *, seq_len, batch,
              emit_sequence, collect_stats, chunk=CHUNK):
    """x: (Sp, Bp, E) bf16 raw embeddings (BN folded into wih/bih); h0: (Bp, Hp) f32."""
    Sp, Bp, E = x.shape
    Hp = whh.shape[0]
    # v7x: split the padded batch over the two TensorCores ("parallel" leading axis).
    NB = 2 if (Bp >= 16 and Bp % 16 == 0) else 1
    BB = Bp // NB
    T = Sp // chunk

    kernel = _make_gru_kernel(chunk=chunk, Hp=Hp, BB=BB, seq_len=seq_len,
                              seq_pad=Sp, batch=batch,
                              emit_sequence=emit_sequence, collect_stats=collect_stats)

    in_specs = [
        pl.BlockSpec((chunk, BB, E), lambda b, t: (t, b, 0)),
        pl.BlockSpec((BB, Hp), lambda b, t: (b, 0)),
        pl.BlockSpec((E, 3 * Hp), lambda b, t: (0, 0), pipeline_mode=_SINGLE),
        pl.BlockSpec((1, 3 * Hp), lambda b, t: (0, 0), pipeline_mode=_SINGLE),
        pl.BlockSpec((Hp, 3 * Hp), lambda b, t: (0, 0), pipeline_mode=_SINGLE),
        pl.BlockSpec((1, Hp), lambda b, t: (0, 0), pipeline_mode=_SINGLE),
    ]
    if emit_sequence:
        out_shapes = [jax.ShapeDtypeStruct((Sp, Bp, Hp), jnp.bfloat16)]
        out_specs = [pl.BlockSpec((chunk, BB, Hp), lambda b, t: (t, b, 0))]
    else:
        out_shapes = [jax.ShapeDtypeStruct((Bp, Hp), jnp.float32)]
        out_specs = [pl.BlockSpec((BB, Hp), lambda b, t: (b, 0))]
    if collect_stats:
        out_shapes += [jax.ShapeDtypeStruct((NB, 1, Hp), jnp.float32)] * 2
        out_specs += [pl.BlockSpec((1, 1, Hp), lambda b, t: (b, 0, 0))] * 2

    return pl.pallas_call(
        kernel,
        out_shape=tuple(out_shapes),
        grid_spec=pltpu.PrefetchScalarGridSpec(
            num_scalar_prefetch=0,
            grid=(NB, T),
            in_specs=in_specs,
            out_specs=out_specs,
            scratch_shapes=[pltpu.VMEM((BB, Hp), jnp.float32)],
        ),
        compiler_params=pltpu.CompilerParams(
            dimension_semantics=("parallel", "arbitrary"),
            vmem_limit_bytes=VMEM_LIMIT),
    )(x, h0, wih, bih, whh, bhn)


# ----------------------------------------------------------------------------
# Kernel 2: decoder head: (BN2-folded) Linear + log_softmax on the padded
# (Sp*Bp, Hp) bf16 hseq; vocab padded to a lane-dense multiple of 128.
# ----------------------------------------------------------------------------
def _head_kernel(h_ref, w_ref, b_ref, o_ref):
    logits = jnp.dot(h_ref[...], w_ref[...],
                     preferred_element_type=jnp.float32) + b_ref[...]
    m = jnp.max(logits, axis=-1, keepdims=True)
    s = logits - m
    lse = jnp.log(jnp.sum(jnp.exp(s), axis=-1, keepdims=True))
    o_ref[...] = s - lse


def decoder_head(h2, w, b, *, vmem_budget=HEAD_VMEM_BUDGET):
    R, Hp = h2.shape                     # R = Sp * Bp, always a multiple of 8
    Vp = w.shape[1]
    # VMEM-aware row tile: double-buffered f32 out + bf16 in, single-buffered weights.
    w_bytes = Hp * Vp * 2 + Vp * 4
    per_row = 2 * (Vp * 4 + Hp * 2)
    cap = max(8, min(512, (vmem_budget - w_bytes) // per_row, R))
    cap = cap // 8 * 8
    tile = next(t for t in range(cap, 7, -8) if R % t == 0)   # divides R -> no padding copy
    return pl.pallas_call(
        _head_kernel,
        out_shape=jax.ShapeDtypeStruct((R, Vp), jnp.float32),
        grid_spec=pltpu.PrefetchScalarGridSpec(
            num_scalar_prefetch=0,
            grid=(R // tile,),
            in_specs=[pl.BlockSpec((tile, Hp), lambda i: (i, 0)),
                      pl.BlockSpec((Hp, Vp), lambda i: (0, 0), pipeline_mode=_SINGLE),
                      pl.BlockSpec((1, Vp), lambda i: (0, 0), pipeline_mode=_SINGLE)],
            out_specs=pl.BlockSpec((tile, Vp), lambda i: (i, 0)),
        ),
        compiler_params=pltpu.CompilerParams(
            dimension_semantics=("parallel",),
            vmem_limit_bytes=VMEM_LIMIT),
    )(h2, w, b)


# ----------------------------------------------------------------------------
# Full model forward
# ----------------------------------------------------------------------------
def seq2seq_forward(params, encoder_inputs, decoder_inputs):
    Se, B = encoder_inputs.shape
    Sd = decoder_inputs.shape[0]
    H = params["enc_w_hh"].shape[-1]
    V = params["lin_w"].shape[-1]
    Bp = _round_up(max(B, 8), 8)
    Hp = _round_up(H, 128)
    Vp = _round_up(V, 128)
    Spe = _round_up(Se, CHUNK)
    Spd = _round_up(Sd, CHUNK)

    # ---------------- encoder ----------------
    mean_e, var_e = _embed_bn_stats(params["enc_embed"], encoder_inputs)
    wih_e, bih_e, whh_e, bhn_e = _pack_fold_gru(
        params["enc_w_ih"], params["enc_w_hh"], params["enc_b_ih"], params["enc_b_hh"],
        params["enc_bn_g"], params["enc_bn_b"], mean_e, var_e, Hp)
    # pad the (cheap, int) token ids instead of the float embeddings
    enc_tok = jnp.pad(encoder_inputs, ((0, Spe - Se), (0, Bp - B)))
    x_e = jnp.take(params["enc_embed"], enc_tok, axis=0).astype(jnp.bfloat16)  # (Spe,Bp,E)
    h0 = jnp.zeros((Bp, Hp), jnp.float32)
    (h_enc,) = gru_layer(x_e, h0, wih_e, bih_e, whh_e, bhn_e,
                         seq_len=Se, batch=B,
                         emit_sequence=False, collect_stats=False)

    # ---------------- decoder ----------------
    mean_d, var_d = _embed_bn_stats(params["dec_embed"], decoder_inputs)
    wih_d, bih_d, whh_d, bhn_d = _pack_fold_gru(
        params["dec_w_ih"], params["dec_w_hh"], params["dec_b_ih"], params["dec_b_hh"],
        params["dec_bn1_g"], params["dec_bn1_b"], mean_d, var_d, Hp)
    dec_tok = jnp.pad(decoder_inputs, ((0, Spd - Sd), (0, Bp - B)))
    x_d = jnp.take(params["dec_embed"], dec_tok, axis=0).astype(jnp.bfloat16)  # (Spd,Bp,E)
    hseq, hsum, hsq = gru_layer(x_d, h_enc, wih_d, bih_d, whh_d, bhn_d,
                                seq_len=Sd, batch=B,
                                emit_sequence=True, collect_stats=True)

    # ---------------- head: BN2 (stats fused into the GRU pass) folded into Linear ----------
    n2 = float(Sd * B)
    s = jnp.sum(hsum, axis=0).reshape(Hp)[:H]
    sq = jnp.sum(hsq, axis=0).reshape(Hp)[:H]
    mean2 = s / n2
    var2 = jnp.maximum(sq / n2 - mean2 * mean2, 0.0)
    w_head, b_head = _fold_head(params["lin_w"], params["lin_b"],
                                params["dec_bn2_g"], params["dec_bn2_b"],
                                mean2, var2, Hp, Vp)
    logp = decoder_head(hseq.reshape(Spd * Bp, Hp), w_head, b_head)      # (Spd*Bp, Vp)
    return logp.reshape(Spd, Bp, Vp)[:Sd, :B, :V]


# ----------------------------------------------------------------------------
# Pure-JAX reference (matches the PyTorch module, training-mode BatchNorm)
# ----------------------------------------------------------------------------
def _ref_bn(x_sbf, gamma, beta):
    S, B, C = x_sbf.shape
    x2 = x_sbf.reshape(S * B, C)
    mean = jnp.mean(x2, axis=0, keepdims=True)
    var = jnp.mean((x2 - mean) ** 2, axis=0, keepdims=True)
    y = (x2 - mean) / jnp.sqrt(var + EPS) * gamma.reshape(1, C) + beta.reshape(1, C)
    return y.reshape(S, B, C)


def _ref_gru(x, h0, w_ih, w_hh, b_ih, b_hh):
    def step(h, xt):
        r = jax.nn.sigmoid(xt @ w_ih[0] + b_ih[0] + h @ w_hh[0] + b_hh[0])
        z = jax.nn.sigmoid(xt @ w_ih[1] + b_ih[1] + h @ w_hh[1] + b_hh[1])
        n = jnp.tanh(xt @ w_ih[2] + b_ih[2] + r * (h @ w_hh[2] + b_hh[2]))
        h_new = (1.0 - z) * n + z * h
        return h_new, h_new
    h_last, hseq = lax.scan(step, h0, x)
    return hseq, h_last


def ref_forward(params, encoder_inputs, decoder_inputs):
    enc_emb = jnp.take(params["enc_embed"], encoder_inputs, axis=0)
    enc_bn = _ref_bn(enc_emb, params["enc_bn_g"], params["enc_bn_b"])
    B = encoder_inputs.shape[1]
    H = params["enc_w_hh"].shape[-1]
    _, h_enc = _ref_gru(enc_bn, jnp.zeros((B, H), jnp.float32),
                        params["enc_w_ih"], params["enc_w_hh"],
                        params["enc_b_ih"], params["enc_b_hh"])
    dec_emb = jnp.take(params["dec_embed"], decoder_inputs, axis=0)
    dec_bn = _ref_bn(dec_emb, params["dec_bn1_g"], params["dec_bn1_b"])
    hseq, _ = _ref_gru(dec_bn, h_enc, params["dec_w_ih"], params["dec_w_hh"],
                       params["dec_b_ih"], params["dec_b_hh"])
    hbn = _ref_bn(hseq, params["dec_bn2_g"], params["dec_bn2_b"])
    logits = hbn @ params["lin_w"] + params["lin_b"].reshape(-1)
    return jax.nn.log_softmax(logits, axis=-1)


# ----------------------------------------------------------------------------
# Deterministic parameter init (shapes follow the nn.Module __init__).
# GRU weights stored pre-transposed as (3, in, hidden); Linear weight as (H, V).
# ----------------------------------------------------------------------------
def init_params(key, enc_vocab, dec_vocab, embed, hidden):
    ks = jax.random.split(key, 20)
    sh = 1.0 / math.sqrt(hidden)

    def u(k, shape, scale):
        return jax.random.uniform(k, shape, jnp.float32, -scale, scale)

    return {
        "enc_embed": jax.random.normal(ks[0], (enc_vocab, embed), jnp.float32),
        "enc_bn_g": 1.0 + 0.1 * jax.random.normal(ks[1], (embed,), jnp.float32),
        "enc_bn_b": 0.1 * jax.random.normal(ks[2], (embed,), jnp.float32),
        "enc_w_ih": u(ks[3], (3, embed, hidden), sh),
        "enc_w_hh": u(ks[4], (3, hidden, hidden), sh),
        "enc_b_ih": u(ks[5], (3, 1, hidden), sh),
        "enc_b_hh": u(ks[6], (3, 1, hidden), sh),
        "dec_embed": jax.random.normal(ks[7], (dec_vocab, embed), jnp.float32),
        "dec_bn1_g": 1.0 + 0.1 * jax.random.normal(ks[8], (embed,), jnp.float32),
        "dec_bn1_b": 0.1 * jax.random.normal(ks[9], (embed,), jnp.float32),
        "dec_w_ih": u(ks[10], (3, embed, hidden), sh),
        "dec_w_hh": u(ks[11], (3, hidden, hidden), sh),
        "dec_b_ih": u(ks[12], (3, 1, hidden), sh),
        "dec_b_hh": u(ks[13], (3, 1, hidden), sh),
        "dec_bn2_g": 1.0 + 0.1 * jax.random.normal(ks[14], (hidden,), jnp.float32),
        "dec_bn2_b": 0.1 * jax.random.normal(ks[15], (hidden,), jnp.float32),
        "lin_w": u(ks[16], (hidden, dec_vocab), sh),      # PyTorch Linear weight.T
        "lin_b": u(ks[17], (1, dec_vocab), sh),
    }


if __name__ == "__main__":
    ENC_VOCAB, DEC_VOCAB = 50, 40
    EMBED, HIDDEN = 32, 32
    ENC_SEQ, DEC_SEQ, BATCH = 8, 8, 2

    root = jax.random.PRNGKey(0)
    kp, ke, kd = jax.random.split(root, 3)
    params = init_params(kp, ENC_VOCAB, DEC_VOCAB, EMBED, HIDDEN)

    encoder_inputs = jax.random.randint(ke, (ENC_SEQ, BATCH), 0, ENC_VOCAB, dtype=jnp.int32)
    decoder_inputs = jax.random.randint(kd, (DEC_SEQ, BATCH), 0, DEC_VOCAB, dtype=jnp.int32)

    fwd = jax.jit(seq2seq_forward)
    out = jax.block_until_ready(fwd(params, encoder_inputs, decoder_inputs))

    # sanity: log_softmax rows exponentiate to 1 (exact, softmax is done in f32)
    assert out.shape == (DEC_SEQ, BATCH, DEC_VOCAB)
    row_sums = jnp.sum(jnp.exp(out), axis=-1)
    assert bool(jnp.all(jnp.abs(row_sums - 1.0) < 1e-3))

    # vs. pure-f32 reference: matmul operands are bf16 (f32 accumulation / gate math),
    # so allow bf16-level error (typically ~1e-2 at these shapes).
    ref = ref_forward(params, encoder_inputs, decoder_inputs)
    max_err = float(jnp.max(jnp.abs(out - ref)))
    assert max_err < 1e-1, f"mismatch vs reference: {max_err}"

    print("KERNEL_OK")
</pallas_src>

<mosaic_0001>
module attributes {stable_mosaic.version = 11 : i64} {
  func.func private @main(%arg0: i32) attributes {dimension_semantics = [#tpu.dimension_semantics<core_parallel>], iteration_bounds = array<i64: 2>, tpu.core_type = #tpu.core_type<sc_scalar_subcore>, window_params = []} {
    return
  }
}

module attributes {stable_mosaic.version = 11 : i64} {
  func.func private @main(%arg0: i32) attributes {dimension_semantics = [#tpu.dimension_semantics<core_parallel>], iteration_bounds = array<i64: 2>, tpu.core_type = #tpu.core_type<sc_scalar_subcore>, window_params = []} {
    return
  }
}

module attributes {stable_mosaic.version = 11 : i64} {
  func.func @kernel(%arg0: i32, %arg1: i32, %arg2: memref<8x8x32xbf16, #tpu.memory_space<vmem>>, %arg3: memref<8x128xf32, #tpu.memory_space<vmem>>, %arg4: memref<32x384xbf16, #tpu.memory_space<vmem>>, %arg5: memref<1x384xf32, #tpu.memory_space<vmem>>, %arg6: memref<128x384xbf16, #tpu.memory_space<vmem>>, %arg7: memref<1x128xf32, #tpu.memory_space<vmem>>, %arg8: memref<8x128xf32, #tpu.memory_space<vmem>>, %arg9: memref<8x128xf32, #tpu.memory_space<vmem>>) attributes {dimension_semantics = [#tpu.dimension_semantics<parallel>, #tpu.dimension_semantics<arbitrary>], iteration_bounds = array<i64: 1, 1>, scalar_prefetch = 0 : i64, scratch_operands = 1 : i64, tpu.core_type = #tpu.core_type<tc>, window_params = [{transform_indices = @transform_0, window_bounds = array<i64: 8, 8, 32>}, {transform_indices = @transform_1, window_bounds = array<i64: 8, 128>}, {pipeline_mode = #tpu.pipeline_mode<synchronous>, transform_indices = @transform_2, window_bounds = array<i64: 32, 384>}, {pipeline_mode = #tpu.pipeline_mode<synchronous>, transform_indices = @transform_3, window_bounds = array<i64: 1, 384>}, {pipeline_mode = #tpu.pipeline_mode<synchronous>, transform_indices = @transform_4, window_bounds = array<i64: 128, 384>}, {pipeline_mode = #tpu.pipeline_mode<synchronous>, transform_indices = @transform_5, window_bounds = array<i64: 1, 128>}, {transform_indices = @transform_6, window_bounds = array<i64: 8, 128>}]} {
    %c0_i32 = arith.constant 0 : i32
    %0 = arith.cmpi eq, %arg1, %c0_i32 : i32
    %1 = arith.extui %0 : i1 to i32
    %c0_i32_0 = arith.constant 0 : i32
    %2 = arith.cmpi ne, %1, %c0_i32_0 : i32
    scf.if %2 {
      %c0_49 = arith.constant 0 : index
      %c0_50 = arith.constant 0 : index
      %266 = vector.load %arg3[%c0_49, %c0_50] : memref<8x128xf32, #tpu.memory_space<vmem>>, vector<8x128xf32>
      %c0_51 = arith.constant 0 : index
      %c0_52 = arith.constant 0 : index
      %267 = vector.load %arg9[%c0_51, %c0_52] : memref<8x128xf32, #tpu.memory_space<vmem>>, vector<8x128xf32>
      tpu.vector_store %arg9[%c0_51, %c0_52], %266 {strides = array<i32>} : memref<8x128xf32, #tpu.memory_space<vmem>>, vector<8x128xf32>,
    } else {
    }
    %c0 = arith.constant 0 : index
    %c0_1 = arith.constant 0 : index
    %3 = vector.load %arg4[%c0, %c0_1] : memref<32x384xbf16, #tpu.memory_space<vmem>>, vector<32x384xbf16>
    %c0_2 = arith.constant 0 : index
    %c0_3 = arith.constant 0 : index
    %4 = vector.load %arg6[%c0_2, %c0_3] : memref<128x384xbf16, #tpu.memory_space<vmem>>, vector<128x384xbf16>
    %c0_4 = arith.constant 0 : index
    %c0_5 = arith.constant 0 : index
    %5 = vector.load %arg7[%c0_4, %c0_5] : memref<1x128xf32, #tpu.memory_space<vmem>>, vector<1x128xf32>
    %6 = vector.shape_cast %5 : vector<1x128xf32> to vector<1x128xf32>
    %7 = vector.broadcast %6 : vector<1x128xf32> to vector<8x128xf32>
    %c0_6 = arith.constant 0 : index
    %c0_7 = arith.constant 0 : index
    %c0_8 = arith.constant 0 : index
    %8 = vector.load %arg2[%c0_6, %c0_7, %c0_8] : memref<8x8x32xbf16, #tpu.memory_space<vmem>>, vector<8x8x32xbf16>
    %9 = vector.shape_cast %8 : vector<8x8x32xbf16> to vector<64x32xbf16>
    %cst = arith.constant dense<0.000000e+00> : vector<64x384xf32>
    %10 = tpu.matmul %9, %3, %cst {dimension_numbers = #tpu.dot_dimension_numbers<[1], [0], [0], [1], [0, 0, 1, 1], [], []>} : vector<64x32xbf16>, vector<32x384xbf16>, vector<64x384xf32> -> vector<64x384xf32>
    %c0_9 = arith.constant 0 : index
    %c0_10 = arith.constant 0 : index
    %11 = vector.load %arg5[%c0_9, %c0_10] : memref<1x384xf32, #tpu.memory_space<vmem>>, vector<1x384xf32>
    %12 = vector.broadcast %11 : vector<1x384xf32> to vector<64x384xf32>
    %13 = arith.addf %10, %12 : vector<64x384xf32>
    %14 = vector.shape_cast %13 : vector<64x384xf32> to vector<8x8x384xf32>
    %c0_11 = arith.constant 0 : index
    %c0_12 = arith.constant 0 : index
    %15 = vector.load %arg9[%c0_11, %c0_12] : memref<8x128xf32, #tpu.memory_space<vmem>>, vector<8x128xf32>
    %16 = vector.extract_strided_slice %14 {offsets = [0, 0, 0], sizes = [1, 8, 384], strides = [1, 1, 1]} : vector<8x8x384xf32> to vector<1x8x384xf32>
    %17 = vector.shape_cast %16 : vector<1x8x384xf32> to vector<8x384xf32>
    %18 = arith.truncf %15 : vector<8x128xf32> to vector<8x128xbf16>
    %cst_13 = arith.constant dense<0.000000e+00> : vector<8x384xf32>
    %19 = tpu.matmul %18, %4, %cst_13 {dimension_numbers = #tpu.dot_dimension_numbers<[1], [0], [0], [1], [0, 0, 1, 1], [], []>} : vector<8x128xbf16>, vector<128x384xbf16>, vector<8x384xf32> -> vector<8x384xf32>
    %20 = vector.extract_strided_slice %17 {offsets = [0, 0], sizes = [8, 128], strides = [1, 1]} : vector<8x384xf32> to vector<8x128xf32>
    %21 = vector.extract_strided_slice %19 {offsets = [0, 0], sizes = [8, 128], strides = [1, 1]} : vector<8x384xf32> to vector<8x128xf32>
    %22 = arith.addf %20, %21 : vector<8x128xf32>
    %23 = arith.negf %22 : vector<8x128xf32>
    %24 = math.exp %23 : vector<8x128xf32>
    %cst_14 = arith.constant 1.000000e+00 : f32
    %25 = vector.broadcast %cst_14 : f32 to vector<8x128xf32>
    %26 = arith.addf %25, %24 : vector<8x128xf32>
    %27 = arith.divf %25, %26 : vector<8x128xf32>
    %28 = vector.extract_strided_slice %17 {offsets = [0, 128], sizes = [8, 128], strides = [1, 1]} : vector<8x384xf32> to vector<8x128xf32>
    %29 = vector.extract_strided_slice %19 {offsets = [0, 128], sizes = [8, 128], strides = [1, 1]} : vector<8x384xf32> to vector<8x128xf32>
    %30 = arith.addf %28, %29 : vector<8x128xf32>
    %31 = arith.negf %30 : vector<8x128xf32>
    %32 = math.exp %31 : vector<8x128xf32>
    %cst_15 = arith.constant 1.000000e+00 : f32
    %33 = vector.broadcast %cst_15 : f32 to vector<8x128xf32>
    %34 = arith.addf %33, %32 : vector<8x128xf32>
    %35 = arith.divf %33, %34 : vector<8x128xf32>
    %36 = vector.extract_strided_slice %17 {offsets = [0, 256], sizes = [8, 128], strides = [1, 1]} : vector<8x384xf32> to vector<8x128xf32>
    %37 = vector.extract_strided_slice %19 {offsets = [0, 256], sizes = [8, 128], strides = [1, 1]} : vector<8x384xf32> to vector<8x128xf32>
    %38 = arith.addf %37, %7 : vector<8x128xf32>
    %39 = arith.mulf %27, %38 : vector<8x128xf32>
    %40 = arith.addf %36, %39 : vector<8x128xf32>
    %41 = math.tanh %40 : vector<8x128xf32>
    %cst_16 = arith.constant 1.000000e+00 : f32
    %42 = vector.broadcast %cst_16 : f32 to vector<8x128xf32>
    %43 = arith.subf %42, %35 : vector<8x128xf32>
    %44 = arith.mulf %43, %41 : vector<8x128xf32>
    %45 = arith.mulf %35, %15 : vector<8x128xf32>
    %46 = arith.addf %44, %45 : vector<8x128xf32>
    %47 = vector.extract_strided_slice %14 {offsets = [1, 0, 0], sizes = [1, 8, 384], strides = [1, 1, 1]} : vector<8x8x384xf32> to vector<1x8x384xf32>
    %48 = vector.shape_cast %47 : vector<1x8x384xf32> to vector<8x384xf32>
    %49 = arith.truncf %46 : vector<8x128xf32> to vector<8x128xbf16>
    %cst_17 = arith.constant dense<0.000000e+00> : vector<8x384xf32>
    %50 = tpu.matmul %49, %4, %cst_17 {dimension_numbers = #tpu.dot_dimension_numbers<[1], [0], [0], [1], [0, 0, 1, 1], [], []>} : vector<8x128xbf16>, vector<128x384xbf16>, vector<8x384xf32> -> vector<8x384xf32>
    %51 = vector.extract_strided_slice %48 {offsets = [0, 0], sizes = [8, 128], strides = [1, 1]} : vector<8x384xf32> to vector<8x128xf32>
    %52 = vector.extract_strided_slice %50 {offsets = [0, 0], sizes = [8, 128], strides = [1, 1]} : vector<8x384xf32> to vector<8x128xf32>
    %53 = arith.addf %51, %52 : vector<8x128xf32>
    %54 = arith.negf %53 : vector<8x128xf32>
    %55 = math.exp %54 : vector<8x128xf32>
    %cst_18 = arith.constant 1.000000e+00 : f32
    %56 = vector.broadcast %cst_18 : f32 to vector<8x128xf32>
    %57 = arith.addf %56, %55 : vector<8x128xf32>
    %58 = arith.divf %56, %57 : vector<8x128xf32>
    %59 = vector.extract_strided_slice %48 {offsets = [0, 128], sizes = [8, 128], strides = [1, 1]} : vector<8x384xf32> to vector<8x128xf32>
    %60 = vector.extract_strided_slice %50 {offsets = [0, 128], sizes = [8, 128], strides = [1, 1]} : vector<8x384xf32> to vector<8x128xf32>
    %61 = arith.addf %59, %60 : vector<8x128xf32>
    %62 = arith.negf %61 : vector<8x128xf32>
    %63 = math.exp %62 : vector<8x128xf32>
    %cst_19 = arith.constant 1.000000e+00 : f32
    %64 = vector.broadcast %cst_19 : f32 to vector<8x128xf32>
    %65 = arith.addf %64, %63 : vector<8x128xf32>
    %66 = arith.divf %64, %65 : vector<8x128xf32>
    %67 = vector.extract_strided_slice %48 {offsets = [0, 256], sizes = [8, 128], strides = [1, 1]} : vector<8x384xf32> to vector<8x128xf32>
    %68 = vector.extract_strided_slice %50 {offsets = [0, 256], sizes = [8, 128], strides = [1, 1]} : vector<8x384xf32> to vector<8x128xf32>
    %69 = arith.addf %68, %7 : vector<8x128xf32>
    %70 = arith.mulf %58, %69 : vector<8x128xf32>
    %71 = arith.addf %67, %70 : vector<8x128xf32>
    %72 = math.tanh %71 : vector<8x128xf32>
    %cst_20 = arith.constant 1.000000e+00 : f32
    %73 = vector.broadcast %cst_20 : f32 to vector<8x128xf32>
    %74 = arith.subf %73, %66 : vector<8x128xf32>
    %75 = arith.mulf %74, %72 : vector<8x128xf32>
    %76 = arith.mulf %66, %46 : vector<8x128xf32>
    %77 = arith.addf %75, %76 : vector<8x128xf32>
    %78 = vector.extract_strided_slice %14 {offsets = [2, 0, 0], sizes = [1, 8, 384], strides = [1, 1, 1]} : vector<8x8x384xf32> to vector<1x8x384xf32>
    %79 = vector.shape_cast %78 : vector<1x8x384xf32> to vector<8x384xf32>
    %80 = arith.truncf %77 : vector<8x128xf32> to vector<8x128xbf16>
    %cst_21 = arith.constant dense<0.000000e+00> : vector<8x384xf32>
    %81 = tpu.matmul %80, %4, %cst_21 {dimension_numbers = #tpu.dot_dimension_numbers<[1], [0], [0], [1], [0, 0, 1, 1], [], []>} : vector<8x128xbf16>, vector<128x384xbf16>, vector<8x384xf32> -> vector<8x384xf32>
    %82 = vector.extract_strided_slice %79 {offsets = [0, 0], sizes = [8, 128], strides = [1, 1]} : vector<8x384xf32> to vector<8x128xf32>
    %83 = vector.extract_strided_slice %81 {offsets = [0, 0], sizes = [8, 128], strides = [1, 1]} : vector<8x384xf32> to vector<8x128xf32>
    %84 = arith.addf %82, %83 : vector<8x128xf32>
    %85 = arith.negf %84 : vector<8x128xf32>
    %86 = math.exp %85 : vector<8x128xf32>
    %cst_22 = arith.constant 1.000000e+00 : f32
    %87 = vector.broadcast %cst_22 : f32 to vector<8x128xf32>
    %88 = arith.addf %87, %86 : vector<8x128xf32>
    %89 = arith.divf %87, %88 : vector<8x128xf32>
    %90 = vector.extract_strided_slice %79 {offsets = [0, 128], sizes = [8, 128], strides = [1, 1]} : vector<8x384xf32> to vector<8x128xf32>
    %91 = vector.extract_strided_slice %81 {offsets = [0, 128], sizes = [8, 128], strides = [1, 1]} : vector<8x384xf32> to vector<8x128xf32>
    %92 = arith.addf %90, %91 : vector<8x128xf32>
    %93 = arith.negf %92 : vector<8x128xf32>
    %94 = math.exp %93 : vector<8x128xf32>
    %cst_23 = arith.constant 1.000000e+00 : f32
    %95 = vector.broadcast %cst_23 : f32 to vector<8x128xf32>
    %96 = arith.addf %95, %94 : vector<8x128xf32>
    %97 = arith.divf %95, %96 : vector<8x128xf32>
    %98 = vector.extract_strided_slice %79 {offsets = [0, 256], sizes = [8, 128], strides = [1, 1]} : vector<8x384xf32> to vector<8x128xf32>
    %99 = vector.extract_strided_slice %81 {offsets = [0, 256], sizes = [8, 128], strides = [1, 1]} : vector<8x384xf32> to vector<8x128xf32>
    %100 = arith.addf %99, %7 : vector<8x128xf32>
    %101 = arith.mulf %89, %100 : vector<8x128xf32>
    %102 = arith.addf %98, %101 : vector<8x128xf32>
    %103 = math.tanh %102 : vector<8x128xf32>
    %cst_24 = arith.constant 1.000000e+00 : f32
    %104 = vector.broadcast %cst_24 : f32 to vector<8x128xf32>
    %105 = arith.subf %104, %97 : vector<8x128xf32>
    %106 = arith.mulf %105, %103 : vector<8x128xf32>
    %107 = arith.mulf %97, %77 : vector<8x128xf32>
    %108 = arith.addf %106, %107 : vector<8x128xf32>
    %109 = vector.extract_strided_slice %14 {offsets = [3, 0, 0], sizes = [1, 8, 384], strides = [1, 1, 1]} : vector<8x8x384xf32> to vector<1x8x384xf32>
    %110 = vector.shape_cast %109 : vector<1x8x384xf32> to vector<8x384xf32>
    %111 = arith.truncf %108 : vector<8x128xf32> to vector<8x128xbf16>
    %cst_25 = arith.constant dense<0.000000e+00> : vector<8x384xf32>
    %112 = tpu.matmul %111, %4, %cst_25 {dimension_numbers = #tpu.dot_dimension_numbers<[1], [0], [0], [1], [0, 0, 1, 1], [], []>} : vector<8x128xbf16>, vector<128x384xbf16>, vector<8x384xf32> -> vector<8x384xf32>
    %113 = vector.extract_strided_slice %110 {offsets = [0, 0], sizes = [8, 128], strides = [1, 1]} : vector<8x384xf32> to vector<8x128xf32>
    %114 = vector.extract_strided_slice %112 {offsets = [0, 0], sizes = [8, 128], strides = [1, 1]} : vector<8x384xf32> to vector<8x128xf32>
    %115 = arith.addf %113, %114 : vector<8x128xf32>
    %116 = arith.negf %115 : vector<8x128xf32>
    %117 = math.exp %116 : vector<8x128xf32>
    %cst_26 = arith.constant 1.000000e+00 : f32
    %118 = vector.broadcast %cst_26 : f32 to vector<8x128xf32>
    %119 = arith.addf %118, %117 : vector<8x128xf32>
    %120 = arith.divf %118, %119 : vector<8x128xf32>
    %121 = vector.extract_strided_slice %110 {offsets = [0, 128], sizes = [8, 128], strides = [1, 1]} : vector<8x384xf32> to vector<8x128xf32>
    %122 = vector.extract_strided_slice %112 {offsets = [0, 128], sizes = [8, 128], strides = [1, 1]} : vector<8x384xf32> to vector<8x128xf32>
    %123 = arith.addf %121, %122 : vector<8x128xf32>
    %124 = arith.negf %123 : vector<8x128xf32>
    %125 = math.exp %124 : vector<8x128xf32>
    %cst_27 = arith.constant 1.000000e+00 : f32
    %126 = vector.broadcast %cst_27 : f32 to vector<8x128xf32>
    %127 = arith.addf %126, %125 : vector<8x128xf32>
    %128 = arith.divf %126, %127 : vector<8x128xf32>
    %129 = vector.extract_strided_slice %110 {offsets = [0, 256], sizes = [8, 128], strides = [1, 1]} : vector<8x384xf32> to vector<8x128xf32>
    %130 = vector.extract_strided_slice %112 {offsets = [0, 256], sizes = [8, 128], strides = [1, 1]} : vector<8x384xf32> to vector<8x128xf32>
    %131 = arith.addf %130, %7 : vector<8x128xf32>
    %132 = arith.mulf %120, %131 : vector<8x128xf32>
    %133 = arith.addf %129, %132 : vector<8x128xf32>
    %134 = math.tanh %133 : vector<8x128xf32>
    %cst_28 = arith.constant 1.000000e+00 : f32
    %135 = vector.broadcast %cst_28 : f32 to vector<8x128xf32>
    %136 = arith.subf %135, %128 : vector<8x128xf32>
    %137 = arith.mulf %136, %134 : vector<8x128xf32>
    %138 = arith.mulf %128, %108 : vector<8x128xf32>
    %139 = arith.addf %137, %138 : vector<8x128xf32>
    %140 = vector.extract_strided_slice %14 {offsets = [4, 0, 0], sizes = [1, 8, 384], strides = [1, 1, 1]} : vector<8x8x384xf32> to vector<1x8x384xf32>
    %141 = vector.shape_cast %140 : vector<1x8x384xf32> to vector<8x384xf32>
    %142 = arith.truncf %139 : vector<8x128xf32> to vector<8x128xbf16>
    %cst_29 = arith.constant dense<0.000000e+00> : vector<8x384xf32>
    %143 = tpu.matmul %142, %4, %cst_29 {dimension_numbers = #tpu.dot_dimension_numbers<[1], [0], [0], [1], [0, 0, 1, 1], [], []>} : vector<8x128xbf16>, vector<128x384xbf16>, vector<8x384xf32> -> vector<8x384xf32>
    %144 = vector.extract_strided_slice %141 {offsets = [0, 0], sizes = [8, 128], strides = [1, 1]} : vector<8x384xf32> to vector<8x128xf32>
    %145 = vector.extract_strided_slice %143 {offsets = [0, 0], sizes = [8, 128], strides = [1, 1]} : vector<8x384xf32> to vector<8x128xf32>
    %146 = arith.addf %144, %145 : vector<8x128xf32>
    %147 = arith.negf %146 : vector<8x128xf32>
    %148 = math.exp %147 : vector<8x128xf32>
    %cst_30 = arith.constant 1.000000e+00 : f32
    %149 = vector.broadcast %cst_30 : f32 to vector<8x128xf32>
    %150 = arith.addf %149, %148 : vector<8x128xf32>
    %151 = arith.divf %149, %150 : vector<8x128xf32>
    %152 = vector.extract_strided_slice %141 {offsets = [0, 128], sizes = [8, 128], strides = [1, 1]} : vector<8x384xf32> to vector<8x128xf32>
    %153 = vector.extract_strided_slice %143 {offsets = [0, 128], sizes = [8, 128], strides = [1, 1]} : vector<8x384xf32> to vector<8x128xf32>
    %154 = arith.addf %152, %153 : vector<8x128xf32>
    %155 = arith.negf %154 : vector<8x128xf32>
    %156 = math.exp %155 : vector<8x128xf32>
    %cst_31 = arith.constant 1.000000e+00 : f32
    %157 = vector.broadcast %cst_31 : f32 to vector<8x128xf32>
    %158 = arith.addf %157, %156 : vector<8x128xf32>
    %159 = arith.divf %157, %158 : vector<8x128xf32>
    %160 = vector.extract_strided_slice %141 {offsets = [0, 256], sizes = [8, 128], strides = [1, 1]} : vector<8x384xf32> to vector<8x128xf32>
    %161 = vector.extract_strided_slice %143 {offsets = [0, 256], sizes = [8, 128], strides = [1, 1]} : vector<8x384xf32> to vector<8x128xf32>
    %162 = arith.addf %161, %7 : vector<8x128xf32>
    %163 = arith.mulf %151, %162 : vector<8x128xf32>
    %164 = arith.addf %160, %163 : vector<8x128xf32>
    %165 = math.tanh %164 : vector<8x128xf32>
    %cst_32 = arith.constant 1.000000e+00 : f32
    %166 = vector.broadcast %cst_32 : f32 to vector<8x128xf32>
    %167 = arith.subf %166, %159 : vector<8x128xf32>
    %168 = arith.mulf %167, %165 : vector<8x128xf32>
    %169 = arith.mulf %159, %139 : vector<8x128xf32>
    %170 = arith.addf %168, %169 : vector<8x128xf32>
    %171 = vector.extract_strided_slice %14 {offsets = [5, 0, 0], sizes = [1, 8, 384], strides = [1, 1, 1]} : vector<8x8x384xf32> to vector<1x8x384xf32>
    %172 = vector.shape_cast %171 : vector<1x8x384xf32> to vector<8x384xf32>
    %173 = arith.truncf %170 : vector<8x128xf32> to vector<8x128xbf16>
    %cst_33 = arith.constant dense<0.000000e+00> : vector<8x384xf32>
    %174 = tpu.matmul %173, %4, %cst_33 {dimension_numbers = #tpu.dot_dimension_numbers<[1], [0], [0], [1], [0, 0, 1, 1], [], []>} : vector<8x128xbf16>, vector<128x384xbf16>, vector<8x384xf32> -> vector<8x384xf32>
    %175 = vector.extract_strided_slice %172 {offsets = [0, 0], sizes = [8, 128], strides = [1, 1]} : vector<8x384xf32> to vector<8x128xf32>
    %176 = vector.extract_strided_slice %174 {offsets = [0, 0], sizes = [8, 128], strides = [1, 1]} : vector<8x384xf32> to vector<8x128xf32>
    %177 = arith.addf %175, %176 : vector<8x128xf32>
    %178 = arith.negf %177 : vector<8x128xf32>
    %179 = math.exp %178 : vector<8x128xf32>
    %cst_34 = arith.constant 1.000000e+00 : f32
    %180 = vector.broadcast %cst_34 : f32 to vector<8x128xf32>
    %181 = arith.addf %180, %179 : vector<8x128xf32>
    %182 = arith.divf %180, %181 : vector<8x128xf32>
    %183 = vector.extract_strided_slice %172 {offsets = [0, 128], sizes = [8, 128], strides = [1, 1]} : vector<8x384xf32> to vector<8x128xf32>
    %184 = vector.extract_strided_slice %174 {offsets = [0, 128], sizes = [8, 128], strides = [1, 1]} : vector<8x384xf32> to vector<8x128xf32>
    %185 = arith.addf %183, %184 : vector<8x128xf32>
    %186 = arith.negf %185 : vector<8x128xf32>
    %187 = math.exp %186 : vector<8x128xf32>
    %cst_35 = arith.constant 1.000000e+00 : f32
    %188 = vector.broadcast %cst_35 : f32 to vector<8x128xf32>
    %189 = arith.addf %188, %187 : vector<8x128xf32>
    %190 = arith.divf %188, %189 : vector<8x128xf32>
    %191 = vector.extract_strided_slice %172 {offsets = [0, 256], sizes = [8, 128], strides = [1, 1]} : vector<8x384xf32> to vector<8x128xf32>
    %192 = vector.extract_strided_slice %174 {offsets = [0, 256], sizes = [8, 128], strides = [1, 1]} : vector<8x384xf32> to vector<8x128xf32>
    %193 = arith.addf %192, %7 : vector<8x128xf32>
    %194 = arith.mulf %182, %193 : vector<8x128xf32>
    %195 = arith.addf %191, %194 : vector<8x128xf32>
    %196 = math.tanh %195 : vector<8x128xf32>
    %cst_36 = arith.constant 1.000000e+00 : f32
    %197 = vector.broadcast %cst_36 : f32 to vector<8x128xf32>
    %198 = arith.subf %197, %190 : vector<8x128xf32>
    %199 = arith.mulf %198, %196 : vector<8x128xf32>
    %200 = arith.mulf %190, %170 : vector<8x128xf32>
    %201 = arith.addf %199, %200 : vector<8x128xf32>
    %202 = vector.extract_strided_slice %14 {offsets = [6, 0, 0], sizes = [1, 8, 384], strides = [1, 1, 1]} : vector<8x8x384xf32> to vector<1x8x384xf32>
    %203 = vector.shape_cast %202 : vector<1x8x384xf32> to vector<8x384xf32>
    %204 = arith.truncf %201 : vector<8x128xf32> to vector<8x128xbf16>
    %cst_37 = arith.constant dense<0.000000e+00> : vector<8x384xf32>
    %205 = tpu.matmul %204, %4, %cst_37 {dimension_numbers = #tpu.dot_dimension_numbers<[1], [0], [0], [1], [0, 0, 1, 1], [], []>} : vector<8x128xbf16>, vector<128x384xbf16>, vector<8x384xf32> -> vector<8x384xf32>
    %206 = vector.extract_strided_slice %203 {offsets = [0, 0], sizes = [8, 128], strides = [1, 1]} : vector<8x384xf32> to vector<8x128xf32>
    %207 = vector.extract_strided_slice %205 {offsets = [0, 0], sizes = [8, 128], strides = [1, 1]} : vector<8x384xf32> to vector<8x128xf32>
    %208 = arith.addf %206, %207 : vector<8x128xf32>
    %209 = arith.negf %208 : vector<8x128xf32>
    %210 = math.exp %209 : vector<8x128xf32>
    %cst_38 = arith.constant 1.000000e+00 : f32
    %211 = vector.broadcast %cst_38 : f32 to vector<8x128xf32>
    %212 = arith.addf %211, %210 : vector<8x128xf32>
    %213 = arith.divf %211, %212 : vector<8x128xf32>
    %214 = vector.extract_strided_slice %203 {offsets = [0, 128], sizes = [8, 128], strides = [1, 1]} : vector<8x384xf32> to vector<8x128xf32>
    %215 = vector.extract_strided_slice %205 {offsets = [0, 128], sizes = [8, 128], strides = [1, 1]} : vector<8x384xf32> to vector<8x128xf32>
    %216 = arith.addf %214, %215 : vector<8x128xf32>
    %217 = arith.negf %216 : vector<8x128xf32>
    %218 = math.exp %217 : vector<8x128xf32>
    %cst_39 = arith.constant 1.000000e+00 : f32
    %219 = vector.broadcast %cst_39 : f32 to vector<8x128xf32>
    %220 = arith.addf %219, %218 : vector<8x128xf32>
    %221 = arith.divf %219, %220 : vector<8x128xf32>
    %222 = vector.extract_strided_slice %203 {offsets = [0, 256], sizes = [8, 128], strides = [1, 1]} : vector<8x384xf32> to vector<8x128xf32>
    %223 = vector.extract_strided_slice %205 {offsets = [0, 256], sizes = [8, 128], strides = [1, 1]} : vector<8x384xf32> to vector<8x128xf32>
    %224 = arith.addf %223, %7 : vector<8x128xf32>
    %225 = arith.mulf %213, %224 : vector<8x128xf32>
    %226 = arith.addf %222, %225 : vector<8x128xf32>
    %227 = math.tanh %226 : vector<8x128xf32>
    %cst_40 = arith.constant 1.000000e+00 : f32
    %228 = vector.broadcast %cst_40 : f32 to vector<8x128xf32>
    %229 = arith.subf %228, %221 : vector<8x128xf32>
    %230 = arith.mulf %229, %227 : vector<8x128xf32>
    %231 = arith.mulf %221, %201 : vector<8x128xf32>
    %232 = arith.addf %230, %231 : vector<8x128xf32>
    %233 = vector.extract_strided_slice %14 {offsets = [7, 0, 0], sizes = [1, 8, 384], strides = [1, 1, 1]} : vector<8x8x384xf32> to vector<1x8x384xf32>
    %234 = vector.shape_cast %233 : vector<1x8x384xf32> to vector<8x384xf32>
    %235 = arith.truncf %232 : vector<8x128xf32> to vector<8x128xbf16>
    %cst_41 = arith.constant dense<0.000000e+00> : vector<8x384xf32>
    %236 = tpu.matmul %235, %4, %cst_41 {dimension_numbers = #tpu.dot_dimension_numbers<[1], [0], [0], [1], [0, 0, 1, 1], [], []>} : vector<8x128xbf16>, vector<128x384xbf16>, vector<8x384xf32> -> vector<8x384xf32>
    %237 = vector.extract_strided_slice %234 {offsets = [0, 0], sizes = [8, 128], strides = [1, 1]} : vector<8x384xf32> to vector<8x128xf32>
    %238 = vector.extract_strided_slice %236 {offsets = [0, 0], sizes = [8, 128], strides = [1, 1]} : vector<8x384xf32> to vector<8x128xf32>
    %239 = arith.addf %237, %238 : vector<8x128xf32>
    %240 = arith.negf %239 : vector<8x128xf32>
    %241 = math.exp %240 : vector<8x128xf32>
    %cst_42 = arith.constant 1.000000e+00 : f32
    %242 = vector.broadcast %cst_42 : f32 to vector<8x128xf32>
    %243 = arith.addf %242, %241 : vector<8x128xf32>
    %244 = arith.divf %242, %243 : vector<8x128xf32>
    %245 = vector.extract_strided_slice %234 {offsets = [0, 128], sizes = [8, 128], strides = [1, 1]} : vector<8x384xf32> to vector<8x128xf32>
    %246 = vector.extract_strided_slice %236 {offsets = [0, 128], sizes = [8, 128], strides = [1, 1]} : vector<8x384xf32> to vector<8x128xf32>
    %247 = arith.addf %245, %246 : vector<8x128xf32>
    %248 = arith.negf %247 : vector<8x128xf32>
    %249 = math.exp %248 : vector<8x128xf32>
    %cst_43 = arith.constant 1.000000e+00 : f32
    %250 = vector.broadcast %cst_43 : f32 to vector<8x128xf32>
    %251 = arith.addf %250, %249 : vector<8x128xf32>
    %252 = arith.divf %250, %251 : vector<8x128xf32>
    %253 = vector.extract_strided_slice %234 {offsets = [0, 256], sizes = [8, 128], strides = [1, 1]} : vector<8x384xf32> to vector<8x128xf32>
    %254 = vector.extract_strided_slice %236 {offsets = [0, 256], sizes = [8, 128], strides = [1, 1]} : vector<8x384xf32> to vector<8x128xf32>
    %255 = arith.addf %254, %7 : vector<8x128xf32>
    %256 = arith.mulf %244, %255 : vector<8x128xf32>
    %257 = arith.addf %253, %256 : vector<8x128xf32>
    %258 = math.tanh %257 : vector<8x128xf32>
    %cst_44 = arith.constant 1.000000e+00 : f32
    %259 = vector.broadcast %cst_44 : f32 to vector<8x128xf32>
    %260 = arith.subf %259, %252 : vector<8x128xf32>
    %261 = arith.mulf %260, %258 : vector<8x128xf32>
    %262 = arith.mulf %252, %232 : vector<8x128xf32>
    %263 = arith.addf %261, %262 : vector<8x128xf32>
    %c0_45 = arith.constant 0 : index
    %c0_46 = arith.constant 0 : index
    %264 = vector.load %arg9[%c0_45, %c0_46] : memref<8x128xf32, #tpu.memory_space<vmem>>, vector<8x128xf32>
    tpu.vector_store %arg9[%c0_45, %c0_46], %263 {strides = array<i32>} : memref<8x128xf32, #tpu.memory_space<vmem>>, vector<8x128xf32>,
    %c0_47 = arith.constant 0 : index
    %c0_48 = arith.constant 0 : index
    %265 = vector.load %arg8[%c0_47, %c0_48] : memref<8x128xf32, #tpu.memory_space<vmem>>, vector<8x128xf32>
    tpu.vector_store %arg8[%c0_47, %c0_48], %263 {strides = array<i32>} : memref<8x128xf32, #tpu.memory_space<vmem>>, vector<8x128xf32>,
    return
  }
  func.func @transform_0(%arg0: i32, %arg1: i32) -> (i32, i32, i32) {
    %c0_i32 = arith.constant 0 : i32
    %c0_i32_0 = arith.constant 0 : i32
    return %arg1, %arg0, %c0_i32 : i32, i32, i32
  }
  func.func @transform_1(%arg0: i32, %arg1: i32) -> (i32, i32) {
    %c0_i32 = arith.constant 0 : i32
    %c0_i32_0 = arith.constant 0 : i32
    return %arg0, %c0_i32 : i32, i32
  }
  func.func @transform_2(%arg0: i32, %arg1: i32) -> (i32, i32) {
    %c0_i32 = arith.constant 0 : i32
    %c0_i32_0 = arith.constant 0 : i32
    %c0_i32_1 = arith.constant 0 : i32
    return %c0_i32, %c0_i32_0 : i32, i32
  }
  func.func @transform_3(%arg0: i32, %arg1: i32) -> (i32, i32) {
    %c0_i32 = arith.constant 0 : i32
    %c0_i32_0 = arith.constant 0 : i32
    %c0_i32_1 = arith.constant 0 : i32
    return %c0_i32, %c0_i32_0 : i32, i32
  }
  func.func @transform_4(%arg0: i32, %arg1: i32) -> (i32, i32) {
    %c0_i32 = arith.constant 0 : i32
    %c0_i32_0 = arith.constant 0 : i32
    %c0_i32_1 = arith.constant 0 : i32
    return %c0_i32, %c0_i32_0 : i32, i32
  }
  func.func @transform_5(%arg0: i32, %arg1: i32) -> (i32, i32) {
    %c0_i32 = arith.constant 0 : i32
    %c0_i32_0 = arith.constant 0 : i32
    %c0_i32_1 = arith.constant 0 : i32
    return %c0_i32, %c0_i32_0 : i32, i32
  }
  func.func @transform_6(%arg0: i32, %arg1: i32) -> (i32, i32) {
    %c0_i32 = arith.constant 0 : i32
    %c0_i32_0 = arith.constant 0 : i32
    return %arg0, %c0_i32 : i32, i32
  }
}

module attributes {stable_mosaic.version = 11 : i64} {
  func.func @kernel(%arg0: i32, %arg1: i32, %arg2: memref<8x8x32xbf16, #tpu.memory_space<vmem>>, %arg3: memref<8x128xf32, #tpu.memory_space<vmem>>, %arg4: memref<32x384xbf16, #tpu.memory_space<vmem>>, %arg5: memref<1x384xf32, #tpu.memory_space<vmem>>, %arg6: memref<128x384xbf16, #tpu.memory_space<vmem>>, %arg7: memref<1x128xf32, #tpu.memory_space<vmem>>, %arg8: memref<8x8x128xbf16, #tpu.memory_space<vmem>>, %arg9: memref<1x1x128xf32, #tpu.memory_space<vmem>>, %arg10: memref<1x1x128xf32, #tpu.memory_space<vmem>>, %arg11: memref<8x128xf32, #tpu.memory_space<vmem>>) attributes {dimension_semantics = [#tpu.dimension_semantics<parallel>, #tpu.dimension_semantics<arbitrary>], iteration_bounds = array<i64: 1, 1>, scalar_prefetch = 0 : i64, scratch_operands = 1 : i64, tpu.core_type = #tpu.core_type<tc>, window_params = [{transform_indices = @transform_0, window_bounds = array<i64: 8, 8, 32>}, {transform_indices = @transform_1, window_bounds = array<i64: 8, 128>}, {pipeline_mode = #tpu.pipeline_mode<synchronous>, transform_indices = @transform_2, window_bounds = array<i64: 32, 384>}, {pipeline_mode = #tpu.pipeline_mode<synchronous>, transform_indices = @transform_3, window_bounds = array<i64: 1, 384>}, {pipeline_mode = #tpu.pipeline_mode<synchronous>, transform_indices = @transform_4, window_bounds = array<i64: 128, 384>}, {pipeline_mode = #tpu.pipeline_mode<synchronous>, transform_indices = @transform_5, window_bounds = array<i64: 1, 128>}, {transform_indices = @transform_6, window_bounds = array<i64: 8, 8, 128>}, {transform_indices = @transform_7, window_bounds = array<i64: 1, 1, 128>}, {transform_indices = @transform_8, window_bounds = array<i64: 1, 1, 128>}]} {
    %c0_i32 = arith.constant 0 : i32
    %0 = arith.cmpi eq, %arg1, %c0_i32 : i32
    %1 = arith.extui %0 : i1 to i32
    %c0_i32_0 = arith.constant 0 : i32
    %2 = arith.cmpi ne, %1, %c0_i32_0 : i32
    scf.if %2 {
      %c0_94 = arith.constant 0 : index
      %c0_95 = arith.constant 0 : index
      %387 = vector.load %arg3[%c0_94, %c0_95] : memref<8x128xf32, #tpu.memory_space<vmem>>, vector<8x128xf32>
      %c0_96 = arith.constant 0 : index
      %c0_97 = arith.constant 0 : index
      %388 = vector.load %arg11[%c0_96, %c0_97] : memref<8x128xf32, #tpu.memory_space<vmem>>, vector<8x128xf32>
      tpu.vector_store %arg11[%c0_96, %c0_97], %387 {strides = array<i32>} : memref<8x128xf32, #tpu.memory_space<vmem>>, vector<8x128xf32>,
      %cst_98 = arith.constant 0.000000e+00 : f32
      %389 = vector.broadcast %cst_98 : f32 to vector<1x1x128xf32>
      %c0_99 = arith.constant 0 : index
      %c0_100 = arith.constant 0 : index
      %c0_101 = arith.constant 0 : index
      %390 = vector.load %arg9[%c0_99, %c0_100, %c0_101] : memref<1x1x128xf32, #tpu.memory_space<vmem>>, vector<1x1x128xf32>
      tpu.vector_store %arg9[%c0_99, %c0_100, %c0_101], %389 {strides = array<i32>} : memref<1x1x128xf32, #tpu.memory_space<vmem>>, vector<1x1x128xf32>,
      %cst_102 = arith.constant 0.000000e+00 : f32
      %391 = vector.broadcast %cst_102 : f32 to vector<1x1x128xf32>
      %c0_103 = arith.constant 0 : index
      %c0_104 = arith.constant 0 : index
      %c0_105 = arith.constant 0 : index
      %392 = vector.load %arg10[%c0_103, %c0_104, %c0_105] : memref<1x1x128xf32, #tpu.memory_space<vmem>>, vector<1x1x128xf32>
      tpu.vector_store %arg10[%c0_103, %c0_104, %c0_105], %391 {strides = array<i32>} : memref<1x1x128xf32, #tpu.memory_space<vmem>>, vector<1x1x128xf32>,
    } else {
    }
    %c0 = arith.constant 0 : index
    %c0_1 = arith.constant 0 : index
    %3 = vector.load %arg4[%c0, %c0_1] : memref<32x384xbf16, #tpu.memory_space<vmem>>, vector<32x384xbf16>
    %c0_2 = arith.constant 0 : index
    %c0_3 = arith.constant 0 : index
    %4 = vector.load %arg6[%c0_2, %c0_3] : memref<128x384xbf16, #tpu.memory_space<vmem>>, vector<128x384xbf16>
    %c0_4 = arith.constant 0 : index
    %c0_5 = arith.constant 0 : index
    %5 = vector.load %arg7[%c0_4, %c0_5] : memref<1x128xf32, #tpu.memory_space<vmem>>, vector<1x128xf32>
    %6 = vector.shape_cast %5 : vector<1x128xf32> to vector<1x128xf32>
    %7 = vector.broadcast %6 : vector<1x128xf32> to vector<8x128xf32>
    %c0_6 = arith.constant 0 : index
    %c0_7 = arith.constant 0 : index
    %c0_8 = arith.constant 0 : index
    %8 = vector.load %arg2[%c0_6, %c0_7, %c0_8] : memref<8x8x32xbf16, #tpu.memory_space<vmem>>, vector<8x8x32xbf16>
    %9 = vector.shape_cast %8 : vector<8x8x32xbf16> to vector<64x32xbf16>
    %cst = arith.constant dense<0.000000e+00> : vector<64x384xf32>
    %10 = tpu.matmul %9, %3, %cst {dimension_numbers = #tpu.dot_dimension_numbers<[1], [0], [0], [1], [0, 0, 1, 1], [], []>} : vector<64x32xbf16>, vector<32x384xbf16>, vector<64x384xf32> -> vector<64x384xf32>
    %c0_9 = arith.constant 0 : index
    %c0_10 = arith.constant 0 : index
    %11 = vector.load %arg5[%c0_9, %c0_10] : memref<1x384xf32, #tpu.memory_space<vmem>>, vector<1x384xf32>
    %12 = vector.broadcast %11 : vector<1x384xf32> to vector<64x384xf32>
    %13 = arith.addf %10, %12 : vector<64x384xf32>
    %14 = vector.shape_cast %13 : vector<64x384xf32> to vector<8x8x384xf32>
    %15 = tpu.iota {dimensions = array<i32: 0>} : vector<8x1xi32>
    %c8_i32 = arith.constant 8 : i32
    %16 = arith.muli %arg0, %c8_i32 : i32
    %17 = vector.broadcast %16 : i32 to vector<8x1xi32>
    %18 = arith.addi %15, %17 : vector<8x1xi32>
    %c2_i32 = arith.constant 2 : i32
    %19 = vector.broadcast %c2_i32 : i32 to vector<8x1xi32>
    %20 = arith.cmpi slt, %18, %19 : vector<8x1xi32>
    %21 = arith.extui %20 : vector<8x1xi1> to vector<8x1xi32>
    %22 = arith.sitofp %21 : vector<8x1xi32> to vector<8x1xf32>
    %cst_11 = arith.constant 0.000000e+00 : f32
    %23 = vector.broadcast %cst_11 : f32 to vector<1x128xf32>
    %cst_12 = arith.constant 0.000000e+00 : f32
    %24 = vector.broadcast %cst_12 : f32 to vector<1x128xf32>
    %c0_13 = arith.constant 0 : index
    %c0_14 = arith.constant 0 : index
    %25 = vector.load %arg11[%c0_13, %c0_14] : memref<8x128xf32, #tpu.memory_space<vmem>>, vector<8x128xf32>
    %26 = vector.extract_strided_slice %14 {offsets = [0, 0, 0], sizes = [1, 8, 384], strides = [1, 1, 1]} : vector<8x8x384xf32> to vector<1x8x384xf32>
    %27 = vector.shape_cast %26 : vector<1x8x384xf32> to vector<8x384xf32>
    %28 = arith.truncf %25 : vector<8x128xf32> to vector<8x128xbf16>
    %cst_15 = arith.constant dense<0.000000e+00> : vector<8x384xf32>
    %29 = tpu.matmul %28, %4, %cst_15 {dimension_numbers = #tpu.dot_dimension_numbers<[1], [0], [0], [1], [0, 0, 1, 1], [], []>} : vector<8x128xbf16>, vector<128x384xbf16>, vector<8x384xf32> -> vector<8x384xf32>
    %30 = vector.extract_strided_slice %27 {offsets = [0, 0], sizes = [8, 128], strides = [1, 1]} : vector<8x384xf32> to vector<8x128xf32>
    %31 = vector.extract_strided_slice %29 {offsets = [0, 0], sizes = [8, 128], strides = [1, 1]} : vector<8x384xf32> to vector<8x128xf32>
    %32 = arith.addf %30, %31 : vector<8x128xf32>
    %33 = arith.negf %32 : vector<8x128xf32>
    %34 = math.exp %33 : vector<8x128xf32>
    %cst_16 = arith.constant 1.000000e+00 : f32
    %35 = vector.broadcast %cst_16 : f32 to vector<8x128xf32>
    %36 = arith.addf %35, %34 : vector<8x128xf32>
    %37 = arith.divf %35, %36 : vector<8x128xf32>
    %38 = vector.extract_strided_slice %27 {offsets = [0, 128], sizes = [8, 128], strides = [1, 1]} : vector<8x384xf32> to vector<8x128xf32>
    %39 = vector.extract_strided_slice %29 {offsets = [0, 128], sizes = [8, 128], strides = [1, 1]} : vector<8x384xf32> to vector<8x128xf32>
    %40 = arith.addf %38, %39 : vector<8x128xf32>
    %41 = arith.negf %40 : vector<8x128xf32>
    %42 = math.exp %41 : vector<8x128xf32>
    %cst_17 = arith.constant 1.000000e+00 : f32
    %43 = vector.broadcast %cst_17 : f32 to vector<8x128xf32>
    %44 = arith.addf %43, %42 : vector<8x128xf32>
    %45 = arith.divf %43, %44 : vector<8x128xf32>
    %46 = vector.extract_strided_slice %27 {offsets = [0, 256], sizes = [8, 128], strides = [1, 1]} : vector<8x384xf32> to vector<8x128xf32>
    %47 = vector.extract_strided_slice %29 {offsets = [0, 256], sizes = [8, 128], strides = [1, 1]} : vector<8x384xf32> to vector<8x128xf32>
    %48 = arith.addf %47, %7 : vector<8x128xf32>
    %49 = arith.mulf %37, %48 : vector<8x128xf32>
    %50 = arith.addf %46, %49 : vector<8x128xf32>
    %51 = math.tanh %50 : vector<8x128xf32>
    %cst_18 = arith.constant 1.000000e+00 : f32
    %52 = vector.broadcast %cst_18 : f32 to vector<8x128xf32>
    %53 = arith.subf %52, %45 : vector<8x128xf32>
    %54 = arith.mulf %53, %51 : vector<8x128xf32>
    %55 = arith.mulf %45, %25 : vector<8x128xf32>
    %56 = arith.addf %54, %55 : vector<8x128xf32>
    %57 = vector.broadcast %22 : vector<8x1xf32> to vector<8x128xf32>
    %58 = arith.mulf %56, %57 : vector<8x128xf32>
    %cst_19 = arith.constant dense<0.000000e+00> : vector<128xf32>
    %59 = vector.multi_reduction <add>, %58, %cst_19 [0] : vector<8x128xf32> to vector<128xf32>
    %60 = vector.shape_cast %59 : vector<128xf32> to vector<1x128xf32>
    %61 = arith.addf %23, %60 : vector<1x128xf32>
    %62 = arith.mulf %58, %58 : vector<8x128xf32>
    %cst_20 = arith.constant dense<0.000000e+00> : vector<128xf32>
    %63 = vector.multi_reduction <add>, %62, %cst_20 [0] : vector<8x128xf32> to vector<128xf32>
    %64 = vector.shape_cast %63 : vector<128xf32> to vector<1x128xf32>
    %65 = arith.addf %24, %64 : vector<1x128xf32>
    %66 = arith.truncf %56 : vector<8x128xf32> to vector<8x128xbf16>
    %c0_21 = arith.constant 0 : index
    %c0_22 = arith.constant 0 : index
    %c0_23 = arith.constant 0 : index
    %67 = vector.load %arg8[%c0_21, %c0_22, %c0_23] : memref<8x8x128xbf16, #tpu.memory_space<vmem>>, vector<1x8x128xbf16>
    %68 = vector.shape_cast %67 : vector<1x8x128xbf16> to vector<8x128xbf16>
    %69 = vector.shape_cast %66 : vector<8x128xbf16> to vector<1x8x128xbf16>
    tpu.vector_store %arg8[%c0_21, %c0_22, %c0_23], %69 {strides = array<i32>} : memref<8x8x128xbf16, #tpu.memory_space<vmem>>, vector<1x8x128xbf16>,
    %70 = vector.extract_strided_slice %14 {offsets = [1, 0, 0], sizes = [1, 8, 384], strides = [1, 1, 1]} : vector<8x8x384xf32> to vector<1x8x384xf32>
    %71 = vector.shape_cast %70 : vector<1x8x384xf32> to vector<8x384xf32>
    %72 = arith.truncf %56 : vector<8x128xf32> to vector<8x128xbf16>
    %cst_24 = arith.constant dense<0.000000e+00> : vector<8x384xf32>
    %73 = tpu.matmul %72, %4, %cst_24 {dimension_numbers = #tpu.dot_dimension_numbers<[1], [0], [0], [1], [0, 0, 1, 1], [], []>} : vector<8x128xbf16>, vector<128x384xbf16>, vector<8x384xf32> -> vector<8x384xf32>
    %74 = vector.extract_strided_slice %71 {offsets = [0, 0], sizes = [8, 128], strides = [1, 1]} : vector<8x384xf32> to vector<8x128xf32>
    %75 = vector.extract_strided_slice %73 {offsets = [0, 0], sizes = [8, 128], strides = [1, 1]} : vector<8x384xf32> to vector<8x128xf32>
    %76 = arith.addf %74, %75 : vector<8x128xf32>
    %77 = arith.negf %76 : vector<8x128xf32>
    %78 = math.exp %77 : vector<8x128xf32>
    %cst_25 = arith.constant 1.000000e+00 : f32
    %79 = vector.broadcast %cst_25 : f32 to vector<8x128xf32>
    %80 = arith.addf %79, %78 : vector<8x128xf32>
    %81 = arith.divf %79, %80 : vector<8x128xf32>
    %82 = vector.extract_strided_slice %71 {offsets = [0, 128], sizes = [8, 128], strides = [1, 1]} : vector<8x384xf32> to vector<8x128xf32>
    %83 = vector.extract_strided_slice %73 {offsets = [0, 128], sizes = [8, 128], strides = [1, 1]} : vector<8x384xf32> to vector<8x128xf32>
    %84 = arith.addf %82, %83 : vector<8x128xf32>
    %85 = arith.negf %84 : vector<8x128xf32>
    %86 = math.exp %85 : vector<8x128xf32>
    %cst_26 = arith.constant 1.000000e+00 : f32
    %87 = vector.broadcast %cst_26 : f32 to vector<8x128xf32>
    %88 = arith.addf %87, %86 : vector<8x128xf32>
    %89 = arith.divf %87, %88 : vector<8x128xf32>
    %90 = vector.extract_strided_slice %71 {offsets = [0, 256], sizes = [8, 128], strides = [1, 1]} : vector<8x384xf32> to vector<8x128xf32>
    %91 = vector.extract_strided_slice %73 {offsets = [0, 256], sizes = [8, 128], strides = [1, 1]} : vector<8x384xf32> to vector<8x128xf32>
    %92 = arith.addf %91, %7 : vector<8x128xf32>
    %93 = arith.mulf %81, %92 : vector<8x128xf32>
    %94 = arith.addf %90, %93 : vector<8x128xf32>
    %95 = math.tanh %94 : vector<8x128xf32>
    %cst_27 = arith.constant 1.000000e+00 : f32
    %96 = vector.broadcast %cst_27 : f32 to vector<8x128xf32>
    %97 = arith.subf %96, %89 : vector<8x128xf32>
    %98 = arith.mulf %97, %95 : vector<8x128xf32>
    %99 = arith.mulf %89, %56 : vector<8x128xf32>
    %100 = arith.addf %98, %99 : vector<8x128xf32>
    %101 = vector.broadcast %22 : vector<8x1xf32> to vector<8x128xf32>
    %102 = arith.mulf %100, %101 : vector<8x128xf32>
    %cst_28 = arith.constant dense<0.000000e+00> : vector<128xf32>
    %103 = vector.multi_reduction <add>, %102, %cst_28 [0] : vector<8x128xf32> to vector<128xf32>
    %104 = vector.shape_cast %103 : vector<128xf32> to vector<1x128xf32>
    %105 = arith.addf %61, %104 : vector<1x128xf32>
    %106 = arith.mulf %102, %102 : vector<8x128xf32>
    %cst_29 = arith.constant dense<0.000000e+00> : vector<128xf32>
    %107 = vector.multi_reduction <add>, %106, %cst_29 [0] : vector<8x128xf32> to vector<128xf32>
    %108 = vector.shape_cast %107 : vector<128xf32> to vector<1x128xf32>
    %109 = arith.addf %65, %108 : vector<1x128xf32>
    %110 = arith.truncf %100 : vector<8x128xf32> to vector<8x128xbf16>
    %c1 = arith.constant 1 : index
    %c0_30 = arith.constant 0 : index
    %c0_31 = arith.constant 0 : index
    %111 = vector.load %arg8[%c1, %c0_30, %c0_31] : memref<8x8x128xbf16, #tpu.memory_space<vmem>>, vector<1x8x128xbf16>
    %112 = vector.shape_cast %111 : vector<1x8x128xbf16> to vector<8x128xbf16>
    %113 = vector.shape_cast %110 : vector<8x128xbf16> to vector<1x8x128xbf16>
    tpu.vector_store %arg8[%c1, %c0_30, %c0_31], %113 {strides = array<i32>} : memref<8x8x128xbf16, #tpu.memory_space<vmem>>, vector<1x8x128xbf16>,
    %114 = vector.extract_strided_slice %14 {offsets = [2, 0, 0], sizes = [1, 8, 384], strides = [1, 1, 1]} : vector<8x8x384xf32> to vector<1x8x384xf32>
    %115 = vector.shape_cast %114 : vector<1x8x384xf32> to vector<8x384xf32>
    %116 = arith.truncf %100 : vector<8x128xf32> to vector<8x128xbf16>
    %cst_32 = arith.constant dense<0.000000e+00> : vector<8x384xf32>
    %117 = tpu.matmul %116, %4, %cst_32 {dimension_numbers = #tpu.dot_dimension_numbers<[1], [0], [0], [1], [0, 0, 1, 1], [], []>} : vector<8x128xbf16>, vector<128x384xbf16>, vector<8x384xf32> -> vector<8x384xf32>
    %118 = vector.extract_strided_slice %115 {offsets = [0, 0], sizes = [8, 128], strides = [1, 1]} : vector<8x384xf32> to vector<8x128xf32>
    %119 = vector.extract_strided_slice %117 {offsets = [0, 0], sizes = [8, 128], strides = [1, 1]} : vector<8x384xf32> to vector<8x128xf32>
    %120 = arith.addf %118, %119 : vector<8x128xf32>
    %121 = arith.negf %120 : vector<8x128xf32>
    %122 = math.exp %121 : vector<8x128xf32>
    %cst_33 = arith.constant 1.000000e+00 : f32
    %123 = vector.broadcast %cst_33 : f32 to vector<8x128xf32>
    %124 = arith.addf %123, %122 : vector<8x128xf32>
    %125 = arith.divf %123, %124 : vector<8x128xf32>
    %126 = vector.extract_strided_slice %115 {offsets = [0, 128], sizes = [8, 128], strides = [1, 1]} : vector<8x384xf32> to vector<8x128xf32>
    %127 = vector.extract_strided_slice %117 {offsets = [0, 128], sizes = [8, 128], strides = [1, 1]} : vector<8x384xf32> to vector<8x128xf32>
    %128 = arith.addf %126, %127 : vector<8x128xf32>
    %129 = arith.negf %128 : vector<8x128xf32>
    %130 = math.exp %129 : vector<8x128xf32>
    %cst_34 = arith.constant 1.000000e+00 : f32
    %131 = vector.broadcast %cst_34 : f32 to vector<8x128xf32>
    %132 = arith.addf %131, %130 : vector<8x128xf32>
    %133 = arith.divf %131, %132 : vector<8x128xf32>
    %134 = vector.extract_strided_slice %115 {offsets = [0, 256], sizes = [8, 128], strides = [1, 1]} : vector<8x384xf32> to vector<8x128xf32>
    %135 = vector.extract_strided_slice %117 {offsets = [0, 256], sizes = [8, 128], strides = [1, 1]} : vector<8x384xf32> to vector<8x128xf32>
    %136 = arith.addf %135, %7 : vector<8x128xf32>
    %137 = arith.mulf %125, %136 : vector<8x128xf32>
    %138 = arith.addf %134, %137 : vector<8x128xf32>
    %139 = math.tanh %138 : vector<8x128xf32>
    %cst_35 = arith.constant 1.000000e+00 : f32
    %140 = vector.broadcast %cst_35 : f32 to vector<8x128xf32>
    %141 = arith.subf %140, %133 : vector<8x128xf32>
    %142 = arith.mulf %141, %139 : vector<8x128xf32>
    %143 = arith.mulf %133, %100 : vector<8x128xf32>
    %144 = arith.addf %142, %143 : vector<8x128xf32>
    %145 = vector.broadcast %22 : vector<8x1xf32> to vector<8x128xf32>
    %146 = arith.mulf %144, %145 : vector<8x128xf32>
    %cst_36 = arith.constant dense<0.000000e+00> : vector<128xf32>
    %147 = vector.multi_reduction <add>, %146, %cst_36 [0] : vector<8x128xf32> to vector<128xf32>
    %148 = vector.shape_cast %147 : vector<128xf32> to vector<1x128xf32>
    %149 = arith.addf %105, %148 : vector<1x128xf32>
    %150 = arith.mulf %146, %146 : vector<8x128xf32>
    %cst_37 = arith.constant dense<0.000000e+00> : vector<128xf32>
    %151 = vector.multi_reduction <add>, %150, %cst_37 [0] : vector<8x128xf32> to vector<128xf32>
    %152 = vector.shape_cast %151 : vector<128xf32> to vector<1x128xf32>
    %153 = arith.addf %109, %152 : vector<1x128xf32>
    %154 = arith.truncf %144 : vector<8x128xf32> to vector<8x128xbf16>
    %c2 = arith.constant 2 : index
    %c0_38 = arith.constant 0 : index
    %c0_39 = arith.constant 0 : index
    %155 = vector.load %arg8[%c2, %c0_38, %c0_39] : memref<8x8x128xbf16, #tpu.memory_space<vmem>>, vector<1x8x128xbf16>
    %156 = vector.shape_cast %155 : vector<1x8x128xbf16> to vector<8x128xbf16>
    %157 = vector.shape_cast %154 : vector<8x128xbf16> to vector<1x8x128xbf16>
    tpu.vector_store %arg8[%c2, %c0_38, %c0_39], %157 {strides = array<i32>} : memref<8x8x128xbf16, #tpu.memory_space<vmem>>, vector<1x8x128xbf16>,
    %158 = vector.extract_strided_slice %14 {offsets = [3, 0, 0], sizes = [1, 8, 384], strides = [1, 1, 1]} : vector<8x8x384xf32> to vector<1x8x384xf32>
    %159 = vector.shape_cast %158 : vector<1x8x384xf32> to vector<8x384xf32>
    %160 = arith.truncf %144 : vector<8x128xf32> to vector<8x128xbf16>
    %cst_40 = arith.constant dense<0.000000e+00> : vector<8x384xf32>
    %161 = tpu.matmul %160, %4, %cst_40 {dimension_numbers = #tpu.dot_dimension_numbers<[1], [0], [0], [1], [0, 0, 1, 1], [], []>} : vector<8x128xbf16>, vector<128x384xbf16>, vector<8x384xf32> -> vector<8x384xf32>
    %162 = vector.extract_strided_slice %159 {offsets = [0, 0], sizes = [8, 128], strides = [1, 1]} : vector<8x384xf32> to vector<8x128xf32>
    %163 = vector.extract_strided_slice %161 {offsets = [0, 0], sizes = [8, 128], strides = [1, 1]} : vector<8x384xf32> to vector<8x128xf32>
    %164 = arith.addf %162, %163 : vector<8x128xf32>
    %165 = arith.negf %164 : vector<8x128xf32>
    %166 = math.exp %165 : vector<8x128xf32>
    %cst_41 = arith.constant 1.000000e+00 : f32
    %167 = vector.broadcast %cst_41 : f32 to vector<8x128xf32>
    %168 = arith.addf %167, %166 : vector<8x128xf32>
    %169 = arith.divf %167, %168 : vector<8x128xf32>
    %170 = vector.extract_strided_slice %159 {offsets = [0, 128], sizes = [8, 128], strides = [1, 1]} : vector<8x384xf32> to vector<8x128xf32>
    %171 = vector.extract_strided_slice %161 {offsets = [0, 128], sizes = [8, 128], strides = [1, 1]} : vector<8x384xf32> to vector<8x128xf32>
    %172 = arith.addf %170, %171 : vector<8x128xf32>
    %173 = arith.negf %172 : vector<8x128xf32>
    %174 = math.exp %173 : vector<8x128xf32>
    %cst_42 = arith.constant 1.000000e+00 : f32
    %175 = vector.broadcast %cst_42 : f32 to vector<8x128xf32>
    %176 = arith.addf %175, %174 : vector<8x128xf32>
    %177 = arith.divf %175, %176 : vector<8x128xf32>
    %178 = vector.extract_strided_slice %159 {offsets = [0, 256], sizes = [8, 128], strides = [1, 1]} : vector<8x384xf32> to vector<8x128xf32>
    %179 = vector.extract_strided_slice %161 {offsets = [0, 256], sizes = [8, 128], strides = [1, 1]} : vector<8x384xf32> to vector<8x128xf32>
    %180 = arith.addf %179, %7 : vector<8x128xf32>
    %181 = arith.mulf %169, %180 : vector<8x128xf32>
    %182 = arith.addf %178, %181 : vector<8x128xf32>
    %183 = math.tanh %182 : vector<8x128xf32>
    %cst_43 = arith.constant 1.000000e+00 : f32
    %184 = vector.broadcast %cst_43 : f32 to vector<8x128xf32>
    %185 = arith.subf %184, %177 : vector<8x128xf32>
    %186 = arith.mulf %185, %183 : vector<8x128xf32>
    %187 = arith.mulf %177, %144 : vector<8x128xf32>
    %188 = arith.addf %186, %187 : vector<8x128xf32>
    %189 = vector.broadcast %22 : vector<8x1xf32> to vector<8x128xf32>
    %190 = arith.mulf %188, %189 : vector<8x128xf32>
    %cst_44 = arith.constant dense<0.000000e+00> : vector<128xf32>
    %191 = vector.multi_reduction <add>, %190, %cst_44 [0] : vector<8x128xf32> to vector<128xf32>
    %192 = vector.shape_cast %191 : vector<128xf32> to vector<1x128xf32>
    %193 = arith.addf %149, %192 : vector<1x128xf32>
    %194 = arith.mulf %190, %190 : vector<8x128xf32>
    %cst_45 = arith.constant dense<0.000000e+00> : vector<128xf32>
    %195 = vector.multi_reduction <add>, %194, %cst_45 [0] : vector<8x128xf32> to vector<128xf32>
    %196 = vector.shape_cast %195 : vector<128xf32> to vector<1x128xf32>
    %197 = arith.addf %153, %196 : vector<1x128xf32>
    %198 = arith.truncf %188 : vector<8x128xf32> to vector<8x128xbf16>
    %c3 = arith.constant 3 : index
    %c0_46 = arith.constant 0 : index
    %c0_47 = arith.constant 0 : index
    %199 = vector.load %arg8[%c3, %c0_46, %c0_47] : memref<8x8x128xbf16, #tpu.memory_space<vmem>>, vector<1x8x128xbf16>
    %200 = vector.shape_cast %199 : vector<1x8x128xbf16> to vector<8x128xbf16>
    %201 = vector.shape_cast %198 : vector<8x128xbf16> to vector<1x8x128xbf16>
    tpu.vector_store %arg8[%c3, %c0_46, %c0_47], %201 {strides = array<i32>} : memref<8x8x128xbf16, #tpu.memory_space<vmem>>, vector<1x8x128xbf16>,
    %202 = vector.extract_strided_slice %14 {offsets = [4, 0, 0], sizes = [1, 8, 384], strides = [1, 1, 1]} : vector<8x8x384xf32> to vector<1x8x384xf32>
    %203 = vector.shape_cast %202 : vector<1x8x384xf32> to vector<8x384xf32>
    %204 = arith.truncf %188 : vector<8x128xf32> to vector<8x128xbf16>
    %cst_48 = arith.constant dense<0.000000e+00> : vector<8x384xf32>
    %205 = tpu.matmul %204, %4, %cst_48 {dimension_numbers = #tpu.dot_dimension_numbers<[1], [0], [0], [1], [0, 0, 1, 1], [], []>} : vector<8x128xbf16>, vector<128x384xbf16>, vector<8x384xf32> -> vector<8x384xf32>
    %206 = vector.extract_strided_slice %203 {offsets = [0, 0], sizes = [8, 128], strides = [1, 1]} : vector<8x384xf32> to vector<8x128xf32>
    %207 = vector.extract_strided_slice %205 {offsets = [0, 0], sizes = [8, 128], strides = [1, 1]} : vector<8x384xf32> to vector<8x128xf32>
    %208 = arith.addf %206, %207 : vector<8x128xf32>
    %209 = arith.negf %208 : vector<8x128xf32>
    %210 = math.exp %209 : vector<8x128xf32>
    %cst_49 = arith.constant 1.000000e+00 : f32
    %211 = vector.broadcast %cst_49 : f32 to vector<8x128xf32>
    %212 = arith.addf %211, %210 : vector<8x128xf32>
    %213 = arith.divf %211, %212 : vector<8x128xf32>
    %214 = vector.extract_strided_slice %203 {offsets = [0, 128], sizes = [8, 128], strides = [1, 1]} : vector<8x384xf32> to vector<8x128xf32>
    %215 = vector.extract_strided_slice %205 {offsets = [0, 128], sizes = [8, 128], strides = [1, 1]} : vector<8x384xf32> to vector<8x128xf32>
    %216 = arith.addf %214, %215 : vector<8x128xf32>
    %217 = arith.negf %216 : vector<8x128xf32>
    %218 = math.exp %217 : vector<8x128xf32>
    %cst_50 = arith.constant 1.000000e+00 : f32
    %219 = vector.broadcast %cst_50 : f32 to vector<8x128xf32>
    %220 = arith.addf %219, %218 : vector<8x128xf32>
    %221 = arith.divf %219, %220 : vector<8x128xf32>
    %222 = vector.extract_strided_slice %203 {offsets = [0, 256], sizes = [8, 128], strides = [1, 1]} : vector<8x384xf32> to vector<8x128xf32>
    %223 = vector.extract_strided_slice %205 {offsets = [0, 256], sizes = [8, 128], strides = [1, 1]} : vector<8x384xf32> to vector<8x128xf32>
    %224 = arith.addf %223, %7 : vector<8x128xf32>
    %225 = arith.mulf %213, %224 : vector<8x128xf32>
    %226 = arith.addf %222, %225 : vector<8x128xf32>
    %227 = math.tanh %226 : vector<8x128xf32>
    %cst_51 = arith.constant 1.000000e+00 : f32
    %228 = vector.broadcast %cst_51 : f32 to vector<8x128xf32>
    %229 = arith.subf %228, %221 : vector<8x128xf32>
    %230 = arith.mulf %229, %227 : vector<8x128xf32>
    %231 = arith.mulf %221, %188 : vector<8x128xf32>
    %232 = arith.addf %230, %231 : vector<8x128xf32>
    %233 = vector.broadcast %22 : vector<8x1xf32> to vector<8x128xf32>
    %234 = arith.mulf %232, %233 : vector<8x128xf32>
    %cst_52 = arith.constant dense<0.000000e+00> : vector<128xf32>
    %235 = vector.multi_reduction <add>, %234, %cst_52 [0] : vector<8x128xf32> to vector<128xf32>
    %236 = vector.shape_cast %235 : vector<128xf32> to vector<1x128xf32>
    %237 = arith.addf %193, %236 : vector<1x128xf32>
    %238 = arith.mulf %234, %234 : vector<8x128xf32>
    %cst_53 = arith.constant dense<0.000000e+00> : vector<128xf32>
    %239 = vector.multi_reduction <add>, %238, %cst_53 [0] : vector<8x128xf32> to vector<128xf32>
    %240 = vector.shape_cast %239 : vector<128xf32> to vector<1x128xf32>
    %241 = arith.addf %197, %240 : vector<1x128xf32>
    %242 = arith.truncf %232 : vector<8x128xf32> to vector<8x128xbf16>
    %c4 = arith.constant 4 : index
    %c0_54 = arith.constant 0 : index
    %c0_55 = arith.constant 0 : index
    %243 = vector.load %arg8[%c4, %c0_54, %c0_55] : memref<8x8x128xbf16, #tpu.memory_space<vmem>>, vector<1x8x128xbf16>
    %244 = vector.shape_cast %243 : vector<1x8x128xbf16> to vector<8x128xbf16>
    %245 = vector.shape_cast %242 : vector<8x128xbf16> to vector<1x8x128xbf16>
    tpu.vector_store %arg8[%c4, %c0_54, %c0_55], %245 {strides = array<i32>} : memref<8x8x128xbf16, #tpu.memory_space<vmem>>, vector<1x8x128xbf16>,
    %246 = vector.extract_strided_slice %14 {offsets = [5, 0, 0], sizes = [1, 8, 384], strides = [1, 1, 1]} : vector<8x8x384xf32> to vector<1x8x384xf32>
    %247 = vector.shape_cast %246 : vector<1x8x384xf32> to vector<8x384xf32>
    %248 = arith.truncf %232 : vector<8x128xf32> to vector<8x128xbf16>
    %cst_56 = arith.constant dense<0.000000e+00> : vector<8x384xf32>
    %249 = tpu.matmul %248, %4, %cst_56 {dimension_numbers = #tpu.dot_dimension_numbers<[1], [0], [0], [1], [0, 0, 1, 1], [], []>} : vector<8x128xbf16>, vector<128x384xbf16>, vector<8x384xf32> -> vector<8x384xf32>
    %250 = vector.extract_strided_slice %247 {offsets = [0, 0], sizes = [8, 128], strides = [1, 1]} : vector<8x384xf32> to vector<8x128xf32>
    %251 = vector.extract_strided_slice %249 {offsets = [0, 0], sizes = [8, 128], strides = [1, 1]} : vector<8x384xf32> to vector<8x128xf32>
    %252 = arith.addf %250, %251 : vector<8x128xf32>
    %253 = arith.negf %252 : vector<8x128xf32>
    %254 = math.exp %253 : vector<8x128xf32>
    %cst_57 = arith.constant 1.000000e+00 : f32
    %255 = vector.broadcast %cst_57 : f32 to vector<8x128xf32>
    %256 = arith.addf %255, %254 : vector<8x128xf32>
    %257 = arith.divf %255, %256 : vector<8x128xf32>
    %258 = vector.extract_strided_slice %247 {offsets = [0, 128], sizes = [8, 128], strides = [1, 1]} : vector<8x384xf32> to vector<8x128xf32>
    %259 = vector.extract_strided_slice %249 {offsets = [0, 128], sizes = [8, 128], strides = [1, 1]} : vector<8x384xf32> to vector<8x128xf32>
    %260 = arith.addf %258, %259 : vector<8x128xf32>
    %261 = arith.negf %260 : vector<8x128xf32>
    %262 = math.exp %261 : vector<8x128xf32>
    %cst_58 = arith.constant 1.000000e+00 : f32
    %263 = vector.broadcast %cst_58 : f32 to vector<8x128xf32>
    %264 = arith.addf %263, %262 : vector<8x128xf32>
    %265 = arith.divf %263, %264 : vector<8x128xf32>
    %266 = vector.extract_strided_slice %247 {offsets = [0, 256], sizes = [8, 128], strides = [1, 1]} : vector<8x384xf32> to vector<8x128xf32>
    %267 = vector.extract_strided_slice %249 {offsets = [0, 256], sizes = [8, 128], strides = [1, 1]} : vector<8x384xf32> to vector<8x128xf32>
    %268 = arith.addf %267, %7 : vector<8x128xf32>
    %269 = arith.mulf %257, %268 : vector<8x128xf32>
    %270 = arith.addf %266, %269 : vector<8x128xf32>
    %271 = math.tanh %270 : vector<8x128xf32>
    %cst_59 = arith.constant 1.000000e+00 : f32
    %272 = vector.broadcast %cst_59 : f32 to vector<8x128xf32>
    %273 = arith.subf %272, %265 : vector<8x128xf32>
    %274 = arith.mulf %273, %271 : vector<8x128xf32>
    %275 = arith.mulf %265, %232 : vector<8x128xf32>
    %276 = arith.addf %274, %275 : vector<8x128xf32>
    %277 = vector.broadcast %22 : vector<8x1xf32> to vector<8x128xf32>
    %278 = arith.mulf %276, %277 : vector<8x128xf32>
    %cst_60 = arith.constant dense<0.000000e+00> : vector<128xf32>
    %279 = vector.multi_reduction <add>, %278, %cst_60 [0] : vector<8x128xf32> to vector<128xf32>
    %280 = vector.shape_cast %279 : vector<128xf32> to vector<1x128xf32>
    %281 = arith.addf %237, %280 : vector<1x128xf32>
    %282 = arith.mulf %278, %278 : vector<8x128xf32>
    %cst_61 = arith.constant dense<0.000000e+00> : vector<128xf32>
    %283 = vector.multi_reduction <add>, %282, %cst_61 [0] : vector<8x128xf32> to vector<128xf32>
    %284 = vector.shape_cast %283 : vector<128xf32> to vector<1x128xf32>
    %285 = arith.addf %241, %284 : vector<1x128xf32>
    %286 = arith.truncf %276 : vector<8x128xf32> to vector<8x128xbf16>
    %c5 = arith.constant 5 : index
    %c0_62 = arith.constant 0 : index
    %c0_63 = arith.constant 0 : index
    %287 = vector.load %arg8[%c5, %c0_62, %c0_63] : memref<8x8x128xbf16, #tpu.memory_space<vmem>>, vector<1x8x128xbf16>
    %288 = vector.shape_cast %287 : vector<1x8x128xbf16> to vector<8x128xbf16>
    %289 = vector.shape_cast %286 : vector<8x128xbf16> to vector<1x8x128xbf16>
    tpu.vector_store %arg8[%c5, %c0_62, %c0_63], %289 {strides = array<i32>} : memref<8x8x128xbf16, #tpu.memory_space<vmem>>, vector<1x8x128xbf16>,
    %290 = vector.extract_strided_slice %14 {offsets = [6, 0, 0], sizes = [1, 8, 384], strides = [1, 1, 1]} : vector<8x8x384xf32> to vector<1x8x384xf32>
    %291 = vector.shape_cast %290 : vector<1x8x384xf32> to vector<8x384xf32>
    %292 = arith.truncf %276 : vector<8x128xf32> to vector<8x128xbf16>
    %cst_64 = arith.constant dense<0.000000e+00> : vector<8x384xf32>
    %293 = tpu.matmul %292, %4, %cst_64 {dimension_numbers = #tpu.dot_dimension_numbers<[1], [0], [0], [1], [0, 0, 1, 1], [], []>} : vector<8x128xbf16>, vector<128x384xbf16>, vector<8x384xf32> -> vector<8x384xf32>
    %294 = vector.extract_strided_slice %291 {offsets = [0, 0], sizes = [8, 128], strides = [1, 1]} : vector<8x384xf32> to vector<8x128xf32>
    %295 = vector.extract_strided_slice %293 {offsets = [0, 0], sizes = [8, 128], strides = [1, 1]} : vector<8x384xf32> to vector<8x128xf32>
    %296 = arith.addf %294, %295 : vector<8x128xf32>
    %297 = arith.negf %296 : vector<8x128xf32>
    %298 = math.exp %297 : vector<8x128xf32>
    %cst_65 = arith.constant 1.000000e+00 : f32
    %299 = vector.broadcast %cst_65 : f32 to vector<8x128xf32>
    %300 = arith.addf %299, %298 : vector<8x128xf32>
    %301 = arith.divf %299, %300 : vector<8x128xf32>
    %302 = vector.extract_strided_slice %291 {offsets = [0, 128], sizes = [8, 128], strides = [1, 1]} : vector<8x384xf32> to vector<8x128xf32>
    %303 = vector.extract_strided_slice %293 {offsets = [0, 128], sizes = [8, 128], strides = [1, 1]} : vector<8x384xf32> to vector<8x128xf32>
    %304 = arith.addf %302, %303 : vector<8x128xf32>
    %305 = arith.negf %304 : vector<8x128xf32>
    %306 = math.exp %305 : vector<8x128xf32>
    %cst_66 = arith.constant 1.000000e+00 : f32
    %307 = vector.broadcast %cst_66 : f32 to vector<8x128xf32>
    %308 = arith.addf %307, %306 : vector<8x128xf32>
    %309 = arith.divf %307, %308 : vector<8x128xf32>
    %310 = vector.extract_strided_slice %291 {offsets = [0, 256], sizes = [8, 128], strides = [1, 1]} : vector<8x384xf32> to vector<8x128xf32>
    %311 = vector.extract_strided_slice %293 {offsets = [0, 256], sizes = [8, 128], strides = [1, 1]} : vector<8x384xf32> to vector<8x128xf32>
    %312 = arith.addf %311, %7 : vector<8x128xf32>
    %313 = arith.mulf %301, %312 : vector<8x128xf32>
    %314 = arith.addf %310, %313 : vector<8x128xf32>
    %315 = math.tanh %314 : vector<8x128xf32>
    %cst_67 = arith.constant 1.000000e+00 : f32
    %316 = vector.broadcast %cst_67 : f32 to vector<8x128xf32>
    %317 = arith.subf %316, %309 : vector<8x128xf32>
    %318 = arith.mulf %317, %315 : vector<8x128xf32>
    %319 = arith.mulf %309, %276 : vector<8x128xf32>
    %320 = arith.addf %318, %319 : vector<8x128xf32>
    %321 = vector.broadcast %22 : vector<8x1xf32> to vector<8x128xf32>
    %322 = arith.mulf %320, %321 : vector<8x128xf32>
    %cst_68 = arith.constant dense<0.000000e+00> : vector<128xf32>
    %323 = vector.multi_reduction <add>, %322, %cst_68 [0] : vector<8x128xf32> to vector<128xf32>
    %324 = vector.shape_cast %323 : vector<128xf32> to vector<1x128xf32>
    %325 = arith.addf %281, %324 : vector<1x128xf32>
    %326 = arith.mulf %322, %322 : vector<8x128xf32>
    %cst_69 = arith.constant dense<0.000000e+00> : vector<128xf32>
    %327 = vector.multi_reduction <add>, %326, %cst_69 [0] : vector<8x128xf32> to vector<128xf32>
    %328 = vector.shape_cast %327 : vector<128xf32> to vector<1x128xf32>
    %329 = arith.addf %285, %328 : vector<1x128xf32>
    %330 = arith.truncf %320 : vector<8x128xf32> to vector<8x128xbf16>
    %c6 = arith.constant 6 : index
    %c0_70 = arith.constant 0 : index
    %c0_71 = arith.constant 0 : index
    %331 = vector.load %arg8[%c6, %c0_70, %c0_71] : memref<8x8x128xbf16, #tpu.memory_space<vmem>>, vector<1x8x128xbf16>
    %332 = vector.shape_cast %331 : vector<1x8x128xbf16> to vector<8x128xbf16>
    %333 = vector.shape_cast %330 : vector<8x128xbf16> to vector<1x8x128xbf16>
    tpu.vector_store %arg8[%c6, %c0_70, %c0_71], %333 {strides = array<i32>} : memref<8x8x128xbf16, #tpu.memory_space<vmem>>, vector<1x8x128xbf16>,
    %334 = vector.extract_strided_slice %14 {offsets = [7, 0, 0], sizes = [1, 8, 384], strides = [1, 1, 1]} : vector<8x8x384xf32> to vector<1x8x384xf32>
    %335 = vector.shape_cast %334 : vector<1x8x384xf32> to vector<8x384xf32>
    %336 = arith.truncf %320 : vector<8x128xf32> to vector<8x128xbf16>
    %cst_72 = arith.constant dense<0.000000e+00> : vector<8x384xf32>
    %337 = tpu.matmul %336, %4, %cst_72 {dimension_numbers = #tpu.dot_dimension_numbers<[1], [0], [0], [1], [0, 0, 1, 1], [], []>} : vector<8x128xbf16>, vector<128x384xbf16>, vector<8x384xf32> -> vector<8x384xf32>
    %338 = vector.extract_strided_slice %335 {offsets = [0, 0], sizes = [8, 128], strides = [1, 1]} : vector<8x384xf32> to vector<8x128xf32>
    %339 = vector.extract_strided_slice %337 {offsets = [0, 0], sizes = [8, 128], strides = [1, 1]} : vector<8x384xf32> to vector<8x128xf32>
    %340 = arith.addf %338, %339 : vector<8x128xf32>
    %341 = arith.negf %340 : vector<8x128xf32>
    %342 = math.exp %341 : vector<8x128xf32>
    %cst_73 = arith.constant 1.000000e+00 : f32
    %343 = vector.broadcast %cst_73 : f32 to vector<8x128xf32>
    %344 = arith.addf %343, %342 : vector<8x128xf32>
    %345 = arith.divf %343, %344 : vector<8x128xf32>
    %346 = vector.extract_strided_slice %335 {offsets = [0, 128], sizes = [8, 128], strides = [1, 1]} : vector<8x384xf32> to vector<8x128xf32>
    %347 = vector.extract_strided_slice %337 {offsets = [0, 128], sizes = [8, 128], strides = [1, 1]} : vector<8x384xf32> to vector<8x128xf32>
    %348 = arith.addf %346, %347 : vector<8x128xf32>
    %349 = arith.negf %348 : vector<8x128xf32>
    %350 = math.exp %349 : vector<8x128xf32>
    %cst_74 = arith.constant 1.000000e+00 : f32
    %351 = vector.broadcast %cst_74 : f32 to vector<8x128xf32>
    %352 = arith.addf %351, %350 : vector<8x128xf32>
    %353 = arith.divf %351, %352 : vector<8x128xf32>
    %354 = vector.extract_strided_slice %335 {offsets = [0, 256], sizes = [8, 128], strides = [1, 1]} : vector<8x384xf32> to vector<8x128xf32>
    %355 = vector.extract_strided_slice %337 {offsets = [0, 256], sizes = [8, 128], strides = [1, 1]} : vector<8x384xf32> to vector<8x128xf32>
    %356 = arith.addf %355, %7 : vector<8x128xf32>
    %357 = arith.mulf %345, %356 : vector<8x128xf32>
    %358 = arith.addf %354, %357 : vector<8x128xf32>
    %359 = math.tanh %358 : vector<8x128xf32>
    %cst_75 = arith.constant 1.000000e+00 : f32
    %360 = vector.broadcast %cst_75 : f32 to vector<8x128xf32>
    %361 = arith.subf %360, %353 : vector<8x128xf32>
    %362 = arith.mulf %361, %359 : vector<8x128xf32>
    %363 = arith.mulf %353, %320 : vector<8x128xf32>
    %364 = arith.addf %362, %363 : vector<8x128xf32>
    %365 = vector.broadcast %22 : vector<8x1xf32> to vector<8x128xf32>
    %366 = arith.mulf %364, %365 : vector<8x128xf32>
    %cst_76 = arith.constant dense<0.000000e+00> : vector<128xf32>
    %367 = vector.multi_reduction <add>, %366, %cst_76 [0] : vector<8x128xf32> to vector<128xf32>
    %368 = vector.shape_cast %367 : vector<128xf32> to vector<1x128xf32>
    %369 = arith.addf %325, %368 : vector<1x128xf32>
    %370 = arith.mulf %366, %366 : vector<8x128xf32>
    %cst_77 = arith.constant dense<0.000000e+00> : vector<128xf32>
    %371 = vector.multi_reduction <add>, %370, %cst_77 [0] : vector<8x128xf32> to vector<128xf32>
    %372 = vector.shape_cast %371 : vector<128xf32> to vector<1x128xf32>
    %373 = arith.addf %329, %372 : vector<1x128xf32>
    %374 = arith.truncf %364 : vector<8x128xf32> to vector<8x128xbf16>
    %c7 = arith.constant 7 : index
    %c0_78 = arith.constant 0 : index
    %c0_79 = arith.constant 0 : index
    %375 = vector.load %arg8[%c7, %c0_78, %c0_79] : memref<8x8x128xbf16, #tpu.memory_space<vmem>>, vector<1x8x128xbf16>
    %376 = vector.shape_cast %375 : vector<1x8x128xbf16> to vector<8x128xbf16>
    %377 = vector.shape_cast %374 : vector<8x128xbf16> to vector<1x8x128xbf16>
    tpu.vector_store %arg8[%c7, %c0_78, %c0_79], %377 {strides = array<i32>} : memref<8x8x128xbf16, #tpu.memory_space<vmem>>, vector<1x8x128xbf16>,
    %c0_80 = arith.constant 0 : index
    %c0_81 = arith.constant 0 : index
    %378 = vector.load %arg11[%c0_80, %c0_81] : memref<8x128xf32, #tpu.memory_space<vmem>>, vector<8x128xf32>
    tpu.vector_store %arg11[%c0_80, %c0_81], %364 {strides = array<i32>} : memref<8x128xf32, #tpu.memory_space<vmem>>, vector<8x128xf32>,
    %c0_82 = arith.constant 0 : index
    %c0_83 = arith.constant 0 : index
    %c0_84 = arith.constant 0 : index
    %379 = vector.load %arg9[%c0_82, %c0_83, %c0_84] : memref<1x1x128xf32, #tpu.memory_space<vmem>>, vector<1x1x128xf32>
    %380 = vector.shape_cast %369 : vector<1x128xf32> to vector<1x1x128xf32>
    %381 = arith.addf %379, %380 : vector<1x1x128xf32>
    %c0_85 = arith.constant 0 : index
    %c0_86 = arith.constant 0 : index
    %c0_87 = arith.constant 0 : index
    %382 = vector.load %arg9[%c0_85, %c0_86, %c0_87] : memref<1x1x128xf32, #tpu.memory_space<vmem>>, vector<1x1x128xf32>
    tpu.vector_store %arg9[%c0_85, %c0_86, %c0_87], %381 {strides = array<i32>} : memref<1x1x128xf32, #tpu.memory_space<vmem>>, vector<1x1x128xf32>,
    %c0_88 = arith.constant 0 : index
    %c0_89 = arith.constant 0 : index
    %c0_90 = arith.constant 0 : index
    %383 = vector.load %arg10[%c0_88, %c0_89, %c0_90] : memref<1x1x128xf32, #tpu.memory_space<vmem>>, vector<1x1x128xf32>
    %384 = vector.shape_cast %373 : vector<1x128xf32> to vector<1x1x128xf32>
    %385 = arith.addf %383, %384 : vector<1x1x128xf32>
    %c0_91 = arith.constant 0 : index
    %c0_92 = arith.constant 0 : index
    %c0_93 = arith.constant 0 : index
    %386 = vector.load %arg10[%c0_91, %c0_92, %c0_93] : memref<1x1x128xf32, #tpu.memory_space<vmem>>, vector<1x1x128xf32>
    tpu.vector_store %arg10[%c0_91, %c0_92, %c0_93], %385 {strides = array<i32>} : memref<1x1x128xf32, #tpu.memory_space<vmem>>, vector<1x1x128xf32>,
    return
  }
  func.func @transform_0(%arg0: i32, %arg1: i32) -> (i32, i32, i32) {
    %c0_i32 = arith.constant 0 : i32
    %c0_i32_0 = arith.constant 0 : i32
    return %arg1, %arg0, %c0_i32 : i32, i32, i32
  }
  func.func @transform_1(%arg0: i32, %arg1: i32) -> (i32, i32) {
    %c0_i32 = arith.constant 0 : i32
    %c0_i32_0 = arith.constant 0 : i32
    return %arg0, %c0_i32 : i32, i32
  }
  func.func @transform_2(%arg0: i32, %arg1: i32) -> (i32, i32) {
    %c0_i32 = arith.constant 0 : i32
    %c0_i32_0 = arith.constant 0 : i32
    %c0_i32_1 = arith.constant 0 : i32
    return %c0_i32, %c0_i32_0 : i32, i32
  }
  func.func @transform_3(%arg0: i32, %arg1: i32) -> (i32, i32) {
    %c0_i32 = arith.constant 0 : i32
    %c0_i32_0 = arith.constant 0 : i32
    %c0_i32_1 = arith.constant 0 : i32
    return %c0_i32, %c0_i32_0 : i32, i32
  }
  func.func @transform_4(%arg0: i32, %arg1: i32) -> (i32, i32) {
    %c0_i32 = arith.constant 0 : i32
    %c0_i32_0 = arith.constant 0 : i32
    %c0_i32_1 = arith.constant 0 : i32
    return %c0_i32, %c0_i32_0 : i32, i32
  }
  func.func @transform_5(%arg0: i32, %arg1: i32) -> (i32, i32) {
    %c0_i32 = arith.constant 0 : i32
    %c0_i32_0 = arith.constant 0 : i32
    %c0_i32_1 = arith.constant 0 : i32
    return %c0_i32, %c0_i32_0 : i32, i32
  }
  func.func @transform_6(%arg0: i32, %arg1: i32) -> (i32, i32, i32) {
    %c0_i32 = arith.constant 0 : i32
    %c0_i32_0 = arith.constant 0 : i32
    return %arg1, %arg0, %c0_i32 : i32, i32, i32
  }
  func.func @transform_7(%arg0: i32, %arg1: i32) -> (i32, i32, i32) {
    %c0_i32 = arith.constant 0 : i32
    %c0_i32_0 = arith.constant 0 : i32
    %c0_i32_1 = arith.constant 0 : i32
    return %arg0, %c0_i32, %c0_i32_0 : i32, i32, i32
  }
  func.func @transform_8(%arg0: i32, %arg1: i32) -> (i32, i32, i32) {
    %c0_i32 = arith.constant 0 : i32
    %c0_i32_0 = arith.constant 0 : i32
    %c0_i32_1 = arith.constant 0 : i32
    return %arg0, %c0_i32, %c0_i32_0 : i32, i32, i32
  }
}

module attributes {stable_mosaic.version = 11 : i64} {
  func.func @_head_kernel(%arg0: i32, %arg1: memref<64x128xbf16, #tpu.memory_space<vmem>>, %arg2: memref<128x128xbf16, #tpu.memory_space<vmem>>, %arg3: memref<1x128xf32, #tpu.memory_space<vmem>>, %arg4: memref<64x128xf32, #tpu.memory_space<vmem>>) attributes {dimension_semantics = [#tpu.dimension_semantics<parallel>], iteration_bounds = array<i64: 1>, scalar_prefetch = 0 : i64, scratch_operands = 0 : i64, tpu.core_type = #tpu.core_type<tc>, window_params = [{transform_indices = @transform_0, window_bounds = array<i64: 64, 128>}, {pipeline_mode = #tpu.pipeline_mode<synchronous>, transform_indices = @transform_1, window_bounds = array<i64: 128, 128>}, {pipeline_mode = #tpu.pipeline_mode<synchronous>, transform_indices = @transform_2, window_bounds = array<i64: 1, 128>}, {transform_indices = @transform_3, window_bounds = array<i64: 64, 128>}]} {
    %c0 = arith.constant 0 : index
    %c0_0 = arith.constant 0 : index
    %0 = vector.load %arg1[%c0, %c0_0] : memref<64x128xbf16, #tpu.memory_space<vmem>>, vector<64x128xbf16>
    %c0_1 = arith.constant 0 : index
    %c0_2 = arith.constant 0 : index
    %1 = vector.load %arg2[%c0_1, %c0_2] : memref<128x128xbf16, #tpu.memory_space<vmem>>, vector<128x128xbf16>
    %cst = arith.constant dense<0.000000e+00> : vector<64x128xf32>
    %2 = tpu.matmul %0, %1, %cst {dimension_numbers = #tpu.dot_dimension_numbers<[1], [0], [0], [1], [0, 0, 1, 1], [], []>} : vector<64x128xbf16>, vector<128x128xbf16>, vector<64x128xf32> -> vector<64x128xf32>
    %c0_3 = arith.constant 0 : index
    %c0_4 = arith.constant 0 : index
    %3 = vector.load %arg3[%c0_3, %c0_4] : memref<1x128xf32, #tpu.memory_space<vmem>>, vector<1x128xf32>
    %4 = vector.broadcast %3 : vector<1x128xf32> to vector<64x128xf32>
    %5 = arith.addf %2, %4 : vector<64x128xf32>
    %cst_5 = arith.constant dense<0xFF800000> : vector<64xf32>
    %6 = vector.multi_reduction <maximumf>, %5, %cst_5 [1] : vector<64x128xf32> to vector<64xf32>
    %7 = vector.shape_cast %6 : vector<64xf32> to vector<64x1xf32>
    %8 = vector.broadcast %7 : vector<64x1xf32> to vector<64x128xf32>
    %9 = arith.subf %5, %8 : vector<64x128xf32>
    %10 = math.exp %9 : vector<64x128xf32>
    %cst_6 = arith.constant dense<0.000000e+00> : vector<64xf32>
    %11 = vector.multi_reduction <add>, %10, %cst_6 [1] : vector<64x128xf32> to vector<64xf32>
    %12 = vector.shape_cast %11 : vector<64xf32> to vector<64x1xf32>
    %13 = math.log %12 : vector<64x1xf32>
    %14 = vector.broadcast %13 : vector<64x1xf32> to vector<64x128xf32>
    %15 = arith.subf %9, %14 : vector<64x128xf32>
    %c0_7 = arith.constant 0 : index
    %c0_8 = arith.constant 0 : index
    %16 = vector.load %arg4[%c0_7, %c0_8] : memref<64x128xf32, #tpu.memory_space<vmem>>, vector<64x128xf32>
    tpu.vector_store %arg4[%c0_7, %c0_8], %15 {strides = array<i32>} : memref<64x128xf32, #tpu.memory_space<vmem>>, vector<64x128xf32>,
    return
  }
  func.func @transform_0(%arg0: i32) -> (i32, i32) {
    %c0_i32 = arith.constant 0 : i32
    %c0_i32_0 = arith.constant 0 : i32
    return %arg0, %c0_i32 : i32, i32
  }
  func.func @transform_1(%arg0: i32) -> (i32, i32) {
    %c0_i32 = arith.constant 0 : i32
    %c0_i32_0 = arith.constant 0 : i32
    %c0_i32_1 = arith.constant 0 : i32
    return %c0_i32, %c0_i32_0 : i32, i32
  }
  func.func @transform_2(%arg0: i32) -> (i32, i32) {
    %c0_i32 = arith.constant 0 : i32
    %c0_i32_0 = arith.constant 0 : i32
    %c0_i32_1 = arith.constant 0 : i32
    return %c0_i32, %c0_i32_0 : i32, i32
  }
  func.func @transform_3(%arg0: i32) -> (i32, i32) {
    %c0_i32 = arith.constant 0 : i32
    %c0_i32_0 = arith.constant 0 : i32
    return %arg0, %c0_i32 : i32, i32
  }
}

</mosaic_0001>

<llo_original>
// kernel: seq2seq_forward.5
$region0: #{seq2seq_forward.5}
  #allocation0 [shape = 'u32[]', space=smem, size = 0x4, offset = 0x4, fixed_abs, tag = 'smem constant byte address 0x4 - core index']
  #allocation1 [shape = 'u32[144,128]{1,0:T(1,128)}', space=vmem, size = 0x12000, scoped, tag = 'internal scratch']
  %s0 = inlined_call_operand.vmem [shape: bf16[64,128], index: 0, kind: input, shape index: {}]
  %s1 = inlined_call_operand.vmem [shape: bf16[128,128], index: 1, kind: input, shape index: {}]
  %s2 = inlined_call_operand.vmem [shape: f32[1,128], index: 2, kind: input, shape index: {}]
  %s3 = inlined_call_operand.vmem [shape: f32[64,128], index: 3, kind: output, shape index: {}]
  %s4 = sld [smem:[#allocation0]]
  $region22: #{seq2seq_forward.5} parent=0
    _
  %s6 = ssub.s32 1, %s4
  %s7 = scalar_select 0, %s6, %s4
  // Predicated region
  $region2: #{seq2seq_forward.5} parent=0 // pred_check
    _
  $region3: #{seq2seq_forward.5} parent=0 // pred_check_branch
    %9 = sbr.rel (0) target = $region5
  $region4: #{seq2seq_forward.5} parent=0 // pred_region
    _
  $region5: #{seq2seq_forward.5} parent=0 // pred_fallthru
    _
  // Predicated region
  $region6: #{seq2seq_forward.5} parent=0 // pred_check
    _
  $region7: #{seq2seq_forward.5} parent=0 // pred_check_branch
    %11 = sbr.rel (0) target = $region9
  $region8: #{seq2seq_forward.5} parent=0 // pred_region
    _
  $region9: #{seq2seq_forward.5} parent=0 // pred_fallthru
    _
  // Predicated region
  $region10: #{seq2seq_forward.5} parent=0 // pred_check
    _
  $region11: #{seq2seq_forward.5} parent=0 // pred_check_branch
    %13 = sbr.rel (0) target = $region13
  $region12: #{seq2seq_forward.5} parent=0 // pred_region
    _
  $region13: #{seq2seq_forward.5} parent=0 // pred_fallthru
    _
  %v15 = vld [vmem:[%s0] sm:$0xf]
  %v16 = vld [vmem:[%s0 + $0x4] sm:$0xf]
  %v17 = vld [vmem:[%s0 + $0x8] sm:$0xf]
  %v18 = vld [vmem:[%s0 + $0xc] sm:$0xf]
  %v19 = vld [vmem:[%s0 + $0x10] sm:$0xf]
  %v20 = vld [vmem:[%s0 + $0x14] sm:$0xf]
  %v21 = vld [vmem:[%s0 + $0x18] sm:$0xf]
  %v22 = vld [vmem:[%s0 + $0x1c] sm:$0xf]
  %v23 = vld [vmem:[%s1] sm:$0xf]
  %v24 = vld [vmem:[%s1 + $0x4] sm:$0xf]
  %v25 = vld [vmem:[%s1 + $0x8] sm:$0xf]
  %v26 = vld [vmem:[%s1 + $0xc] sm:$0xf]
  %v27 = vld [vmem:[%s1 + $0x10] sm:$0xf]
  %v28 = vld [vmem:[%s1 + $0x14] sm:$0xf]
  %v29 = vld [vmem:[%s1 + $0x18] sm:$0xf]
  %v30 = vld [vmem:[%s1 + $0x1c] sm:$0xf]
  %v31 = vld [vmem:[%s1 + $0x20] sm:$0xf]
  %v32 = vld [vmem:[%s1 + $0x24] sm:$0xf]
  %v33 = vld [vmem:[%s1 + $0x28] sm:$0xf]
  %v34 = vld [vmem:[%s1 + $0x2c] sm:$0xf]
  %v35 = vld [vmem:[%s1 + $0x30] sm:$0xf]
  %v36 = vld [vmem:[%s1 + $0x34] sm:$0xf]
  %v37 = vld [vmem:[%s1 + $0x38] sm:$0xf]
  %v38 = vld [vmem:[%s1 + $0x3c] sm:$0xf]
  %v39 = vld [vmem:[%s2] sm:$0x1]
  %v41 = vlaneseq
  %v42 = vshrl.u32 %v41, 7
  %v43 = vsub.s32 0, %v42
  %v44 = vrot.slane %v39, %v43
  %v54 = vunpack.c.l.b16 %v15
  %v55 = vunpack.c.l.b16 %v16
  %v56 = vunpack.c.l.b16 %v17
  %v57 = vunpack.c.l.b16 %v18
  %v58 = vunpack.c.l.b16 %v19
  %v59 = vunpack.c.l.b16 %v20
  %v60 = vunpack.c.l.b16 %v21
  %v61 = vunpack.c.l.b16 %v22
  %v62 = vpack.c.b16 %v55, %v54
  %v63 = vpack.c.b16 %v57, %v56
  %v64 = vpack.c.b16 %v59, %v58
  %v65 = vpack.c.b16 %v61, %v60
  %v86 = vunpack.c.l.b16 %v23
  %v87 = vunpack.c.l.b16 %v24
  %v88 = vunpack.c.l.b16 %v25
  %v89 = vunpack.c.l.b16 %v26
  %v90 = vunpack.c.l.b16 %v27
  %v91 = vunpack.c.l.b16 %v28
  %v92 = vunpack.c.l.b16 %v29
  %v93 = vunpack.c.l.b16 %v30
  %v94 = vunpack.c.l.b16 %v31
  %v95 = vunpack.c.l.b16 %v32
  %v96 = vunpack.c.l.b16 %v33
  %v97 = vunpack.c.l.b16 %v34
  %v98 = vunpack.c.l.b16 %v35
  %v99 = vunpack.c.l.b16 %v36
  %v100 = vunpack.c.l.b16 %v37
  %v101 = vunpack.c.l.b16 %v38
  %v102 = vpack.c.b16 %v87, %v86
  %v103 = vpack.c.b16 %v89, %v88
  %v104 = vpack.c.b16 %v91, %v90
  %v105 = vpack.c.b16 %v93, %v92
  %v106 = vpack.c.b16 %v95, %v94
  %v107 = vpack.c.b16 %v97, %v96
  %v108 = vpack.c.b16 %v99, %v98
  %v109 = vpack.c.b16 %v101, %v100
  %118 = vmatprep.subr.bf16.mxu0 0
  %119 = vmatpush1.bf16.msra.mxu0 %v102
  %120 = vmatprep.subr.bf16.mxu0 0
  %121 = vmatpush1.bf16.msra.mxu0 %v103
  %122 = vmatprep.subr.bf16.mxu0 0
  %123 = vmatpush1.bf16.msra.mxu0 %v104
  %124 = vmatprep.subr.bf16.mxu0 0
  %125 = vmatpush1.bf16.msra.mxu0 %v105
  %126 = vmatprep.subr.bf16.mxu0 0
  %127 = vmatpush1.bf16.msra.mxu0 %v106
  %128 = vmatprep.subr.bf16.mxu0 0
  %129 = vmatpush1.bf16.msra.mxu0 %v107
  %130 = vmatprep.subr.bf16.mxu0 0
  %131 = vmatpush1.bf16.msra.mxu0 %v108
  %132 = vmatprep.subr.bf16.mxu0 0
  %133 = vmatpush1.bf16.msra.mxu0 %v109
  %134 = vmatprep.subr.bf16.mxu0 0
  %135 = vmatpush1.bf16.msra.mxu0 0
  %136 = vmatprep.subr.bf16.mxu0 0
  %137 = vmatpush1.bf16.msra.mxu0 0
  %138 = vmatprep.subr.bf16.mxu0 0
  %139 = vmatpush1.bf16.msra.mxu0 0
  %140 = vmatprep.subr.bf16.mxu0 0
  %141 = vmatpush1.bf16.msra.mxu0 0
  %142 = vmatprep.subr.bf16.mxu0 0
  %143 = vmatpush1.bf16.msra.mxu0 0
  %144 = vmatprep.subr.bf16.mxu0 0
  %145 = vmatpush1.bf16.msra.mxu0 0
  %146 = vmatprep.subr.bf16.mxu0 0
  %147 = vmatpush1.bf16.msra.mxu0 0
  %148 = vmatprep.subr.bf16.mxu0 0
  %149 = vmatpush1.bf16.msra.mxu0 0
  %150 = vmatprep.mubr.bf16.mxu0 0
  %151 = vmatmul.mubr.bf16.gmra.mrb[0].mxu0 %v62
  %v152 = vpop.f32.mrb[0].mxu0
  %v153 = vadd.f32 %v44, %v152
  %v154 = vpop.f32.mrb[0].mxu0
  %v155 = vpop.f32.mrb[0].mxu0
  %v156 = vadd.f32 %v44, %v155
  %v157 = vpop.f32.mrb[0].mxu0
  %158 = vmatprep.mubr.bf16.mxu0 0
  %159 = vmatmul.mubr.bf16.gmra.mrb[0].mxu0 %v63
  %v160 = vpop.f32.mrb[0].mxu0
  %v161 = vadd.f32 %v44, %v160
  %v162 = vpop.f32.mrb[0].mxu0
  %v163 = vpop.f32.mrb[0].mxu0
  %v164 = vadd.f32 %v44, %v163
  %v165 = vpop.f32.mrb[0].mxu0
  %166 = vmatprep.mubr.bf16.mxu0 0
  %167 = vmatmul.mubr.bf16.gmra.mrb[0].mxu0 %v64
  %v168 = vpop.f32.mrb[0].mxu0
  %v169 = vadd.f32 %v44, %v168
  %v170 = vpop.f32.mrb[0].mxu0
  %v171 = vpop.f32.mrb[0].mxu0
  %v172 = vadd.f32 %v44, %v171
  %v173 = vpop.f32.mrb[0].mxu0
  %174 = vmatprep.mubr.bf16.mxu0 0
  %175 = vmatmul.mubr.bf16.gmra.mrb[0].mxu0 %v65
  %v176 = vpop.f32.mrb[0].mxu0
  %v177 = vadd.f32 %v44, %v176
  %v178 = vpop.f32.mrb[0].mxu0
  %v179 = vpop.f32.mrb[0].mxu0
  %v180 = vadd.f32 %v44, %v179
  %v181 = vpop.f32.mrb[0].mxu0
  %182 = vdwg.mxu0
  %183 = vmax.xlane.f32.xlu0 %v153
  %v184 = vpop.xlane.xlu0 %183
  %185 = vmax.xlane.f32.xlu0 %v156
  %v186 = vpop.xlane.xlu0 %185
  %187 = vmax.xlane.f32.xlu0 %v161
  %v188 = vpop.xlane.xlu0 %187
  %189 = vmax.xlane.f32.xlu0 %v164
  %v190 = vpop.xlane.xlu0 %189
  %191 = vmax.xlane.f32.xlu0 %v169
  %v192 = vpop.xlane.xlu0 %191
  %193 = vmax.xlane.f32.xlu0 %v172
  %v194 = vpop.xlane.xlu0 %193
  %195 = vmax.xlane.f32.xlu0 %v177
  %v196 = vpop.xlane.xlu0 %195
  %197 = vmax.xlane.f32.xlu0 %v180
  %v198 = vpop.xlane.xlu0 %197
  %v199 = vsub.f32 %v153, %v184
  %v200 = vsub.f32 %v156, %v186
  %v201 = vsub.f32 %v161, %v188
  %v202 = vsub.f32 %v164, %v190
  %v203 = vsub.f32 %v169, %v192
  %v204 = vsub.f32 %v172, %v194
  %v205 = vsub.f32 %v177, %v196
  %v206 = vsub.f32 %v180, %v198
  %v207 = vmul.f32 %v199, 1.442695
  %v208 = vpow.pop %v207
  %v209 = vmul.f32 %v200, 1.442695
  %v210 = vpow.pop %v209
  %v211 = vmul.f32 %v201, 1.442695
  %v212 = vpow.pop %v211
  %v213 = vmul.f32 %v202, 1.442695
  %v214 = vpow.pop %v213
  %v215 = vmul.f32 %v203, 1.442695
  %v216 = vpow.pop %v215
  %v217 = vmul.f32 %v204, 1.442695
  %v218 = vpow.pop %v217
  %v219 = vmul.f32 %v205, 1.442695
  %v220 = vpow.pop %v219
  %v221 = vmul.f32 %v206, 1.442695
  %v222 = vpow.pop %v221
  %223 = vadd.xlane.f32.xlu0 %v208
  %v224 = vpop.xlane.xlu0 %223
  %225 = vadd.xlane.f32.xlu0 %v210
  %v226 = vpop.xlane.xlu0 %225
  %227 = vadd.xlane.f32.xlu0 %v212
  %v228 = vpop.xlane.xlu0 %227
  %229 = vadd.xlane.f32.xlu0 %v214
  %v230 = vpop.xlane.xlu0 %229
  %231 = vadd.xlane.f32.xlu0 %v216
  %v232 = vpop.xlane.xlu0 %231
  %233 = vadd.xlane.f32.xlu0 %v218
  %v234 = vpop.xlane.xlu0 %233
  %235 = vadd.xlane.f32.xlu0 %v220
  %v236 = vpop.xlane.xlu0 %235
  %237 = vadd.xlane.f32.xlu0 %v222
  %v238 = vpop.xlane.xlu0 %237
  %v239 = vlog2.pop %v224
  %v240 = vmul.f32 %v239, 0.6931472
  %v241 = vlog2.pop %v226
  %v242 = vmul.f32 %v241, 0.6931472
  %v243 = vlog2.pop %v228
  %v244 = vmul.f32 %v243, 0.6931472
  %v245 = vlog2.pop %v230
  %v246 = vmul.f32 %v245, 0.6931472
  %v247 = vlog2.pop %v232
  %v248 = vmul.f32 %v247, 0.6931472
  %v249 = vlog2.pop %v234
  %v250 = vmul.f32 %v249, 0.6931472
  %v251 = vlog2.pop %v236
  %v252 = vmul.f32 %v251, 0.6931472
  %v253 = vlog2.pop %v238
  %v254 = vmul.f32 %v253, 0.6931472
  %v255 = vsub.f32 %v199, %v240
  %v256 = vsub.f32 %v200, %v242
  %v257 = vsub.f32 %v201, %v244
  %v258 = vsub.f32 %v202, %v246
  %v259 = vsub.f32 %v203, %v248
  %v260 = vsub.f32 %v204, %v250
  %v261 = vsub.f32 %v205, %v252
  %v262 = vsub.f32 %v206, %v254
  %263 = vst [vmem:[%s3] sm:$0xff] %v255
  %264 = vst [vmem:[%s3 + $0x8] sm:$0xff] %v256
  %265 = vst [vmem:[%s3 + $0x10] sm:$0xff] %v257
  %266 = vst [vmem:[%s3 + $0x18] sm:$0xff] %v258
  %267 = vst [vmem:[%s3 + $0x20] sm:$0xff] %v259
  %268 = vst [vmem:[%s3 + $0x28] sm:$0xff] %v260
  %269 = vst [vmem:[%s3 + $0x30] sm:$0xff] %v261
  %270 = vst [vmem:[%s3 + $0x38] sm:$0xff] %v262
  // Predicated region
  $region14: #{seq2seq_forward.5} parent=0 // pred_check
    _
  $region15: #{seq2seq_forward.5} parent=0 // pred_check_branch
    %272 = sbr.rel (0) target = $region17
  $region16: #{seq2seq_forward.5} parent=0 // pred_region
    _
  $region17: #{seq2seq_forward.5} parent=0 // pred_fallthru
    _
  // Predicated region
  $region18: #{seq2seq_forward.5} parent=0 // pred_check
    _
  $region19: #{seq2seq_forward.5} parent=0 // pred_check_branch
    %274 = sbr.rel (0) target = $region21
  $region20: #{seq2seq_forward.5} parent=0 // pred_region
    _
  $region21: #{seq2seq_forward.5} parent=0 // pred_fallthru
    _

// kernel: seq2seq_forward.3
$region0: #{seq2seq_forward.3}
  #allocation0 [shape = 'u32[]', space=smem, size = 0x4, offset = 0x4, fixed_abs, tag = 'smem constant byte address 0x4 - core index']
  #allocation1 [shape = 'u32[144,128]{1,0:T(1,128)}', space=vmem, size = 0x12000, scoped, tag = 'internal scratch']
  #allocation2 [shape = 'f32[8,128]{1,0:T(8,128)}', space=vmem, size = 0x1000, scoped, tag = 'scratch operand']
  %s0 = inlined_call_operand.vmem [shape: bf16[8,8,32], index: 0, kind: input, shape index: {}]
  %s1 = inlined_call_operand.vmem [shape: f32[8,128], index: 1, kind: input, shape index: {}]
  %s2 = inlined_call_operand.vmem [shape: bf16[32,384], index: 2, kind: input, shape index: {}]
  %s3 = inlined_call_operand.vmem [shape: f32[1,384], index: 3, kind: input, shape index: {}]
  %s4 = inlined_call_operand.vmem [shape: bf16[128,384], index: 4, kind: input, shape index: {}]
  %s5 = inlined_call_operand.vmem [shape: f32[1,128], index: 5, kind: input, shape index: {}]
  %s6 = inlined_call_operand.vmem [shape: f32[8,128], index: 6, kind: output, shape index: {}]
  %s7 = sld [smem:[#allocation0]]
  $region38: #{seq2seq_forward.3} parent=0
    _
  %s9 = ssub.s32 1, %s7
  %s10 = scalar_select 0, %s9, %s7
  // Predicated region
  $region2: #{seq2seq_forward.3} parent=0 // pred_check
    _
  $region3: #{seq2seq_forward.3} parent=0 // pred_check_branch
    %12 = sbr.rel (0) target = $region5
  $region4: #{seq2seq_forward.3} parent=0 // pred_region
    _
  $region5: #{seq2seq_forward.3} parent=0 // pred_fallthru
    _
  // Predicated region
  $region6: #{seq2seq_forward.3} parent=0 // pred_check
    _
  $region7: #{seq2seq_forward.3} parent=0 // pred_check_branch
    %14 = sbr.rel (0) target = $region9
  $region8: #{seq2seq_forward.3} parent=0 // pred_region
    _
  $region9: #{seq2seq_forward.3} parent=0 // pred_fallthru
    _
  // Predicated region
  $region10: #{seq2seq_forward.3} parent=0 // pred_check
    _
  $region11: #{seq2seq_forward.3} parent=0 // pred_check_branch
    %16 = sbr.rel (0) target = $region13
  $region12: #{seq2seq_forward.3} parent=0 // pred_region
    _
  $region13: #{seq2seq_forward.3} parent=0 // pred_fallthru
    _
  // Predicated region
  $region14: #{seq2seq_forward.3} parent=0 // pred_check
    _
  $region15: #{seq2seq_forward.3} parent=0 // pred_check_branch
    %18 = sbr.rel (0) target = $region17
  $region16: #{seq2seq_forward.3} parent=0 // pred_region
    _
  $region17: #{seq2seq_forward.3} parent=0 // pred_fallthru
    _
  // Predicated region
  $region18: #{seq2seq_forward.3} parent=0 // pred_check
    _
  $region19: #{seq2seq_forward.3} parent=0 // pred_check_branch
    %20 = sbr.rel (0) target = $region21
  $region20: #{seq2seq_forward.3} parent=0 // pred_region
    _
  $region21: #{seq2seq_forward.3} parent=0 // pred_fallthru
    _
  // Predicated region
  $region22: #{seq2seq_forward.3} parent=0 // pred_check
    _
  $region23: #{seq2seq_forward.3} parent=0 // pred_check_branch
    %22 = sbr.rel (0) target = $region25
  $region24: #{seq2seq_forward.3} parent=0 // pred_region
    _
  $region25: #{seq2seq_forward.3} parent=0 // pred_fallthru
    _
  %p24 = scmp.eq.s32.totalorder 0, 0
  // Predicated region
  $region26: #{seq2seq_forward.3} parent=0 // pred_check
    %p25 = pneg %p24
  $region27: #{seq2seq_forward.3} parent=0 // pred_check_branch
    %27 = sbr.rel (%p25) target = $region29
  $region28: #{seq2seq_forward.3} parent=0 // pred_region
    %v28 = vld [vmem:[%s1] sm:$0xff]
    %29 = vst [vmem:[#allocation2] sm:$0xff] %v28
  $region29: #{seq2seq_forward.3} parent=0 // pred_fallthru
    _
  %v30 = vld [vmem:[%s2] sm:$0xff]
  %v31 = vld [vmem:[%s2 + $0x8] sm:$0xf]
  %v32 = vld [vmem:[%s2 + $0xc] sm:$0xff]
  %v33 = vld [vmem:[%s2 + $0x14] sm:$0xf]
  %v34 = vld [vmem:[%s2 + $0x18] sm:$0xff]
  %v35 = vld [vmem:[%s2 + $0x20] sm:$0xf]
  %v36 = vld [vmem:[%s2 + $0x24] sm:$0xff]
  %v37 = vld [vmem:[%s2 + $0x2c] sm:$0xf]
  %v38 = vld [vmem:[%s4] sm:$0xff]
  %v39 = vld [vmem:[%s4 + $0x8] sm:$0xf]
  %v40 = vld [vmem:[%s4 + $0xc] sm:$0xff]
  %v41 = vld [vmem:[%s4 + $0x14] sm:$0xf]
  %v42 = vld [vmem:[%s4 + $0x18] sm:$0xff]
  %v43 = vld [vmem:[%s4 + $0x20] sm:$0xf]
  %v44 = vld [vmem:[%s4 + $0x24] sm:$0xff]
  %v45 = vld [vmem:[%s4 + $0x2c] sm:$0xf]
  %v46 = vld [vmem:[%s4 + $0x30] sm:$0xff]
  %v47 = vld [vmem:[%s4 + $0x38] sm:$0xf]
  %v48 = vld [vmem:[%s4 + $0x3c] sm:$0xff]
  %v49 = vld [vmem:[%s4 + $0x44] sm:$0xf]
  %v50 = vld [vmem:[%s4 + $0x48] sm:$0xff]
  %v51 = vld [vmem:[%s4 + $0x50] sm:$0xf]
  %v52 = vld [vmem:[%s4 + $0x54] sm:$0xff]
  %v53 = vld [vmem:[%s4 + $0x5c] sm:$0xf]
  %v54 = vld [vmem:[%s4 + $0x60] sm:$0xff]
  %v55 = vld [vmem:[%s4 + $0x68] sm:$0xf]
  %v56 = vld [vmem:[%s4 + $0x6c] sm:$0xff]
  %v57 = vld [vmem:[%s4 + $0x74] sm:$0xf]
  %v58 = vld [vmem:[%s4 + $0x78] sm:$0xff]
  %v59 = vld [vmem:[%s4 + $0x80] sm:$0xf]
  %v60 = vld [vmem:[%s4 + $0x84] sm:$0xff]
  %v61 = vld [vmem:[%s4 + $0x8c] sm:$0xf]
  %v62 = vld [vmem:[%s4 + $0x90] sm:$0xff]
  %v63 = vld [vmem:[%s4 + $0x98] sm:$0xf]
  %v64 = vld [vmem:[%s4 + $0x9c] sm:$0xff]
  %v65 = vld [vmem:[%s4 + $0xa4] sm:$0xf]
  %v66 = vld [vmem:[%s4 + $0xa8] sm:$0xff]
  %v67 = vld [vmem:[%s4 + $0xb0] sm:$0xf]
  %v68 = vld [vmem:[%s4 + $0xb4] sm:$0xff]
  %v69 = vld [vmem:[%s4 + $0xbc] sm:$0xf]
  %v70 = vld [vmem:[%s5] sm:$0x1]
  %v72 = vlaneseq
  %v73 = vshrl.u32 %v72, 7
  %v74 = vsub.s32 0, %v73
  %v75 = vrot.slane %v70, %v74
  %v77 = vld [vmem:[%s0] sm:$0xf]
  %v78 = vld [vmem:[%s0 + $0x4] sm:$0xf]
  %v79 = vld [vmem:[%s0 + $0x8] sm:$0xf]
  %v80 = vld [vmem:[%s0 + $0xc] sm:$0xf]
  %v81 = vld [vmem:[%s0 + $0x10] sm:$0xf]
  %v82 = vld [vmem:[%s0 + $0x14] sm:$0xf]
  %v83 = vld [vmem:[%s0 + $0x18] sm:$0xf]
  %v84 = vld [vmem:[%s0 + $0x1c] sm:$0xf]
  %v85 = vld [vmem:[%s3] sm:$0x7]
  %v87 = vlaneseq
  %v88 = vshrl.u32 %v87, 7
  %v89 = vsub.s32 0, %v88
  %v90 = vrot.slane %v85, %v89
  %v91 = vlaneseq
  %v92 = vshrl.u32 %v91, 7
  %v93 = vsub.s32 1, %v92
  %v94 = vrot.slane %v85, %v93
  %v95 = vlaneseq
  %v96 = vshrl.u32 %v95, 7
  %v97 = vsub.s32 2, %v96
  %v98 = vrot.slane %v85, %v97
  %v110 = vunpack.c.l.b16 %v77
  %v111 = vunpack.c.l.b16 %v78
  %v112 = vunpack.c.l.b16 %v79
  %v113 = vunpack.c.l.b16 %v80
  %v114 = vunpack.c.l.b16 %v81
  %v115 = vunpack.c.l.b16 %v82
  %v116 = vunpack.c.l.b16 %v83
  %v117 = vunpack.c.l.b16 %v84
  %v118 = vpack.c.b16 %v111, %v110
  %v119 = vpack.c.b16 %v113, %v112
  %v120 = vpack.c.b16 %v115, %v114
  %v121 = vpack.c.b16 %v117, %v116
  %v130 = vunpack.c.l.b16 %v30
  %v131 = vunpack.c.h.b16 %v30
  %v132 = vunpack.c.l.b16 %v31
  %v133 = vunpack.c.l.b16 %v32
  %v134 = vunpack.c.h.b16 %v32
  %v135 = vunpack.c.l.b16 %v33
  %v136 = vunpack.c.l.b16 %v34
  %v137 = vunpack.c.h.b16 %v34
  %v138 = vunpack.c.l.b16 %v35
  %v139 = vunpack.c.l.b16 %v36
  %v140 = vunpack.c.h.b16 %v36
  %v141 = vunpack.c.l.b16 %v37
  %v142 = vpack.c.b16 %v133, %v130
  %v143 = vpack.c.b16 %v134, %v131
  %v144 = vpack.c.b16 %v135, %v132
  %v145 = vpack.c.b16 %v139, %v136
  %v146 = vpack.c.b16 %v140, %v137
  %v147 = vpack.c.b16 %v141, %v138
  %vm154 = vcmask 261120
  %v156 = vsel %vm154, %v118, 0
  %v159 = vsel %vm154, %v119, 0
  %v162 = vsel %vm154, %v120, 0
  %v165 = vsel %vm154, %v121, 0
  %167 = vmatprep.subr.bf16.mxu0 %v143
  %168 = vmatpush1.bf16.msra.mxu0 %v142
  %169 = vmatprep.subr.bf16.mxu0 %v146
  %170 = vmatpush1.bf16.msra.mxu0 %v145
  %171 = vmatprep.subr.bf16.mxu0 0
  %172 = vmatpush1.bf16.msra.mxu0 0
  %173 = vmatprep.subr.bf16.mxu0 0
  %174 = vmatpush1.bf16.msra.mxu0 0
  %175 = vmatprep.subr.bf16.mxu0 0
  %176 = vmatpush1.bf16.msra.mxu0 0
  %177 = vmatprep.subr.bf16.mxu0 0
  %178 = vmatpush1.bf16.msra.mxu0 0
  %179 = vmatprep.subr.bf16.mxu0 0
  %180 = vmatpush1.bf16.msra.mxu0 0
  %181 = vmatprep.subr.bf16.mxu0 0
  %182 = vmatpush1.bf16.msra.mxu0 0
  %183 = vmatprep.subr.bf16.mxu0 0
  %184 = vmatpush1.bf16.msra.mxu0 0
  %185 = vmatprep.subr.bf16.mxu0 0
  %186 = vmatpush1.bf16.msra.mxu0 0
  %187 = vmatprep.subr.bf16.mxu0 0
  %188 = vmatpush1.bf16.msra.mxu0 0
  %189 = vmatprep.subr.bf16.mxu0 0
  %190 = vmatpush1.bf16.msra.mxu0 0
  %191 = vmatprep.subr.bf16.mxu0 0
  %192 = vmatpush1.bf16.msra.mxu0 0
  %193 = vmatprep.subr.bf16.mxu0 0
  %194 = vmatpush1.bf16.msra.mxu0 0
  %195 = vmatprep.subr.bf16.mxu0 0
  %196 = vmatpush1.bf16.msra.mxu0 0
  %197 = vmatprep.subr.bf16.mxu0 0
  %198 = vmatpush1.bf16.msra.mxu0 0
  %199 = vmatprep.mubr.bf16.mxu0 0
  %200 = vmatmul.mubr.bf16.gmra.mrb[0].mxu0 %v156
  %v201 = vpop.f32.mrb[0].mxu0
  %v202 = vadd.f32 %v90, %v201
  %v203 = vpop.f32.mrb[0].mxu0
  %v204 = vadd.f32 %v94, %v203
  %v205 = vpop.f32.mrb[0].mxu0
  %v206 = vadd.f32 %v90, %v205
  %v207 = vpop.f32.mrb[0].mxu0
  %v208 = vadd.f32 %v94, %v207
  %209 = vmatprep.mubr.bf16.mxu0 0
  %210 = vmatmul.mubr.bf16.gmra.mrb[0].mxu0 %v159
  %v211 = vpop.f32.mrb[0].mxu0
  %v212 = vadd.f32 %v90, %v211
  %v213 = vpop.f32.mrb[0].mxu0
  %v214 = vadd.f32 %v94, %v213
  %v215 = vpop.f32.mrb[0].mxu0
  %v216 = vadd.f32 %v90, %v215
  %v217 = vpop.f32.mrb[0].mxu0
  %v218 = vadd.f32 %v94, %v217
  %219 = vmatprep.mubr.bf16.mxu0 0
  %220 = vmatmul.mubr.bf16.gmra.mrb[0].mxu0 %v162
  %v221 = vpop.f32.mrb[0].mxu0
  %v222 = vadd.f32 %v90, %v221
  %v223 = vpop.f32.mrb[0].mxu0
  %v224 = vadd.f32 %v94, %v223
  %v225 = vpop.f32.mrb[0].mxu0
  %v226 = vadd.f32 %v90, %v225
  %v227 = vpop.f32.mrb[0].mxu0
  %v228 = vadd.f32 %v94, %v227
  %229 = vmatprep.mubr.bf16.mxu0 0
  %230 = vmatmul.mubr.bf16.gmra.mrb[0].mxu0 %v165
  %v231 = vpop.f32.mrb[0].mxu0
  %v232 = vadd.f32 %v90, %v231
  %v233 = vpop.f32.mrb[0].mxu0
  %v234 = vadd.f32 %v94, %v233
  %v235 = vpop.f32.mrb[0].mxu0
  %v236 = vadd.f32 %v90, %v235
  %v237 = vpop.f32.mrb[0].mxu0
  %v238 = vadd.f32 %v94, %v237
  %239 = vdwg.mxu0
  %240 = vmatprep.subr.bf16.mxu0 0
  %241 = vmatpush1.bf16.msra.mxu0 %v144
  %242 = vmatprep.subr.bf16.mxu0 0
  %243 = vmatpush1.bf16.msra.mxu0 %v147
  %244 = vmatprep.subr.bf16.mxu0 0
  %245 = vmatpush1.bf16.msra.mxu0 0
  %246 = vmatprep.subr.bf16.mxu0 0
  %247 = vmatpush1.bf16.msra.mxu0 0
  %248 = vmatprep.subr.bf16.mxu0 0
  %249 = vmatpush1.bf16.msra.mxu0 0
  %250 = vmatprep.subr.bf16.mxu0 0
  %251 = vmatpush1.bf16.msra.mxu0 0
  %252 = vmatprep.subr.bf16.mxu0 0
  %253 = vmatpush1.bf16.msra.mxu0 0
  %254 = vmatprep.subr.bf16.mxu0 0
  %255 = vmatpush1.bf16.msra.mxu0 0
  %256 = vmatprep.subr.bf16.mxu0 0
  %257 = vmatpush1.bf16.msra.mxu0 0
  %258 = vmatprep.subr.bf16.mxu0 0
  %259 = vmatpush1.bf16.msra.mxu0 0
  %260 = vmatprep.subr.bf16.mxu0 0
  %261 = vmatpush1.bf16.msra.mxu0 0
  %262 = vmatprep.subr.bf16.mxu0 0
  %263 = vmatpush1.bf16.msra.mxu0 0
  %264 = vmatprep.subr.bf16.mxu0 0
  %265 = vmatpush1.bf16.msra.mxu0 0
  %266 = vmatprep.subr.bf16.mxu0 0
  %267 = vmatpush1.bf16.msra.mxu0 0
  %268 = vmatprep.subr.bf16.mxu0 0
  %269 = vmatpush1.bf16.msra.mxu0 0
  %270 = vmatprep.subr.bf16.mxu0 0
  %271 = vmatpush1.bf16.msra.mxu0 0
  %272 = vmatprep.mubr.bf16.mxu0 0
  %273 = vmatmul.mubr.bf16.gmra.mrb[0].mxu0 %v156
  %v274 = vpop.f32.mrb[0].mxu0
  %v275 = vadd.f32 %v98, %v274
  %v276 = vpop.f32.mrb[0].mxu0
  %v277 = vpop.f32.mrb[0].mxu0
  %v278 = vadd.f32 %v98, %v277
  %v279 = vpop.f32.mrb[0].mxu0
  %280 = vmatprep.mubr.bf16.mxu0 0
  %281 = vmatmul.mubr.bf16.gmra.mrb[0].mxu0 %v159
  %v282 = vpop.f32.mrb[0].mxu0
  %v283 = vadd.f32 %v98, %v282
  %v284 = vpop.f32.mrb[0].mxu0
  %v285 = vpop.f32.mrb[0].mxu0
  %v286 = vadd.f32 %v98, %v285
  %v287 = vpop.f32.mrb[0].mxu0
  %288 = vmatprep.mubr.bf16.mxu0 0
  %289 = vmatmul.mubr.bf16.gmra.mrb[0].mxu0 %v162
  %v290 = vpop.f32.mrb[0].mxu0
  %v291 = vadd.f32 %v98, %v290
  %v292 = vpop.f32.mrb[0].mxu0
  %v293 = vpop.f32.mrb[0].mxu0
  %v294 = vadd.f32 %v98, %v293
  %v295 = vpop.f32.mrb[0].mxu0
  %296 = vmatprep.mubr.bf16.mxu0 0
  %297 = vmatmul.mubr.bf16.gmra.mrb[0].mxu0 %v165
  %v298 = vpop.f32.mrb[0].mxu0
  %v299 = vadd.f32 %v98, %v298
  %v300 = vpop.f32.mrb[0].mxu0
  %v301 = vpop.f32.mrb[0].mxu0
  %v302 = vadd.f32 %v98, %v301
  %v303 = vpop.f32.mrb[0].mxu0
  %304 = vdwg.mxu0
  %v305 = vld [vmem:[#allocation2] sm:$0xff]
  %v306 = vpack.c.bf16 %v305, %v305
  %v339 = vunpack.c.l.b16 %v38
  %v340 = vunpack.c.h.b16 %v38
  %v341 = vunpack.c.l.b16 %v39
  %v342 = vunpack.c.l.b16 %v40
  %v343 = vunpack.c.h.b16 %v40
  %v344 = vunpack.c.l.b16 %v41
  %v345 = vunpack.c.l.b16 %v42
  %v346 = vunpack.c.h.b16 %v42
  %v347 = vunpack.c.l.b16 %v43
  %v348 = vunpack.c.l.b16 %v44
  %v349 = vunpack.c.h.b16 %v44
  %v350 = vunpack.c.l.b16 %v45
  %v351 = vunpack.c.l.b16 %v46
  %v352 = vunpack.c.h.b16 %v46
  %v353 = vunpack.c.l.b16 %v47
  %v354 = vunpack.c.l.b16 %v48
  %v355 = vunpack.c.h.b16 %v48
  %v356 = vunpack.c.l.b16 %v49
  %v357 = vunpack.c.l.b16 %v50
  %v358 = vunpack.c.h.b16 %v50
  %v359 = vunpack.c.l.b16 %v51
  %v360 = vunpack.c.l.b16 %v52
  %v361 = vunpack.c.h.b16 %v52
  %v362 = vunpack.c.l.b16 %v53
  %v363 = vunpack.c.l.b16 %v54
  %v364 = vunpack.c.h.b16 %v54
  %v365 = vunpack.c.l.b16 %v55
  %v366 = vunpack.c.l.b16 %v56
  %v367 = vunpack.c.h.b16 %v56
  %v368 = vunpack.c.l.b16 %v57
  %v369 = vunpack.c.l.b16 %v58
  %v370 = vunpack.c.h.b16 %v58
  %v371 = vunpack.c.l.b16 %v59
  %v372 = vunpack.c.l.b16 %v60
  %v373 = vunpack.c.h.b16 %v60
  %v374 = vunpack.c.l.b16 %v61
  %v375 = vunpack.c.l.b16 %v62
  %v376 = vunpack.c.h.b16 %v62
  %v377 = vunpack.c.l.b16 %v63
  %v378 = vunpack.c.l.b16 %v64
  %v379 = vunpack.c.h.b16 %v64
  %v380 = vunpack.c.l.b16 %v65
  %v381 = vunpack.c.l.b16 %v66
  %v382 = vunpack.c.h.b16 %v66
  %v383 = vunpack.c.l.b16 %v67
  %v384 = vunpack.c.l.b16 %v68
  %v385 = vunpack.c.h.b16 %v68
  %v386 = vunpack.c.l.b16 %v69
  %v387 = vpack.c.b16 %v342, %v339
  %v388 = vpack.c.b16 %v343, %v340
  %v389 = vpack.c.b16 %v344, %v341
  %v390 = vpack.c.b16 %v348, %v345
  %v391 = vpack.c.b16 %v349, %v346
  %v392 = vpack.c.b16 %v350, %v347
  %v393 = vpack.c.b16 %v354, %v351
  %v394 = vpack.c.b16 %v355, %v352
  %v395 = vpack.c.b16 %v356, %v353
  %v396 = vpack.c.b16 %v360, %v357
  %v397 = vpack.c.b16 %v361, %v358
  %v398 = vpack.c.b16 %v362, %v359
  %v399 = vpack.c.b16 %v366, %v363
  %v400 = vpack.c.b16 %v367, %v364
  %v401 = vpack.c.b16 %v368, %v365
  %v402 = vpack.c.b16 %v372, %v369
  %v403 = vpack.c.b16 %v373, %v370
  %v404 = vpack.c.b16 %v374, %v371
  %v405 = vpack.c.b16 %v378, %v375
  %v406 = vpack.c.b16 %v379, %v376
  %v407 = vpack.c.b16 %v380, %v377
  %v408 = vpack.c.b16 %v384, %v381
  %v409 = vpack.c.b16 %v385, %v382
  %v410 = vpack.c.b16 %v386, %v383
  %435 = vmatprep.subr.bf16.mxu0 %v388
  %436 = vmatpush1.bf16.msra.mxu0 %v387
  %437 = vmatprep.subr.bf16.mxu0 %v391
  %438 = vmatpush1.bf16.msra.mxu0 %v390
  %439 = vmatprep.subr.bf16.mxu0 %v394
  %440 = vmatpush1.bf16.msra.mxu0 %v393
  %441 = vmatprep.subr.bf16.mxu0 %v397
  %442 = vmatpush1.bf16.msra.mxu0 %v396
  %443 = vmatprep.subr.bf16.mxu0 %v400
  %444 = vmatpush1.bf16.msra.mxu0 %v399
  %445 = vmatprep.subr.bf16.mxu0 %v403
  %446 = vmatpush1.bf16.msra.mxu0 %v402
  %447 = vmatprep.subr.bf16.mxu0 %v406
  %448 = vmatpush1.bf16.msra.mxu0 %v405
  %449 = vmatprep.subr.bf16.mxu0 %v409
  %450 = vmatpush1.bf16.msra.mxu0 %v408
  %451 = vmatprep.subr.bf16.mxu0 0
  %452 = vmatpush1.bf16.msra.mxu0 0
  %453 = vmatprep.subr.bf16.mxu0 0
  %454 = vmatpush1.bf16.msra.mxu0 0
  %455 = vmatprep.subr.bf16.mxu0 0
  %456 = vmatpush1.bf16.msra.mxu0 0
  %457 = vmatprep.subr.bf16.mxu0 0
  %458 = vmatpush1.bf16.msra.mxu0 0
  %459 = vmatprep.subr.bf16.mxu0 0
  %460 = vmatpush1.bf16.msra.mxu0 0
  %461 = vmatprep.subr.bf16.mxu0 0
  %462 = vmatpush1.bf16.msra.mxu0 0
  %463 = vmatprep.subr.bf16.mxu0 0
  %464 = vmatpush1.bf16.msra.mxu0 0
  %465 = vmatprep.subr.bf16.mxu0 0
  %466 = vmatpush1.bf16.msra.mxu0 0
  %467 = vmatprep.mubr.bf16.mxu0 0
  %468 = vmatmul.mubr.bf16.gmra.mrb[0].mxu0 %v306
  %v469 = vpop.f32.mrb[0].mxu0
  %v470 = vadd.f32 0.0, %v469
  %v471 = vpop.f32.mrb[0].mxu0
  %v472 = vadd.f32 0.0, %v471
  %v473 = vpop.f32.mrb[0].mxu0
  %v474 = vpop.f32.mrb[0].mxu0
  %475 = vdwg.mxu0
  %476 = vmatprep.subr.bf16.mxu0 0
  %477 = vmatpush1.bf16.msra.mxu0 %v389
  %478 = vmatprep.subr.bf16.mxu0 0
  %479 = vmatpush1.bf16.msra.mxu0 %v392
  %480 = vmatprep.subr.bf16.mxu0 0
  %481 = vmatpush1.bf16.msra.mxu0 %v395
  %482 = vmatprep.subr.bf16.mxu0 0
  %483 = vmatpush1.bf16.msra.mxu0 %v398
  %484 = vmatprep.subr.bf16.mxu0 0
  %485 = vmatpush1.bf16.msra.mxu0 %v401
  %486 = vmatprep.subr.bf16.mxu0 0
  %487 = vmatpush1.bf16.msra.mxu0 %v404
  %488 = vmatprep.subr.bf16.mxu0 0
  %489 = vmatpush1.bf16.msra.mxu0 %v407
  %490 = vmatprep.subr.bf16.mxu0 0
  %491 = vmatpush1.bf16.msra.mxu0 %v410
  %492 = vmatprep.subr.bf16.mxu0 0
  %493 = vmatpush1.bf16.msra.mxu0 0
  %494 = vmatprep.subr.bf16.mxu0 0
  %495 = vmatpush1.bf16.msra.mxu0 0
  %496 = vmatprep.subr.bf16.mxu0 0
  %497 = vmatpush1.bf16.msra.mxu0 0
  %498 = vmatprep.subr.bf16.mxu0 0
  %499 = vmatpush1.bf16.msra.mxu0 0
  %500 = vmatprep.subr.bf16.mxu0 0
  %501 = vmatpush1.bf16.msra.mxu0 0
  %502 = vmatprep.subr.bf16.mxu0 0
  %503 = vmatpush1.bf16.msra.mxu0 0
  %504 = vmatprep.subr.bf16.mxu0 0
  %505 = vmatpush1.bf16.msra.mxu0 0
  %506 = vmatprep.subr.bf16.mxu0 0
  %507 = vmatpush1.bf16.msra.mxu0 0
  %508 = vmatprep.mubr.bf16.mxu0 0
  %509 = vmatmul.mubr.bf16.gmra.mrb[0].mxu0 %v306
  %v510 = vpop.f32.mrb[0].mxu0
  %v511 = vadd.f32 0.0, %v510
  %v512 = vpop.f32.mrb[0].mxu0
  %v513 = vpop.f32.mrb[0].mxu0
  %v514 = vpop.f32.mrb[0].mxu0
  %515 = vdwg.mxu0
  %v516 = vadd.f32 %v202, %v470
  %v517 = vxor.u32 %v516, 2147483648
  %v518 = vmul.f32 %v517, 1.442695
  %v519 = vpow.pop %v518
  %v520 = vadd.f32 %v519, 1.0
  %v521 = vrcp.pop %v520
  %v522 = vmul.f32 1.0, %v521
  %v523 = vadd.f32 %v204, %v472
  %v524 = vxor.u32 %v523, 2147483648
  %v525 = vmul.f32 %v524, 1.442695
  %v526 = vpow.pop %v525
  %v527 = vadd.f32 %v526, 1.0
  %v528 = vrcp.pop %v527
  %v529 = vmul.f32 1.0, %v528
  %v530 = vadd.f32 %v511, %v75
  %v531 = vmul.f32 %v522, %v530
  %v532 = vadd.f32 %v275, %v531
  %v533 = vtanh.pop %v532
  %v534 = vsub.f32 1.0, %v529
  %v535 = vmul.f32 %v534, %v533
  %v536 = vmul.f32 %v529, %v305
  %v537 = vadd.f32 %v535, %v536
  %v538 = vpack.c.bf16 %v537, %v537
  %539 = vmatprep.subr.bf16.mxu0 %v388
  %540 = vmatpush1.bf16.msra.mxu0 %v387
  %541 = vmatprep.subr.bf16.mxu0 %v391
  %542 = vmatpush1.bf16.msra.mxu0 %v390
  %543 = vmatprep.subr.bf16.mxu0 %v394
  %544 = vmatpush1.bf16.msra.mxu0 %v393
  %545 = vmatprep.subr.bf16.mxu0 %v397
  %546 = vmatpush1.bf16.msra.mxu0 %v396
  %547 = vmatprep.subr.bf16.mxu0 %v400
  %548 = vmatpush1.bf16.msra.mxu0 %v399
  %549 = vmatprep.subr.bf16.mxu0 %v403
  %550 = vmatpush1.bf16.msra.mxu0 %v402
  %551 = vmatprep.subr.bf16.mxu0 %v406
  %552 = vmatpush1.bf16.msra.mxu0 %v405
  %553 = vmatprep.subr.bf16.mxu0 %v409
  %554 = vmatpush1.bf16.msra.mxu0 %v408
  %555 = vmatprep.subr.bf16.mxu0 0
  %556 = vmatpush1.bf16.msra.mxu0 0
  %557 = vmatprep.subr.bf16.mxu0 0
  %558 = vmatpush1.bf16.msra.mxu0 0
  %559 = vmatprep.subr.bf16.mxu0 0
  %560 = vmatpush1.bf16.msra.mxu0 0
  %561 = vmatprep.subr.bf16.mxu0 0
  %562 = vmatpush1.bf16.msra.mxu0 0
  %563 = vmatprep.subr.bf16.mxu0 0
  %564 = vmatpush1.bf16.msra.mxu0 0
  %565 = vmatprep.subr.bf16.mxu0 0
  %566 = vmatpush1.bf16.msra.mxu0 0
  %567 = vmatprep.subr.bf16.mxu0 0
  %568 = vmatpush1.bf16.msra.mxu0 0
  %569 = vmatprep.subr.bf16.mxu0 0
  %570 = vmatpush1.bf16.msra.mxu0 0
  %571 = vmatprep.mubr.bf16.mxu0 0
  %572 = vmatmul.mubr.bf16.gmra.mrb[0].mxu0 %v538
  %v573 = vpop.f32.mrb[0].mxu0
  %v574 = vadd.f32 0.0, %v573
  %v575 = vpop.f32.mrb[0].mxu0
  %v576 = vadd.f32 0.0, %v575
  %v577 = vpop.f32.mrb[0].mxu0
  %v578 = vpop.f32.mrb[0].mxu0
  %579 = vdwg.mxu0
  %580 = vmatprep.subr.bf16.mxu0 0
  %581 = vmatpush1.bf16.msra.mxu0 %v389
  %582 = vmatprep.subr.bf16.mxu0 0
  %583 = vmatpush1.bf16.msra.mxu0 %v392
  %584 = vmatprep.subr.bf16.mxu0 0
  %585 = vmatpush1.bf16.msra.mxu0 %v395
  %586 = vmatprep.subr.bf16.mxu0 0
  %587 = vmatpush1.bf16.msra.mxu0 %v398
  %588 = vmatprep.subr.bf16.mxu0 0
  %589 = vmatpush1.bf16.msra.mxu0 %v401
  %590 = vmatprep.subr.bf16.mxu0 0
  %591 = vmatpush1.bf16.msra.mxu0 %v404
  %592 = vmatprep.subr.bf16.mxu0 0
  %593 = vmatpush1.bf16.msra.mxu0 %v407
  %594 = vmatprep.subr.bf16.mxu0 0
  %595 = vmatpush1.bf16.msra.mxu0 %v410
  %596 = vmatprep.subr.bf16.mxu0 0
  %597 = vmatpush1.bf16.msra.mxu0 0
  %598 = vmatprep.subr.bf16.mxu0 0
  %599 = vmatpush1.bf16.msra.mxu0 0
  %600 = vmatprep.subr.bf16.mxu0 0
  %601 = vmatpush1.bf16.msra.mxu0 0
  %602 = vmatprep.subr.bf16.mxu0 0
  %603 = vmatpush1.bf16.msra.mxu0 0
  %604 = vmatprep.subr.bf16.mxu0 0
  %605 = vmatpush1.bf16.msra.mxu0 0
  %606 = vmatprep.subr.bf16.mxu0 0
  %607 = vmatpush1.bf16.msra.mxu0 0
  %608 = vmatprep.subr.bf16.mxu0 0
  %609 = vmatpush1.bf16.msra.mxu0 0
  %610 = vmatprep.subr.bf16.mxu0 0
  %611 = vmatpush1.bf16.msra.mxu0 0
  %612 = vmatprep.mubr.bf16.mxu0 0
  %613 = vmatmul.mubr.bf16.gmra.mrb[0].mxu0 %v538
  %v614 = vpop.f32.mrb[0].mxu0
  %v615 = vadd.f32 0.0, %v614
  %v616 = vpop.f32.mrb[0].mxu0
  %v617 = vpop.f32.mrb[0].mxu0
  %v618 = vpop.f32.mrb[0].mxu0
  %619 = vdwg.mxu0
  %v620 = vadd.f32 %v206, %v574
  %v621 = vxor.u32 %v620, 2147483648
  %v622 = vmul.f32 %v621, 1.442695
  %v623 = vpow.pop %v622
  %v624 = vadd.f32 %v623, 1.0
  %v625 = vrcp.pop %v624
  %v626 = vmul.f32 1.0, %v625
  %v627 = vadd.f32 %v208, %v576
  %v628 = vxor.u32 %v627, 2147483648
  %v629 = vmul.f32 %v628, 1.442695
  %v630 = vpow.pop %v629
  %v631 = vadd.f32 %v630, 1.0
  %v632 = vrcp.pop %v631
  %v633 = vmul.f32 1.0, %v632
  %v634 = vadd.f32 %v615, %v75
  %v635 = vmul.f32 %v626, %v634
  %v636 = vadd.f32 %v278, %v635
  %v637 = vtanh.pop %v636
  %v638 = vsub.f32 1.0, %v633
  %v639 = vmul.f32 %v638, %v637
  %v640 = vmul.f32 %v633, %v537
  %v641 = vadd.f32 %v639, %v640
  %v642 = vpack.c.bf16 %v641, %v641
  %643 = vmatprep.subr.bf16.mxu0 %v388
  %644 = vmatpush1.bf16.msra.mxu0 %v387
  %645 = vmatprep.subr.bf16.mxu0 %v391
  %646 = vmatpush1.bf16.msra.mxu0 %v390
  %647 = vmatprep.subr.bf16.mxu0 %v394
  %648 = vmatpush1.bf16.msra.mxu0 %v393
  %649 = vmatprep.subr.bf16.mxu0 %v397
  %650 = vmatpush1.bf16.msra.mxu0 %v396
  %651 = vmatprep.subr.bf16.mxu0 %v400
  %652 = vmatpush1.bf16.msra.mxu0 %v399
  %653 = vmatprep.subr.bf16.mxu0 %v403
  %654 = vmatpush1.bf16.msra.mxu0 %v402
  %655 = vmatprep.subr.bf16.mxu0 %v406
  %656 = vmatpush1.bf16.msra.mxu0 %v405
  %657 = vmatprep.subr.bf16.mxu0 %v409
  %658 = vmatpush1.bf16.msra.mxu0 %v408
  %659 = vmatprep.subr.bf16.mxu0 0
  %660 = vmatpush1.bf16.msra.mxu0 0
  %661 = vmatprep.subr.bf16.mxu0 0
  %662 = vmatpush1.bf16.msra.mxu0 0
  %663 = vmatprep.subr.bf16.mxu0 0
  %664 = vmatpush1.bf16.msra.mxu0 0
  %665 = vmatprep.subr.bf16.mxu0 0
  %666 = vmatpush1.bf16.msra.mxu0 0
  %667 = vmatprep.subr.bf16.mxu0 0
  %668 = vmatpush1.bf16.msra.mxu0 0
  %669 = vmatprep.subr.bf16.mxu0 0
  %670 = vmatpush1.bf16.msra.mxu0 0
  %671 = vmatprep.subr.bf16.mxu0 0
  %672 = vmatpush1.bf16.msra.mxu0 0
  %673 = vmatprep.subr.bf16.mxu0 0
  %674 = vmatpush1.bf16.msra.mxu0 0
  %675 = vmatprep.mubr.bf16.mxu0 0
  %676 = vmatmul.mubr.bf16.gmra.mrb[0].mxu0 %v642
  %v677 = vpop.f32.mrb[0].mxu0
  %v678 = vadd.f32 0.0, %v677
  %v679 = vpop.f32.mrb[0].mxu0
  %v680 = vadd.f32 0.0, %v679
  %v681 = vpop.f32.mrb[0].mxu0
  %v682 = vpop.f32.mrb[0].mxu0
  %683 = vdwg.mxu0
  %684 = vmatprep.subr.bf16.mxu0 0
  %685 = vmatpush1.bf16.msra.mxu0 %v389
  %686 = vmatprep.subr.bf16.mxu0 0
  %687 = vmatpush1.bf16.msra.mxu0 %v392
  %688 = vmatprep.subr.bf16.mxu0 0
  %689 = vmatpush1.bf16.msra.mxu0 %v395
  %690 = vmatprep.subr.bf16.mxu0 0
  %691 = vmatpush1.bf16.msra.mxu0 %v398
  %692 = vmatprep.subr.bf16.mxu0 0
  %693 = vmatpush1.bf16.msra.mxu0 %v401
  %694 = vmatprep.subr.bf16.mxu0 0
  %695 = vmatpush1.bf16.msra.mxu0 %v404
  %696 = vmatprep.subr.bf16.mxu0 0
  %697 = vmatpush1.bf16.msra.mxu0 %v407
  %698 = vmatprep.subr.bf16.mxu0 0
  %699 = vmatpush1.bf16.msra.mxu0 %v410
  %700 = vmatprep.subr.bf16.mxu0 0
  %701 = vmatpush1.bf16.msra.mxu0 0
  %702 = vmatprep.subr.bf16.mxu0 0
  %703 = vmatpush1.bf16.msra.mxu0 0
  %704 = vmatprep.subr.bf16.mxu0 0
  %705 = vmatpush1.bf16.msra.mxu0 0
  %706 = vmatprep.subr.bf16.mxu0 0
  %707 = vmatpush1.bf16.msra.mxu0 0
  %708 = vmatprep.subr.bf16.mxu0 0
  %709 = vmatpush1.bf16.msra.mxu0 0
  %710 = vmatprep.subr.bf16.mxu0 0
  %711 = vmatpush1.bf16.msra.mxu0 0
  %712 = vmatprep.subr.bf16.mxu0 0
  %713 = vmatpush1.bf16.msra.mxu0 0
  %714 = vmatprep.subr.bf16.mxu0 0
  %715 = vmatpush1.bf16.msra.mxu0 0
  %716 = vmatprep.mubr.bf16.mxu0 0
  %717 = vmatmul.mubr.bf16.gmra.mrb[0].mxu0 %v642
  %v718 = vpop.f32.mrb[0].mxu0
  %v719 = vadd.f32 0.0, %v718
  %v720 = vpop.f32.mrb[0].mxu0
  %v721 = vpop.f32.mrb[0].mxu0
  %v722 = vpop.f32.mrb[0].mxu0
  %723 = vdwg.mxu0
  %v724 = vadd.f32 %v212, %v678
  %v725 = vxor.u32 %v724, 2147483648
  %v726 = vmul.f32 %v725, 1.442695
  %v727 = vpow.pop %v726
  %v728 = vadd.f32 %v727, 1.0
  %v729 = vrcp.pop %v728
  %v730 = vmul.f32 1.0, %v729
  %v731 = vadd.f32 %v214, %v680
  %v732 = vxor.u32 %v731, 2147483648
  %v733 = vmul.f32 %v732, 1.442695
  %v734 = vpow.pop %v733
  %v735 = vadd.f32 %v734, 1.0
  %v736 = vrcp.pop %v735
  %v737 = vmul.f32 1.0, %v736
  %v738 = vadd.f32 %v719, %v75
  %v739 = vmul.f32 %v730, %v738
  %v740 = vadd.f32 %v283, %v739
  %v741 = vtanh.pop %v740
  %v742 = vsub.f32 1.0, %v737
  %v743 = vmul.f32 %v742, %v741
  %v744 = vmul.f32 %v737, %v641
  %v745 = vadd.f32 %v743, %v744
  %v746 = vpack.c.bf16 %v745, %v745
  %747 = vmatprep.subr.bf16.mxu0 %v388
  %748 = vmatpush1.bf16.msra.mxu0 %v387
  %749 = vmatprep.subr.bf16.mxu0 %v391
  %750 = vmatpush1.bf16.msra.mxu0 %v390
  %751 = vmatprep.subr.bf16.mxu0 %v394
  %752 = vmatpush1.bf16.msra.mxu0 %v393
  %753 = vmatprep.subr.bf16.mxu0 %v397
  %754 = vmatpush1.bf16.msra.mxu0 %v396
  %755 = vmatprep.subr.bf16.mxu0 %v400
  %756 = vmatpush1.bf16.msra.mxu0 %v399
  %757 = vmatprep.subr.bf16.mxu0 %v403
  %758 = vmatpush1.bf16.msra.mxu0 %v402
  %759 = vmatprep.subr.bf16.mxu0 %v406
  %760 = vmatpush1.bf16.msra.mxu0 %v405
  %761 = vmatprep.subr.bf16.mxu0 %v409
  %762 = vmatpush1.bf16.msra.mxu0 %v408
  %763 = vmatprep.subr.bf16.mxu0 0
  %764 = vmatpush1.bf16.msra.mxu0 0
  %765 = vmatprep.subr.bf16.mxu0 0
  %766 = vmatpush1.bf16.msra.mxu0 0
  %767 = vmatprep.subr.bf16.mxu0 0
  %768 = vmatpush1.bf16.msra.mxu0 0
  %769 = vmatprep.subr.bf16.mxu0 0
  %770 = vmatpush1.bf16.msra.mxu0 0
  %771 = vmatprep.subr.bf16.mxu0 0
  %772 = vmatpush1.bf16.msra.mxu0 0
  %773 = vmatprep.subr.bf16.mxu0 0
  %774 = vmatpush1.bf16.msra.mxu0 0
  %775 = vmatprep.subr.bf16.mxu0 0
  %776 = vmatpush1.bf16.msra.mxu0 0
  %777 = vmatprep.subr.bf16.mxu0 0
  %778 = vmatpush1.bf16.msra.mxu0 0
  %779 = vmatprep.mubr.bf16.mxu0 0
  %780 = vmatmul.mubr.bf16.gmra.mrb[0].mxu0 %v746
  %v781 = vpop.f32.mrb[0].mxu0
  %v782 = vadd.f32 0.0, %v781
  %v783 = vpop.f32.mrb[0].mxu0
  %v784 = vadd.f32 0.0, %v783
  %v785 = vpop.f32.mrb[0].mxu0
  %v786 = vpop.f32.mrb[0].mxu0
  %787 = vdwg.mxu0
  %788 = vmatprep.subr.bf16.mxu0 0
  %789 = vmatpush1.bf16.msra.mxu0 %v389
  %790 = vmatprep.subr.bf16.mxu0 0
  %791 = vmatpush1.bf16.msra.mxu0 %v392
  %792 = vmatprep.subr.bf16.mxu0 0
  %793 = vmatpush1.bf16.msra.mxu0 %v395
  %794 = vmatprep.subr.bf16.mxu0 0
  %795 = vmatpush1.bf16.msra.mxu0 %v398
  %796 = vmatprep.subr.bf16.mxu0 0
  %797 = vmatpush1.bf16.msra.mxu0 %v401
  %798 = vmatprep.subr.bf16.mxu0 0
  %799 = vmatpush1.bf16.msra.mxu0 %v404
  %800 = vmatprep.subr.bf16.mxu0 0
  %801 = vmatpush1.bf16.msra.mxu0 %v407
  %802 = vmatprep.subr.bf16.mxu0 0
  %803 = vmatpush1.bf16.msra.mxu0 %v410
  %804 = vmatprep.subr.bf16.mxu0 0
  %805 = vmatpush1.bf16.msra.mxu0 0
  %806 = vmatprep.subr.bf16.mxu0 0
  %807 = vmatpush1.bf16.msra.mxu0 0
  %808 = vmatprep.subr.bf16.mxu0 0
  %809 = vmatpush1.bf16.msra.mxu0 0
  %810 = vmatprep.subr.bf16.mxu0 0
  %811 = vmatpush1.bf16.msra.mxu0 0
  %812 = vmatprep.subr.bf16.mxu0 0
  %813 = vmatpush1.bf16.msra.mxu0 0
  %814 = vmatprep.subr.bf16.mxu0 0
  %815 = vmatpush1.bf16.msra.mxu0 0
  %816 = vmatprep.subr.bf16.mxu0 0
  %817 = vmatpush1.bf16.msra.mxu0 0
  %818 = vmatprep.subr.bf16.mxu0 0
  %819 = vmatpush1.bf16.msra.mxu0 0
  %820 = vmatprep.mubr.bf16.mxu0 0
  %821 = vmatmul.mubr.bf16.gmra.mrb[0].mxu0 %v746
  %v822 = vpop.f32.mrb[0].mxu0
  %v823 = vadd.f32 0.0, %v822
  %v824 = vpop.f32.mrb[0].mxu0
  %v825 = vpop.f32.mrb[0].mxu0
  %v826 = vpop.f32.mrb[0].mxu0
  %827 = vdwg.mxu0
  %v828 = vadd.f32 %v216, %v782
  %v829 = vxor.u32 %v828, 2147483648
  %v830 = vmul.f32 %v829, 1.442695
  %v831 = vpow.pop %v830
  %v832 = vadd.f32 %v831, 1.0
  %v833 = vrcp.pop %v832
  %v834 = vmul.f32 1.0, %v833
  %v835 = vadd.f32 %v218, %v784
  %v836 = vxor.u32 %v835, 2147483648
  %v837 = vmul.f32 %v836, 1.442695
  %v838 = vpow.pop %v837
  %v839 = vadd.f32 %v838, 1.0
  %v840 = vrcp.pop %v839
  %v841 = vmul.f32 1.0, %v840
  %v842 = vadd.f32 %v823, %v75
  %v843 = vmul.f32 %v834, %v842
  %v844 = vadd.f32 %v286, %v843
  %v845 = vtanh.pop %v844
  %v846 = vsub.f32 1.0, %v841
  %v847 = vmul.f32 %v846, %v845
  %v848 = vmul.f32 %v841, %v745
  %v849 = vadd.f32 %v847, %v848
  %v850 = vpack.c.bf16 %v849, %v849
  %851 = vmatprep.subr.bf16.mxu0 %v388
  %852 = vmatpush1.bf16.msra.mxu0 %v387
  %853 = vmatprep.subr.bf16.mxu0 %v391
  %854 = vmatpush1.bf16.msra.mxu0 %v390
  %855 = vmatprep.subr.bf16.mxu0 %v394
  %856 = vmatpush1.bf16.msra.mxu0 %v393
  %857 = vmatprep.subr.bf16.mxu0 %v397
  %858 = vmatpush1.bf16.msra.mxu0 %v396
  %859 = vmatprep.subr.bf16.mxu0 %v400
  %860 = vmatpush1.bf16.msra.mxu0 %v399
  %861 = vmatprep.subr.bf16.mxu0 %v403
  %862 = vmatpush1.bf16.msra.mxu0 %v402
  %863 = vmatprep.subr.bf16.mxu0 %v406
  %864 = vmatpush1.bf16.msra.mxu0 %v405
  %865 = vmatprep.subr.bf16.mxu0 %v409
  %866 = vmatpush1.bf16.msra.mxu0 %v408
  %867 = vmatprep.subr.bf16.mxu0 0
  %868 = vmatpush1.bf16.msra.mxu0 0
  %869 = vmatprep.subr.bf16.mxu0 0
  %870 = vmatpush1.bf16.msra.mxu0 0
  %871 = vmatprep.subr.bf16.mxu0 0
  %872 = vmatpush1.bf16.msra.mxu0 0
  %873 = vmatprep.subr.bf16.mxu0 0
  %874 = vmatpush1.bf16.msra.mxu0 0
  %875 = vmatprep.subr.bf16.mxu0 0
  %876 = vmatpush1.bf16.msra.mxu0 0
  %877 = vmatprep.subr.bf16.mxu0 0
  %878 = vmatpush1.bf16.msra.mxu0 0
  %879 = vmatprep.subr.bf16.mxu0 0
  %880 = vmatpush1.bf16.msra.mxu0 0
  %881 = vmatprep.subr.bf16.mxu0 0
  %882 = vmatpush1.bf16.msra.mxu0 0
  %883 = vmatprep.mubr.bf16.mxu0 0
  %884 = vmatmul.mubr.bf16.gmra.mrb[0].mxu0 %v850
  %v885 = vpop.f32.mrb[0].mxu0
  %v886 = vadd.f32 0.0, %v885
  %v887 = vpop.f32.mrb[0].mxu0
  %v888 = vadd.f32 0.0, %v887
  %v889 = vpop.f32.mrb[0].mxu0
  %v890 = vpop.f32.mrb[0].mxu0
  %891 = vdwg.mxu0
  %892 = vmatprep.subr.bf16.mxu0 0
  %893 = vmatpush1.bf16.msra.mxu0 %v389
  %894 = vmatprep.subr.bf16.mxu0 0
  %895 = vmatpush1.bf16.msra.mxu0 %v392
  %896 = vmatprep.subr.bf16.mxu0 0
  %897 = vmatpush1.bf16.msra.mxu0 %v395
  %898 = vmatprep.subr.bf16.mxu0 0
  %899 = vmatpush1.bf16.msra.mxu0 %v398
  %900 = vmatprep.subr.bf16.mxu0 0
  %901 = vmatpush1.bf16.msra.mxu0 %v401
  %902 = vmatprep.subr.bf16.mxu0 0
  %903 = vmatpush1.bf16.msra.mxu0 %v404
  %904 = vmatprep.subr.bf16.mxu0 0
  %905 = vmatpush1.bf16.msra.mxu0 %v407
  %906 = vmatprep.subr.bf16.mxu0 0
  %907 = vmatpush1.bf16.msra.mxu0 %v410
  %908 = vmatprep.subr.bf16.mxu0 0
  %909 = vmatpush1.bf16.msra.mxu0 0
  %910 = vmatprep.subr.bf16.mxu0 0
  %911 = vmatpush1.bf16.msra.mxu0 0
  %912 = vmatprep.subr.bf16.mxu0 0
  %913 = vmatpush1.bf16.msra.mxu0 0
  %914 = vmatprep.subr.bf16.mxu0 0
  %915 = vmatpush1.bf16.msra.mxu0 0
  %916 = vmatprep.subr.bf16.mxu0 0
  %917 = vmatpush1.bf16.msra.mxu0 0
  %918 = vmatprep.subr.bf16.mxu0 0
  %919 = vmatpush1.bf16.msra.mxu0 0
  %920 = vmatprep.subr.bf16.mxu0 0
  %921 = vmatpush1.bf16.msra.mxu0 0
  %922 = vmatprep.subr.bf16.mxu0 0
  %923 = vmatpush1.bf16.msra.mxu0 0
  %924 = vmatprep.mubr.bf16.mxu0 0
  %925 = vmatmul.mubr.bf16.gmra.mrb[0].mxu0 %v850
  %v926 = vpop.f32.mrb[0].mxu0
  %v927 = vadd.f32 0.0, %v926
  %v928 = vpop.f32.mrb[0].mxu0
  %v929 = vpop.f32.mrb[0].mxu0
  %v930 = vpop.f32.mrb[0].mxu0
  %931 = vdwg.mxu0
  %v932 = vadd.f32 %v222, %v886
  %v933 = vxor.u32 %v932, 2147483648
  %v934 = vmul.f32 %v933, 1.442695
  %v935 = vpow.pop %v934
  %v936 = vadd.f32 %v935, 1.0
  %v937 = vrcp.pop %v936
  %v938 = vmul.f32 1.0, %v937
  %v939 = vadd.f32 %v224, %v888
  %v940 = vxor.u32 %v939, 2147483648
  %v941 = vmul.f32 %v940, 1.442695
  %v942 = vpow.pop %v941
  %v943 = vadd.f32 %v942, 1.0
  %v944 = vrcp.pop %v943
  %v945 = vmul.f32 1.0, %v944
  %v946 = vadd.f32 %v927, %v75
  %v947 = vmul.f32 %v938, %v946
  %v948 = vadd.f32 %v291, %v947
  %v949 = vtanh.pop %v948
  %v950 = vsub.f32 1.0, %v945
  %v951 = vmul.f32 %v950, %v949
  %v952 = vmul.f32 %v945, %v849
  %v953 = vadd.f32 %v951, %v952
  %v954 = vpack.c.bf16 %v953, %v953
  %955 = vmatprep.subr.bf16.mxu0 %v388
  %956 = vmatpush1.bf16.msra.mxu0 %v387
  %957 = vmatprep.subr.bf16.mxu0 %v391
  %958 = vmatpush1.bf16.msra.mxu0 %v390
  %959 = vmatprep.subr.bf16.mxu0 %v394
  %960 = vmatpush1.bf16.msra.mxu0 %v393
  %961 = vmatprep.subr.bf16.mxu0 %v397
  %962 = vmatpush1.bf16.msra.mxu0 %v396
  %963 = vmatprep.subr.bf16.mxu0 %v400
  %964 = vmatpush1.bf16.msra.mxu0 %v399
  %965 = vmatprep.subr.bf16.mxu0 %v403
  %966 = vmatpush1.bf16.msra.mxu0 %v402
  %967 = vmatprep.subr.bf16.mxu0 %v406
  %968 = vmatpush1.bf16.msra.mxu0 %v405
  %969 = vmatprep.subr.bf16.mxu0 %v409
  %970 = vmatpush1.bf16.msra.mxu0 %v408
  %971 = vmatprep.subr.bf16.mxu0 0
  %972 = vmatpush1.bf16.msra.mxu0 0
  %973 = vmatprep.subr.bf16.mxu0 0
  %974 = vmatpush1.bf16.msra.mxu0 0
  %975 = vmatprep.subr.bf16.mxu0 0
  %976 = vmatpush1.bf16.msra.mxu0 0
  %977 = vmatprep.subr.bf16.mxu0 0
  %978 = vmatpush1.bf16.msra.mxu0 0
  %979 = vmatprep.subr.bf16.mxu0 0
  %980 = vmatpush1.bf16.msra.mxu0 0
  %981 = vmatprep.subr.bf16.mxu0 0
  %982 = vmatpush1.bf16.msra.mxu0 0
  %983 = vmatprep.subr.bf16.mxu0 0
  %984 = vmatpush1.bf16.msra.mxu0 0
  %985 = vmatprep.subr.bf16.mxu0 0
  %986 = vmatpush1.bf16.msra.mxu0 0
  %987 = vmatprep.mubr.bf16.mxu0 0
  %988 = vmatmul.mubr.bf16.gmra.mrb[0].mxu0 %v954
  %v989 = vpop.f32.mrb[0].mxu0
  %v990 = vadd.f32 0.0, %v989
  %v991 = vpop.f32.mrb[0].mxu0
  %v992 = vadd.f32 0.0, %v991
  %v993 = vpop.f32.mrb[0].mxu0
  %v994 = vpop.f32.mrb[0].mxu0
  %995 = vdwg.mxu0
  %996 = vmatprep.subr.bf16.mxu0 0
  %997 = vmatpush1.bf16.msra.mxu0 %v389
  %998 = vmatprep.subr.bf16.mxu0 0
  %999 = vmatpush1.bf16.msra.mxu0 %v392
  %1000 = vmatprep.subr.bf16.mxu0 0
  %1001 = vmatpush1.bf16.msra.mxu0 %v395
  %1002 = vmatprep.subr.bf16.mxu0 0
  %1003 = vmatpush1.bf16.msra.mxu0 %v398
  %1004 = vmatprep.subr.bf16.mxu0 0
  %1005 = vmatpush1.bf16.msra.mxu0 %v401
  %1006 = vmatprep.subr.bf16.mxu0 0
  %1007 = vmatpush1.bf16.msra.mxu0 %v404
  %1008 = vmatprep.subr.bf16.mxu0 0
  %1009 = vmatpush1.bf16.msra.mxu0 %v407
  %1010 = vmatprep.subr.bf16.mxu0 0
  %1011 = vmatpush1.bf16.msra.mxu0 %v410
  %1012 = vmatprep.subr.bf16.mxu0 0
  %1013 = vmatpush1.bf16.msra.mxu0 0
  %1014 = vmatprep.subr.bf16.mxu0 0
  %1015 = vmatpush1.bf16.msra.mxu0 0
  %1016 = vmatprep.subr.bf16.mxu0 0
  %1017 = vmatpush1.bf16.msra.mxu0 0
  %1018 = vmatprep.subr.bf16.mxu0 0
  %1019 = vmatpush1.bf16.msra.mxu0 0
  %1020 = vmatprep.subr.bf16.mxu0 0
  %1021 = vmatpush1.bf16.msra.mxu0 0
  %1022 = vmatprep.subr.bf16.mxu0 0
  %1023 = vmatpush1.bf16.msra.mxu0 0
  %1024 = vmatprep.subr.bf16.mxu0 0
  %1025 = vmatpush1.bf16.msra.mxu0 0
  %1026 = vmatprep.subr.bf16.mxu0 0
  %1027 = vmatpush1.bf16.msra.mxu0 0
  %1028 = vmatprep.mubr.bf16.mxu0 0
  %1029 = vmatmul.mubr.bf16.gmra.mrb[0].mxu0 %v954
  %v1030 = vpop.f32.mrb[0].mxu0
  %v1031 = vadd.f32 0.0, %v1030
  %v1032 = vpop.f32.mrb[0].mxu0
  %v1033 = vpop.f32.mrb[0].mxu0
  %v1034 = vpop.f32.mrb[0].mxu0
  %1035 = vdwg.mxu0
  %v1036 = vadd.f32 %v226, %v990
  %v1037 = vxor.u32 %v1036, 2147483648
  %v1038 = vmul.f32 %v1037, 1.442695
  %v1039 = vpow.pop %v1038
  %v1040 = vadd.f32 %v1039, 1.0
  %v1041 = vrcp.pop %v1040
  %v1042 = vmul.f32 1.0, %v1041
  %v1043 = vadd.f32 %v228, %v992
  %v1044 = vxor.u32 %v1043, 2147483648
  %v1045 = vmul.f32 %v1044, 1.442695
  %v1046 = vpow.pop %v1045
  %v1047 = vadd.f32 %v1046, 1.0
  %v1048 = vrcp.pop %v1047
  %v1049 = vmul.f32 1.0, %v1048
  %v1050 = vadd.f32 %v1031, %v75
  %v1051 = vmul.f32 %v1042, %v1050
  %v1052 = vadd.f32 %v294, %v1051
  %v1053 = vtanh.pop %v1052
  %v1054 = vsub.f32 1.0, %v1049
  %v1055 = vmul.f32 %v1054, %v1053
  %v1056 = vmul.f32 %v1049, %v953
  %v1057 = vadd.f32 %v1055, %v1056
  %v1058 = vpack.c.bf16 %v1057, %v1057
  %1059 = vmatprep.subr.bf16.mxu0 %v388
  %1060 = vmatpush1.bf16.msra.mxu0 %v387
  %1061 = vmatprep.subr.bf16.mxu0 %v391
  %1062 = vmatpush1.bf16.msra.mxu0 %v390
  %1063 = vmatprep.subr.bf16.mxu0 %v394
  %1064 = vmatpush1.bf16.msra.mxu0 %v393
  %1065 = vmatprep.subr.bf16.mxu0 %v397
  %1066 = vmatpush1.bf16.msra.mxu0 %v396
  %1067 = vmatprep.subr.bf16.mxu0 %v400
  %1068 = vmatpush1.bf16.msra.mxu0 %v399
  %1069 = vmatprep.subr.bf16.mxu0 %v403
  %1070 = vmatpush1.bf16.msra.mxu0 %v402
  %1071 = vmatprep.subr.bf16.mxu0 %v406
  %1072 = vmatpush1.bf16.msra.mxu0 %v405
  %1073 = vmatprep.subr.bf16.mxu0 %v409
  %1074 = vmatpush1.bf16.msra.mxu0 %v408
  %1075 = vmatprep.subr.bf16.mxu0 0
  %1076 = vmatpush1.bf16.msra.mxu0 0
  %1077 = vmatprep.subr.bf16.mxu0 0
  %1078 = vmatpush1.bf16.msra.mxu0 0
  %1079 = vmatprep.subr.bf16.mxu0 0
  %1080 = vmatpush1.bf16.msra.mxu0 0
  %1081 = vmatprep.subr.bf16.mxu0 0
  %1082 = vmatpush1.bf16.msra.mxu0 0
  %1083 = vmatprep.subr.bf16.mxu0 0
  %1084 = vmatpush1.bf16.msra.mxu0 0
  %1085 = vmatprep.subr.bf16.mxu0 0
  %1086 = vmatpush1.bf16.msra.mxu0 0
  %1087 = vmatprep.subr.bf16.mxu0 0
  %1088 = vmatpush1.bf16.msra.mxu0 0
  %1089 = vmatprep.subr.bf16.mxu0 0
  %1090 = vmatpush1.bf16.msra.mxu0 0
  %1091 = vmatprep.mubr.bf16.mxu0 0
  %1092 = vmatmul.mubr.bf16.gmra.mrb[0].mxu0 %v1058
  %v1093 = vpop.f32.mrb[0].mxu0
  %v1094 = vadd.f32 0.0, %v1093
  %v1095 = vpop.f32.mrb[0].mxu0
  %v1096 = vadd.f32 0.0, %v1095
  %v1097 = vpop.f32.mrb[0].mxu0
  %v1098 = vpop.f32.mrb[0].mxu0
  %1099 = vdwg.mxu0
  %1100 = vmatprep.subr.bf16.mxu0 0
  %1101 = vmatpush1.bf16.msra.mxu0 %v389
  %1102 = vmatprep.subr.bf16.mxu0 0
  %1103 = vmatpush1.bf16.msra.mxu0 %v392
  %1104 = vmatprep.subr.bf16.mxu0 0
  %1105 = vmatpush1.bf16.msra.mxu0 %v395
  %1106 = vmatprep.subr.bf16.mxu0 0
  %1107 = vmatpush1.bf16.msra.mxu0 %v398
  %1108 = vmatprep.subr.bf16.mxu0 0
  %1109 = vmatpush1.bf16.msra.mxu0 %v401
  %1110 = vmatprep.subr.bf16.mxu0 0
  %1111 = vmatpush1.bf16.msra.mxu0 %v404
  %1112 = vmatprep.subr.bf16.mxu0 0
  %1113 = vmatpush1.bf16.msra.mxu0 %v407
  %1114 = vmatprep.subr.bf16.mxu0 0
  %1115 = vmatpush1.bf16.msra.mxu0 %v410
  %1116 = vmatprep.subr.bf16.mxu0 0
  %1117 = vmatpush1.bf16.msra.mxu0 0
  %1118 = vmatprep.subr.bf16.mxu0 0
  %1119 = vmatpush1.bf16.msra.mxu0 0
  %1120 = vmatprep.subr.bf16.mxu0 0
  %1121 = vmatpush1.bf16.msra.mxu0 0
  %1122 = vmatprep.subr.bf16.mxu0 0
  %1123 = vmatpush1.bf16.msra.mxu0 0
  %1124 = vmatprep.subr.bf16.mxu0 0
  %1125 = vmatpush1.bf16.msra.mxu0 0
  %1126 = vmatprep.subr.bf16.mxu0 0
  %1127 = vmatpush1.bf16.msra.mxu0 0
  %1128 = vmatprep.subr.bf16.mxu0 0
  %1129 = vmatpush1.bf16.msra.mxu0 0
  %1130 = vmatprep.subr.bf16.mxu0 0
  %1131 = vmatpush1.bf16.msra.mxu0 0
  %1132 = vmatprep.mubr.bf16.mxu0 0
  %1133 = vmatmul.mubr.bf16.gmra.mrb[0].mxu0 %v1058
  %v1134 = vpop.f32.mrb[0].mxu0
  %v1135 = vadd.f32 0.0, %v1134
  %v1136 = vpop.f32.mrb[0].mxu0
  %v1137 = vpop.f32.mrb[0].mxu0
  %v1138 = vpop.f32.mrb[0].mxu0
  %1139 = vdwg.mxu0
  %v1140 = vadd.f32 %v232, %v1094
  %v1141 = vxor.u32 %v1140, 2147483648
  %v1142 = vmul.f32 %v1141, 1.442695
  %v1143 = vpow.pop %v1142
  %v1144 = vadd.f32 %v1143, 1.0
  %v1145 = vrcp.pop %v1144
  %v1146 = vmul.f32 1.0, %v1145
  %v1147 = vadd.f32 %v234, %v1096
  %v1148 = vxor.u32 %v1147, 2147483648
  %v1149 = vmul.f32 %v1148, 1.442695
  %v1150 = vpow.pop %v1149
  %v1151 = vadd.f32 %v1150, 1.0
  %v1152 = vrcp.pop %v1151
  %v1153 = vmul.f32 1.0, %v1152
  %v1154 = vadd.f32 %v1135, %v75
  %v1155 = vmul.f32 %v1146, %v1154
  %v1156 = vadd.f32 %v299, %v1155
  %v1157 = vtanh.pop %v1156
  %v1158 = vsub.f32 1.0, %v1153
  %v1159 = vmul.f32 %v1158, %v1157
  %v1160 = vmul.f32 %v1153, %v1057
  %v1161 = vadd.f32 %v1159, %v1160
  %v1162 = vpack.c.bf16 %v1161, %v1161
  %1163 = vmatprep.subr.bf16.mxu0 %v388
  %1164 = vmatpush1.bf16.msra.mxu0 %v387
  %1165 = vmatprep.subr.bf16.mxu0 %v391
  %1166 = vmatpush1.bf16.msra.mxu0 %v390
  %1167 = vmatprep.subr.bf16.mxu0 %v394
  %1168 = vmatpush1.bf16.msra.mxu0 %v393
  %1169 = vmatprep.subr.bf16.mxu0 %v397
  %1170 = vmatpush1.bf16.msra.mxu0 %v396
  %1171 = vmatprep.subr.bf16.mxu0 %v400
  %1172 = vmatpush1.bf16.msra.mxu0 %v399
  %1173 = vmatprep.subr.bf16.mxu0 %v403
  %1174 = vmatpush1.bf16.msra.mxu0 %v402
  %1175 = vmatprep.subr.bf16.mxu0 %v406
  %1176 = vmatpush1.bf16.msra.mxu0 %v405
  %1177 = vmatprep.subr.bf16.mxu0 %v409
  %1178 = vmatpush1.bf16.msra.mxu0 %v408
  %1179 = vmatprep.subr.bf16.mxu0 0
  %1180 = vmatpush1.bf16.msra.mxu0 0
  %1181 = vmatprep.subr.bf16.mxu0 0
  %1182 = vmatpush1.bf16.msra.mxu0 0
  %1183 = vmatprep.subr.bf16.mxu0 0
  %1184 = vmatpush1.bf16.msra.mxu0 0
  %1185 = vmatprep.subr.bf16.mxu0 0
  %1186 = vmatpush1.bf16.msra.mxu0 0
  %1187 = vmatprep.subr.bf16.mxu0 0
  %1188 = vmatpush1.bf16.msra.mxu0 0
  %1189 = vmatprep.subr.bf16.mxu0 0
  %1190 = vmatpush1.bf16.msra.mxu0 0
  %1191 = vmatprep.subr.bf16.mxu0 0
  %1192 = vmatpush1.bf16.msra.mxu0 0
  %1193 = vmatprep.subr.bf16.mxu0 0
  %1194 = vmatpush1.bf16.msra.mxu0 0
  %1195 = vmatprep.mubr.bf16.mxu0 0
  %1196 = vmatmul.mubr.bf16.gmra.mrb[0].mxu0 %v1162
  %v1197 = vpop.f32.mrb[0].mxu0
  %v1198 = vadd.f32 0.0, %v1197
  %v1199 = vpop.f32.mrb[0].mxu0
  %v1200 = vadd.f32 0.0, %v1199
  %v1201 = vpop.f32.mrb[0].mxu0
  %v1202 = vpop.f32.mrb[0].mxu0
  %1203 = vdwg.mxu0
  %1204 = vmatprep.subr.bf16.mxu0 0
  %1205 = vmatpush1.bf16.msra.mxu0 %v389
  %1206 = vmatprep.subr.bf16.mxu0 0
  %1207 = vmatpush1.bf16.msra.mxu0 %v392
  %1208 = vmatprep.subr.bf16.mxu0 0
  %1209 = vmatpush1.bf16.msra.mxu0 %v395
  %1210 = vmatprep.subr.bf16.mxu0 0
  %1211 = vmatpush1.bf16.msra.mxu0 %v398
  %1212 = vmatprep.subr.bf16.mxu0 0
  %1213 = vmatpush1.bf16.msra.mxu0 %v401
  %1214 = vmatprep.subr.bf16.mxu0 0
  %1215 = vmatpush1.bf16.msra.mxu0 %v404
  %1216 = vmatprep.subr.bf16.mxu0 0
  %1217 = vmatpush1.bf16.msra.mxu0 %v407
  %1218 = vmatprep.subr.bf16.mxu0 0
  %1219 = vmatpush1.bf16.msra.mxu0 %v410
  %1220 = vmatprep.subr.bf16.mxu0 0
  %1221 = vmatpush1.bf16.msra.mxu0 0
  %1222 = vmatprep.subr.bf16.mxu0 0
  %1223 = vmatpush1.bf16.msra.mxu0 0
  %1224 = vmatprep.subr.bf16.mxu0 0
  %1225 = vmatpush1.bf16.msra.mxu0 0
  %1226 = vmatprep.subr.bf16.mxu0 0
  %1227 = vmatpush1.bf16.msra.mxu0 0
  %1228 = vmatprep.subr.bf16.mxu0 0
  %1229 = vmatpush1.bf16.msra.mxu0 0
  %1230 = vmatprep.subr.bf16.mxu0 0
  %1231 = vmatpush1.bf16.msra.mxu0 0
  %1232 = vmatprep.subr.bf16.mxu0 0
  %1233 = vmatpush1.bf16.msra.mxu0 0
  %1234 = vmatprep.subr.bf16.mxu0 0
  %1235 = vmatpush1.bf16.msra.mxu0 0
  %1236 = vmatprep.mubr.bf16.mxu0 0
  %1237 = vmatmul.mubr.bf16.gmra.mrb[0].mxu0 %v1162
  %v1238 = vpop.f32.mrb[0].mxu0
  %v1239 = vadd.f32 0.0, %v1238
  %v1240 = vpop.f32.mrb[0].mxu0
  %v1241 = vpop.f32.mrb[0].mxu0
  %v1242 = vpop.f32.mrb[0].mxu0
  %1243 = vdwg.mxu0
  %v1244 = vadd.f32 %v236, %v1198
  %v1245 = vxor.u32 %v1244, 2147483648
  %v1246 = vmul.f32 %v1245, 1.442695
  %v1247 = vpow.pop %v1246
  %v1248 = vadd.f32 %v1247, 1.0
  %v1249 = vrcp.pop %v1248
  %v1250 = vmul.f32 1.0, %v1249
  %v1251 = vadd.f32 %v238, %v1200
  %v1252 = vxor.u32 %v1251, 2147483648
  %v1253 = vmul.f32 %v1252, 1.442695
  %v1254 = vpow.pop %v1253
  %v1255 = vadd.f32 %v1254, 1.0
  %v1256 = vrcp.pop %v1255
  %v1257 = vmul.f32 1.0, %v1256
  %v1258 = vadd.f32 %v1239, %v75
  %v1259 = vmul.f32 %v1250, %v1258
  %v1260 = vadd.f32 %v302, %v1259
  %v1261 = vtanh.pop %v1260
  %v1262 = vsub.f32 1.0, %v1257
  %v1263 = vmul.f32 %v1262, %v1261
  %v1264 = vmul.f32 %v1257, %v1161
  %v1265 = vadd.f32 %v1263, %v1264
  %1266 = vst [vmem:[#allocation2] sm:$0xff] %v1265
  %1267 = vst [vmem:[%s6] sm:$0xff] %v1265
  // Predicated region
  $region30: #{seq2seq_forward.3} parent=0 // pred_check
    _
  $region31: #{seq2seq_forward.3} parent=0 // pred_check_branch
    %1269 = sbr.rel (0) target = $region33
  $region32: #{seq2seq_forward.3} parent=0 // pred_region
    _
  $region33: #{seq2seq_forward.3} parent=0 // pred_fallthru
    _
  // Predicated region
  $region34: #{seq2seq_forward.3} parent=0 // pred_check
    _
  $region35: #{seq2seq_forward.3} parent=0 // pred_check_branch
    %1271 = sbr.rel (0) target = $region37
  $region36: #{seq2seq_forward.3} parent=0 // pred_region
    _
  $region37: #{seq2seq_forward.3} parent=0 // pred_fallthru
    _

// kernel: seq2seq_forward.4
$region0: #{seq2seq_forward.4}
  #allocation0 [shape = 'u32[]', space=smem, size = 0x4, offset = 0x4, fixed_abs, tag = 'smem constant byte address 0x4 - core index']
  #allocation1 [shape = 'u32[144,128]{1,0:T(1,128)}', space=vmem, size = 0x12000, scoped, tag = 'internal scratch']
  #allocation2 [shape = 'f32[8,128]{1,0:T(8,128)}', space=vmem, size = 0x1000, scoped, tag = 'scratch operand']
  %s0 = inlined_call_operand.vmem [shape: bf16[8,8,32], index: 0, kind: input, shape index: {}]
  %s1 = inlined_call_operand.vmem [shape: f32[8,128], index: 1, kind: input, shape index: {}]
  %s2 = inlined_call_operand.vmem [shape: bf16[32,384], index: 2, kind: input, shape index: {}]
  %s3 = inlined_call_operand.vmem [shape: f32[1,384], index: 3, kind: input, shape index: {}]
  %s4 = inlined_call_operand.vmem [shape: bf16[128,384], index: 4, kind: input, shape index: {}]
  %s5 = inlined_call_operand.vmem [shape: f32[1,128], index: 5, kind: input, shape index: {}]
  %s6 = inlined_call_operand.vmem [shape: bf16[8,8,128], index: 6, kind: output, shape index: {0}]
  %s7 = inlined_call_operand.vmem [shape: f32[1,1,128], index: 7, kind: output, shape index: {1}]
  %s8 = inlined_call_operand.vmem [shape: f32[1,1,128], index: 8, kind: output, shape index: {2}]
  %9 = xla_tuple %s6, %s7, %s8
  %s10 = sld [smem:[#allocation0]]
  $region54: #{seq2seq_forward.4} parent=0
    _
  %s12 = ssub.s32 1, %s10
  %s13 = scalar_select 0, %s12, %s10
  // Predicated region
  $region2: #{seq2seq_forward.4} parent=0 // pred_check
    _
  $region3: #{seq2seq_forward.4} parent=0 // pred_check_branch
    %15 = sbr.rel (0) target = $region5
  $region4: #{seq2seq_forward.4} parent=0 // pred_region
    _
  $region5: #{seq2seq_forward.4} parent=0 // pred_fallthru
    _
  // Predicated region
  $region6: #{seq2seq_forward.4} parent=0 // pred_check
    _
  $region7: #{seq2seq_forward.4} parent=0 // pred_check_branch
    %17 = sbr.rel (0) target = $region9
  $region8: #{seq2seq_forward.4} parent=0 // pred_region
    _
  $region9: #{seq2seq_forward.4} parent=0 // pred_fallthru
    _
  // Predicated region
  $region10: #{seq2seq_forward.4} parent=0 // pred_check
    _
  $region11: #{seq2seq_forward.4} parent=0 // pred_check_branch
    %19 = sbr.rel (0) target = $region13
  $region12: #{seq2seq_forward.4} parent=0 // pred_region
    _
  $region13: #{seq2seq_forward.4} parent=0 // pred_fallthru
    _
  // Predicated region
  $region14: #{seq2seq_forward.4} parent=0 // pred_check
    _
  $region15: #{seq2seq_forward.4} parent=0 // pred_check_branch
    %21 = sbr.rel (0) target = $region17
  $region16: #{seq2seq_forward.4} parent=0 // pred_region
    _
  $region17: #{seq2seq_forward.4} parent=0 // pred_fallthru
    _
  // Predicated region
  $region18: #{seq2seq_forward.4} parent=0 // pred_check
    _
  $region19: #{seq2seq_forward.4} parent=0 // pred_check_branch
    %23 = sbr.rel (0) target = $region21
  $region20: #{seq2seq_forward.4} parent=0 // pred_region
    _
  $region21: #{seq2seq_forward.4} parent=0 // pred_fallthru
    _
  // Predicated region
  $region22: #{seq2seq_forward.4} parent=0 // pred_check
    _
  $region23: #{seq2seq_forward.4} parent=0 // pred_check_branch
    %25 = sbr.rel (0) target = $region25
  $region24: #{seq2seq_forward.4} parent=0 // pred_region
    _
  $region25: #{seq2seq_forward.4} parent=0 // pred_fallthru
    _
  %p27 = scmp.eq.s32.totalorder 0, 0
  // Predicated region
  $region26: #{seq2seq_forward.4} parent=0 // pred_check
    %p28 = pneg %p27
  $region27: #{seq2seq_forward.4} parent=0 // pred_check_branch
    %30 = sbr.rel (%p28) target = $region29
  $region28: #{seq2seq_forward.4} parent=0 // pred_region
    %v31 = vld [vmem:[%s1] sm:$0xff]
    %32 = vst [vmem:[#allocation2] sm:$0xff] %v31
    %33 = vst [vmem:[%s7] sm:$0x1] 0.0
    %34 = vst [vmem:[%s8] sm:$0x1] 0.0
  $region29: #{seq2seq_forward.4} parent=0 // pred_fallthru
    _
  %v35 = vld [vmem:[%s2] sm:$0xff]
  %v36 = vld [vmem:[%s2 + $0x8] sm:$0xf]
  %v37 = vld [vmem:[%s2 + $0xc] sm:$0xff]
  %v38 = vld [vmem:[%s2 + $0x14] sm:$0xf]
  %v39 = vld [vmem:[%s2 + $0x18] sm:$0xff]
  %v40 = vld [vmem:[%s2 + $0x20] sm:$0xf]
  %v41 = vld [vmem:[%s2 + $0x24] sm:$0xff]
  %v42 = vld [vmem:[%s2 + $0x2c] sm:$0xf]
  %v43 = vld [vmem:[%s4] sm:$0xff]
  %v44 = vld [vmem:[%s4 + $0x8] sm:$0xf]
  %v45 = vld [vmem:[%s4 + $0xc] sm:$0xff]
  %v46 = vld [vmem:[%s4 + $0x14] sm:$0xf]
  %v47 = vld [vmem:[%s4 + $0x18] sm:$0xff]
  %v48 = vld [vmem:[%s4 + $0x20] sm:$0xf]
  %v49 = vld [vmem:[%s4 + $0x24] sm:$0xff]
  %v50 = vld [vmem:[%s4 + $0x2c] sm:$0xf]
  %v51 = vld [vmem:[%s4 + $0x30] sm:$0xff]
  %v52 = vld [vmem:[%s4 + $0x38] sm:$0xf]
  %v53 = vld [vmem:[%s4 + $0x3c] sm:$0xff]
  %v54 = vld [vmem:[%s4 + $0x44] sm:$0xf]
  %v55 = vld [vmem:[%s4 + $0x48] sm:$0xff]
  %v56 = vld [vmem:[%s4 + $0x50] sm:$0xf]
  %v57 = vld [vmem:[%s4 + $0x54] sm:$0xff]
  %v58 = vld [vmem:[%s4 + $0x5c] sm:$0xf]
  %v59 = vld [vmem:[%s4 + $0x60] sm:$0xff]
  %v60 = vld [vmem:[%s4 + $0x68] sm:$0xf]
  %v61 = vld [vmem:[%s4 + $0x6c] sm:$0xff]
  %v62 = vld [vmem:[%s4 + $0x74] sm:$0xf]
  %v63 = vld [vmem:[%s4 + $0x78] sm:$0xff]
  %v64 = vld [vmem:[%s4 + $0x80] sm:$0xf]
  %v65 = vld [vmem:[%s4 + $0x84] sm:$0xff]
  %v66 = vld [vmem:[%s4 + $0x8c] sm:$0xf]
  %v67 = vld [vmem:[%s4 + $0x90] sm:$0xff]
  %v68 = vld [vmem:[%s4 + $0x98] sm:$0xf]
  %v69 = vld [vmem:[%s4 + $0x9c] sm:$0xff]
  %v70 = vld [vmem:[%s4 + $0xa4] sm:$0xf]
  %v71 = vld [vmem:[%s4 + $0xa8] sm:$0xff]
  %v72 = vld [vmem:[%s4 + $0xb0] sm:$0xf]
  %v73 = vld [vmem:[%s4 + $0xb4] sm:$0xff]
  %v74 = vld [vmem:[%s4 + $0xbc] sm:$0xf]
  %v75 = vld [vmem:[%s5] sm:$0x1]
  %v77 = vlaneseq
  %v78 = vshrl.u32 %v77, 7
  %v79 = vsub.s32 0, %v78
  %v80 = vrot.slane %v75, %v79
  %v82 = vld [vmem:[%s0] sm:$0xf]
  %v83 = vld [vmem:[%s0 + $0x4] sm:$0xf]
  %v84 = vld [vmem:[%s0 + $0x8] sm:$0xf]
  %v85 = vld [vmem:[%s0 + $0xc] sm:$0xf]
  %v86 = vld [vmem:[%s0 + $0x10] sm:$0xf]
  %v87 = vld [vmem:[%s0 + $0x14] sm:$0xf]
  %v88 = vld [vmem:[%s0 + $0x18] sm:$0xf]
  %v89 = vld [vmem:[%s0 + $0x1c] sm:$0xf]
  %v90 = vld [vmem:[%s3] sm:$0x7]
  %v92 = vlaneseq
  %v93 = vshrl.u32 %v92, 7
  %v94 = vsub.s32 0, %v93
  %v95 = vrot.slane %v90, %v94
  %v96 = vlaneseq
  %v97 = vshrl.u32 %v96, 7
  %v98 = vsub.s32 1, %v97
  %v99 = vrot.slane %v90, %v98
  %v100 = vlaneseq
  %v101 = vshrl.u32 %v100, 7
  %v102 = vsub.s32 2, %v101
  %v103 = vrot.slane %v90, %v102
  %v115 = vunpack.c.l.b16 %v82
  %v116 = vunpack.c.l.b16 %v83
  %v117 = vunpack.c.l.b16 %v84
  %v118 = vunpack.c.l.b16 %v85
  %v119 = vunpack.c.l.b16 %v86
  %v120 = vunpack.c.l.b16 %v87
  %v121 = vunpack.c.l.b16 %v88
  %v122 = vunpack.c.l.b16 %v89
  %v123 = vpack.c.b16 %v116, %v115
  %v124 = vpack.c.b16 %v118, %v117
  %v125 = vpack.c.b16 %v120, %v119
  %v126 = vpack.c.b16 %v122, %v121
  %v135 = vunpack.c.l.b16 %v35
  %v136 = vunpack.c.h.b16 %v35
  %v137 = vunpack.c.l.b16 %v36
  %v138 = vunpack.c.l.b16 %v37
  %v139 = vunpack.c.h.b16 %v37
  %v140 = vunpack.c.l.b16 %v38
  %v141 = vunpack.c.l.b16 %v39
  %v142 = vunpack.c.h.b16 %v39
  %v143 = vunpack.c.l.b16 %v40
  %v144 = vunpack.c.l.b16 %v41
  %v145 = vunpack.c.h.b16 %v41
  %v146 = vunpack.c.l.b16 %v42
  %v147 = vpack.c.b16 %v138, %v135
  %v148 = vpack.c.b16 %v139, %v136
  %v149 = vpack.c.b16 %v140, %v137
  %v150 = vpack.c.b16 %v144, %v141
  %v151 = vpack.c.b16 %v145, %v142
  %v152 = vpack.c.b16 %v146, %v143
  %vm159 = vcmask 261120
  %v161 = vsel %vm159, %v123, 0
  %v164 = vsel %vm159, %v124, 0
  %v167 = vsel %vm159, %v125, 0
  %v170 = vsel %vm159, %v126, 0
  %172 = vmatprep.subr.bf16.mxu0 %v148
  %173 = vmatpush1.bf16.msra.mxu0 %v147
  %174 = vmatprep.subr.bf16.mxu0 %v151
  %175 = vmatpush1.bf16.msra.mxu0 %v150
  %176 = vmatprep.subr.bf16.mxu0 0
  %177 = vmatpush1.bf16.msra.mxu0 0
  %178 = vmatprep.subr.bf16.mxu0 0
  %179 = vmatpush1.bf16.msra.mxu0 0
  %180 = vmatprep.subr.bf16.mxu0 0
  %181 = vmatpush1.bf16.msra.mxu0 0
  %182 = vmatprep.subr.bf16.mxu0 0
  %183 = vmatpush1.bf16.msra.mxu0 0
  %184 = vmatprep.subr.bf16.mxu0 0
  %185 = vmatpush1.bf16.msra.mxu0 0
  %186 = vmatprep.subr.bf16.mxu0 0
  %187 = vmatpush1.bf16.msra.mxu0 0
  %188 = vmatprep.subr.bf16.mxu0 0
  %189 = vmatpush1.bf16.msra.mxu0 0
  %190 = vmatprep.subr.bf16.mxu0 0
  %191 = vmatpush1.bf16.msra.mxu0 0
  %192 = vmatprep.subr.bf16.mxu0 0
  %193 = vmatpush1.bf16.msra.mxu0 0
  %194 = vmatprep.subr.bf16.mxu0 0
  %195 = vmatpush1.bf16.msra.mxu0 0
  %196 = vmatprep.subr.bf16.mxu0 0
  %197 = vmatpush1.bf16.msra.mxu0 0
  %198 = vmatprep.subr.bf16.mxu0 0
  %199 = vmatpush1.bf16.msra.mxu0 0
  %200 = vmatprep.subr.bf16.mxu0 0
  %201 = vmatpush1.bf16.msra.mxu0 0
  %202 = vmatprep.subr.bf16.mxu0 0
  %203 = vmatpush1.bf16.msra.mxu0 0
  %204 = vmatprep.mubr.bf16.mxu0 0
  %205 = vmatmul.mubr.bf16.gmra.mrb[0].mxu0 %v161
  %v206 = vpop.f32.mrb[0].mxu0
  %v207 = vadd.f32 %v95, %v206
  %v208 = vpop.f32.mrb[0].mxu0
  %v209 = vadd.f32 %v99, %v208
  %v210 = vpop.f32.mrb[0].mxu0
  %v211 = vadd.f32 %v95, %v210
  %v212 = vpop.f32.mrb[0].mxu0
  %v213 = vadd.f32 %v99, %v212
  %214 = vmatprep.mubr.bf16.mxu0 0
  %215 = vmatmul.mubr.bf16.gmra.mrb[0].mxu0 %v164
  %v216 = vpop.f32.mrb[0].mxu0
  %v217 = vadd.f32 %v95, %v216
  %v218 = vpop.f32.mrb[0].mxu0
  %v219 = vadd.f32 %v99, %v218
  %v220 = vpop.f32.mrb[0].mxu0
  %v221 = vadd.f32 %v95, %v220
  %v222 = vpop.f32.mrb[0].mxu0
  %v223 = vadd.f32 %v99, %v222
  %224 = vmatprep.mubr.bf16.mxu0 0
  %225 = vmatmul.mubr.bf16.gmra.mrb[0].mxu0 %v167
  %v226 = vpop.f32.mrb[0].mxu0
  %v227 = vadd.f32 %v95, %v226
  %v228 = vpop.f32.mrb[0].mxu0
  %v229 = vadd.f32 %v99, %v228
  %v230 = vpop.f32.mrb[0].mxu0
  %v231 = vadd.f32 %v95, %v230
  %v232 = vpop.f32.mrb[0].mxu0
  %v233 = vadd.f32 %v99, %v232
  %234 = vmatprep.mubr.bf16.mxu0 0
  %235 = vmatmul.mubr.bf16.gmra.mrb[0].mxu0 %v170
  %v236 = vpop.f32.mrb[0].mxu0
  %v237 = vadd.f32 %v95, %v236
  %v238 = vpop.f32.mrb[0].mxu0
  %v239 = vadd.f32 %v99, %v238
  %v240 = vpop.f32.mrb[0].mxu0
  %v241 = vadd.f32 %v95, %v240
  %v242 = vpop.f32.mrb[0].mxu0
  %v243 = vadd.f32 %v99, %v242
  %244 = vdwg.mxu0
  %245 = vmatprep.subr.bf16.mxu0 0
  %246 = vmatpush1.bf16.msra.mxu0 %v149
  %247 = vmatprep.subr.bf16.mxu0 0
  %248 = vmatpush1.bf16.msra.mxu0 %v152
  %249 = vmatprep.subr.bf16.mxu0 0
  %250 = vmatpush1.bf16.msra.mxu0 0
  %251 = vmatprep.subr.bf16.mxu0 0
  %252 = vmatpush1.bf16.msra.mxu0 0
  %253 = vmatprep.subr.bf16.mxu0 0
  %254 = vmatpush1.bf16.msra.mxu0 0
  %255 = vmatprep.subr.bf16.mxu0 0
  %256 = vmatpush1.bf16.msra.mxu0 0
  %257 = vmatprep.subr.bf16.mxu0 0
  %258 = vmatpush1.bf16.msra.mxu0 0
  %259 = vmatprep.subr.bf16.mxu0 0
  %260 = vmatpush1.bf16.msra.mxu0 0
  %261 = vmatprep.subr.bf16.mxu0 0
  %262 = vmatpush1.bf16.msra.mxu0 0
  %263 = vmatprep.subr.bf16.mxu0 0
  %264 = vmatpush1.bf16.msra.mxu0 0
  %265 = vmatprep.subr.bf16.mxu0 0
  %266 = vmatpush1.bf16.msra.mxu0 0
  %267 = vmatprep.subr.bf16.mxu0 0
  %268 = vmatpush1.bf16.msra.mxu0 0
  %269 = vmatprep.subr.bf16.mxu0 0
  %270 = vmatpush1.bf16.msra.mxu0 0
  %271 = vmatprep.subr.bf16.mxu0 0
  %272 = vmatpush1.bf16.msra.mxu0 0
  %273 = vmatprep.subr.bf16.mxu0 0
  %274 = vmatpush1.bf16.msra.mxu0 0
  %275 = vmatprep.subr.bf16.mxu0 0
  %276 = vmatpush1.bf16.msra.mxu0 0
  %277 = vmatprep.mubr.bf16.mxu0 0
  %278 = vmatmul.mubr.bf16.gmra.mrb[0].mxu0 %v161
  %v279 = vpop.f32.mrb[0].mxu0
  %v280 = vadd.f32 %v103, %v279
  %v281 = vpop.f32.mrb[0].mxu0
  %v282 = vpop.f32.mrb[0].mxu0
  %v283 = vadd.f32 %v103, %v282
  %v284 = vpop.f32.mrb[0].mxu0
  %285 = vmatprep.mubr.bf16.mxu0 0
  %286 = vmatmul.mubr.bf16.gmra.mrb[0].mxu0 %v164
  %v287 = vpop.f32.mrb[0].mxu0
  %v288 = vadd.f32 %v103, %v287
  %v289 = vpop.f32.mrb[0].mxu0
  %v290 = vpop.f32.mrb[0].mxu0
  %v291 = vadd.f32 %v103, %v290
  %v292 = vpop.f32.mrb[0].mxu0
  %293 = vmatprep.mubr.bf16.mxu0 0
  %294 = vmatmul.mubr.bf16.gmra.mrb[0].mxu0 %v167
  %v295 = vpop.f32.mrb[0].mxu0
  %v296 = vadd.f32 %v103, %v295
  %v297 = vpop.f32.mrb[0].mxu0
  %v298 = vpop.f32.mrb[0].mxu0
  %v299 = vadd.f32 %v103, %v298
  %v300 = vpop.f32.mrb[0].mxu0
  %301 = vmatprep.mubr.bf16.mxu0 0
  %302 = vmatmul.mubr.bf16.gmra.mrb[0].mxu0 %v170
  %v303 = vpop.f32.mrb[0].mxu0
  %v304 = vadd.f32 %v103, %v303
  %v305 = vpop.f32.mrb[0].mxu0
  %v306 = vpop.f32.mrb[0].mxu0
  %v307 = vadd.f32 %v103, %v306
  %v308 = vpop.f32.mrb[0].mxu0
  %309 = vdwg.mxu0
  %v310 = vlaneseq
  %v311 = vshrl.u32 %v310, 7
  %s312 = smul.u32 0, 8
  %v313 = vstv %s312
  %v314 = vadd.s32 %v311, %v313
  %vm315 = vcmp.lt.s32.totalorder %v314, 2
  %v316 = vsel %vm315, 1, 0
  %v317 = vcvt.s32.f32 %v316
  %v318 = vld [vmem:[#allocation2] sm:$0xff]
  %v319 = vpack.c.bf16 %v318, %v318
  %v352 = vunpack.c.l.b16 %v43
  %v353 = vunpack.c.h.b16 %v43
  %v354 = vunpack.c.l.b16 %v44
  %v355 = vunpack.c.l.b16 %v45
  %v356 = vunpack.c.h.b16 %v45
  %v357 = vunpack.c.l.b16 %v46
  %v358 = vunpack.c.l.b16 %v47
  %v359 = vunpack.c.h.b16 %v47
  %v360 = vunpack.c.l.b16 %v48
  %v361 = vunpack.c.l.b16 %v49
  %v362 = vunpack.c.h.b16 %v49
  %v363 = vunpack.c.l.b16 %v50
  %v364 = vunpack.c.l.b16 %v51
  %v365 = vunpack.c.h.b16 %v51
  %v366 = vunpack.c.l.b16 %v52
  %v367 = vunpack.c.l.b16 %v53
  %v368 = vunpack.c.h.b16 %v53
  %v369 = vunpack.c.l.b16 %v54
  %v370 = vunpack.c.l.b16 %v55
  %v371 = vunpack.c.h.b16 %v55
  %v372 = vunpack.c.l.b16 %v56
  %v373 = vunpack.c.l.b16 %v57
  %v374 = vunpack.c.h.b16 %v57
  %v375 = vunpack.c.l.b16 %v58
  %v376 = vunpack.c.l.b16 %v59
  %v377 = vunpack.c.h.b16 %v59
  %v378 = vunpack.c.l.b16 %v60
  %v379 = vunpack.c.l.b16 %v61
  %v380 = vunpack.c.h.b16 %v61
  %v381 = vunpack.c.l.b16 %v62
  %v382 = vunpack.c.l.b16 %v63
  %v383 = vunpack.c.h.b16 %v63
  %v384 = vunpack.c.l.b16 %v64
  %v385 = vunpack.c.l.b16 %v65
  %v386 = vunpack.c.h.b16 %v65
  %v387 = vunpack.c.l.b16 %v66
  %v388 = vunpack.c.l.b16 %v67
  %v389 = vunpack.c.h.b16 %v67
  %v390 = vunpack.c.l.b16 %v68
  %v391 = vunpack.c.l.b16 %v69
  %v392 = vunpack.c.h.b16 %v69
  %v393 = vunpack.c.l.b16 %v70
  %v394 = vunpack.c.l.b16 %v71
  %v395 = vunpack.c.h.b16 %v71
  %v396 = vunpack.c.l.b16 %v72
  %v397 = vunpack.c.l.b16 %v73
  %v398 = vunpack.c.h.b16 %v73
  %v399 = vunpack.c.l.b16 %v74
  %v400 = vpack.c.b16 %v355, %v352
  %v401 = vpack.c.b16 %v356, %v353
  %v402 = vpack.c.b16 %v357, %v354
  %v403 = vpack.c.b16 %v361, %v358
  %v404 = vpack.c.b16 %v362, %v359
  %v405 = vpack.c.b16 %v363, %v360
  %v406 = vpack.c.b16 %v367, %v364
  %v407 = vpack.c.b16 %v368, %v365
  %v408 = vpack.c.b16 %v369, %v366
  %v409 = vpack.c.b16 %v373, %v370
  %v410 = vpack.c.b16 %v374, %v371
  %v411 = vpack.c.b16 %v375, %v372
  %v412 = vpack.c.b16 %v379, %v376
  %v413 = vpack.c.b16 %v380, %v377
  %v414 = vpack.c.b16 %v381, %v378
  %v415 = vpack.c.b16 %v385, %v382
  %v416 = vpack.c.b16 %v386, %v383
  %v417 = vpack.c.b16 %v387, %v384
  %v418 = vpack.c.b16 %v391, %v388
  %v419 = vpack.c.b16 %v392, %v389
  %v420 = vpack.c.b16 %v393, %v390
  %v421 = vpack.c.b16 %v397, %v394
  %v422 = vpack.c.b16 %v398, %v395
  %v423 = vpack.c.b16 %v399, %v396
  %448 = vmatprep.subr.bf16.mxu0 %v401
  %449 = vmatpush1.bf16.msra.mxu0 %v400
  %450 = vmatprep.subr.bf16.mxu0 %v404
  %451 = vmatpush1.bf16.msra.mxu0 %v403
  %452 = vmatprep.subr.bf16.mxu0 %v407
  %453 = vmatpush1.bf16.msra.mxu0 %v406
  %454 = vmatprep.subr.bf16.mxu0 %v410
  %455 = vmatpush1.bf16.msra.mxu0 %v409
  %456 = vmatprep.subr.bf16.mxu0 %v413
  %457 = vmatpush1.bf16.msra.mxu0 %v412
  %458 = vmatprep.subr.bf16.mxu0 %v416
  %459 = vmatpush1.bf16.msra.mxu0 %v415
  %460 = vmatprep.subr.bf16.mxu0 %v419
  %461 = vmatpush1.bf16.msra.mxu0 %v418
  %462 = vmatprep.subr.bf16.mxu0 %v422
  %463 = vmatpush1.bf16.msra.mxu0 %v421
  %464 = vmatprep.subr.bf16.mxu0 0
  %465 = vmatpush1.bf16.msra.mxu0 0
  %466 = vmatprep.subr.bf16.mxu0 0
  %467 = vmatpush1.bf16.msra.mxu0 0
  %468 = vmatprep.subr.bf16.mxu0 0
  %469 = vmatpush1.bf16.msra.mxu0 0
  %470 = vmatprep.subr.bf16.mxu0 0
  %471 = vmatpush1.bf16.msra.mxu0 0
  %472 = vmatprep.subr.bf16.mxu0 0
  %473 = vmatpush1.bf16.msra.mxu0 0
  %474 = vmatprep.subr.bf16.mxu0 0
  %475 = vmatpush1.bf16.msra.mxu0 0
  %476 = vmatprep.subr.bf16.mxu0 0
  %477 = vmatpush1.bf16.msra.mxu0 0
  %478 = vmatprep.subr.bf16.mxu0 0
  %479 = vmatpush1.bf16.msra.mxu0 0
  %480 = vmatprep.mubr.bf16.mxu0 0
  %481 = vmatmul.mubr.bf16.gmra.mrb[0].mxu0 %v319
  %v482 = vpop.f32.mrb[0].mxu0
  %v483 = vadd.f32 0.0, %v482
  %v484 = vpop.f32.mrb[0].mxu0
  %v485 = vadd.f32 0.0, %v484
  %v486 = vpop.f32.mrb[0].mxu0
  %v487 = vpop.f32.mrb[0].mxu0
  %488 = vdwg.mxu0
  %489 = vmatprep.subr.bf16.mxu0 0
  %490 = vmatpush1.bf16.msra.mxu0 %v402
  %491 = vmatprep.subr.bf16.mxu0 0
  %492 = vmatpush1.bf16.msra.mxu0 %v405
  %493 = vmatprep.subr.bf16.mxu0 0
  %494 = vmatpush1.bf16.msra.mxu0 %v408
  %495 = vmatprep.subr.bf16.mxu0 0
  %496 = vmatpush1.bf16.msra.mxu0 %v411
  %497 = vmatprep.subr.bf16.mxu0 0
  %498 = vmatpush1.bf16.msra.mxu0 %v414
  %499 = vmatprep.subr.bf16.mxu0 0
  %500 = vmatpush1.bf16.msra.mxu0 %v417
  %501 = vmatprep.subr.bf16.mxu0 0
  %502 = vmatpush1.bf16.msra.mxu0 %v420
  %503 = vmatprep.subr.bf16.mxu0 0
  %504 = vmatpush1.bf16.msra.mxu0 %v423
  %505 = vmatprep.subr.bf16.mxu0 0
  %506 = vmatpush1.bf16.msra.mxu0 0
  %507 = vmatprep.subr.bf16.mxu0 0
  %508 = vmatpush1.bf16.msra.mxu0 0
  %509 = vmatprep.subr.bf16.mxu0 0
  %510 = vmatpush1.bf16.msra.mxu0 0
  %511 = vmatprep.subr.bf16.mxu0 0
  %512 = vmatpush1.bf16.msra.mxu0 0
  %513 = vmatprep.subr.bf16.mxu0 0
  %514 = vmatpush1.bf16.msra.mxu0 0
  %515 = vmatprep.subr.bf16.mxu0 0
  %516 = vmatpush1.bf16.msra.mxu0 0
  %517 = vmatprep.subr.bf16.mxu0 0
  %518 = vmatpush1.bf16.msra.mxu0 0
  %519 = vmatprep.subr.bf16.mxu0 0
  %520 = vmatpush1.bf16.msra.mxu0 0
  %521 = vmatprep.mubr.bf16.mxu0 0
  %522 = vmatmul.mubr.bf16.gmra.mrb[0].mxu0 %v319
  %v523 = vpop.f32.mrb[0].mxu0
  %v524 = vadd.f32 0.0, %v523
  %v525 = vpop.f32.mrb[0].mxu0
  %v526 = vpop.f32.mrb[0].mxu0
  %v527 = vpop.f32.mrb[0].mxu0
  %528 = vdwg.mxu0
  %v529 = vadd.f32 %v207, %v483
  %v530 = vxor.u32 %v529, 2147483648
  %v531 = vmul.f32 %v530, 1.442695
  %v532 = vpow.pop %v531
  %v533 = vadd.f32 %v532, 1.0
  %v534 = vrcp.pop %v533
  %v535 = vmul.f32 1.0, %v534
  %v536 = vadd.f32 %v209, %v485
  %v537 = vxor.u32 %v536, 2147483648
  %v538 = vmul.f32 %v537, 1.442695
  %v539 = vpow.pop %v538
  %v540 = vadd.f32 %v539, 1.0
  %v541 = vrcp.pop %v540
  %v542 = vmul.f32 1.0, %v541
  %v543 = vadd.f32 %v524, %v80
  %v544 = vmul.f32 %v535, %v543
  %v545 = vadd.f32 %v280, %v544
  %v546 = vtanh.pop %v545
  %v547 = vsub.f32 1.0, %v542
  %v548 = vmul.f32 %v547, %v546
  %v549 = vmul.f32 %v542, %v318
  %v550 = vadd.f32 %v548, %v549
  %v551 = vmul.f32 %v550, %v317
  %v552 = vrot.slane %v551, 4
  %v553 = vadd.f32 %v551, %v552
  %v554 = vrot.slane %v553, 2
  %v555 = vadd.f32 %v553, %v554
  %v556 = vrot.slane %v555, 1
  %v557 = vadd.f32 %v555, %v556
  %v558 = vadd.f32 %v557, 0.0
  %v559 = vmul.f32 %v551, %v551
  %v560 = vrot.slane %v559, 4
  %v561 = vadd.f32 %v559, %v560
  %v562 = vrot.slane %v561, 2
  %v563 = vadd.f32 %v561, %v562
  %v564 = vrot.slane %v563, 1
  %v565 = vadd.f32 %v563, %v564
  %v566 = vadd.f32 %v565, 0.0
  %v567 = vpack.c.bf16 %v550, %v550
  %568 = vst [vmem:[%s6] sm:$0xf] %v567
  %569 = vmatprep.subr.bf16.mxu0 %v401
  %570 = vmatpush1.bf16.msra.mxu0 %v400
  %571 = vmatprep.subr.bf16.mxu0 %v404
  %572 = vmatpush1.bf16.msra.mxu0 %v403
  %573 = vmatprep.subr.bf16.mxu0 %v407
  %574 = vmatpush1.bf16.msra.mxu0 %v406
  %575 = vmatprep.subr.bf16.mxu0 %v410
  %576 = vmatpush1.bf16.msra.mxu0 %v409
  %577 = vmatprep.subr.bf16.mxu0 %v413
  %578 = vmatpush1.bf16.msra.mxu0 %v412
  %579 = vmatprep.subr.bf16.mxu0 %v416
  %580 = vmatpush1.bf16.msra.mxu0 %v415
  %581 = vmatprep.subr.bf16.mxu0 %v419
  %582 = vmatpush1.bf16.msra.mxu0 %v418
  %583 = vmatprep.subr.bf16.mxu0 %v422
  %584 = vmatpush1.bf16.msra.mxu0 %v421
  %585 = vmatprep.subr.bf16.mxu0 0
  %586 = vmatpush1.bf16.msra.mxu0 0
  %587 = vmatprep.subr.bf16.mxu0 0
  %588 = vmatpush1.bf16.msra.mxu0 0
  %589 = vmatprep.subr.bf16.mxu0 0
  %590 = vmatpush1.bf16.msra.mxu0 0
  %591 = vmatprep.subr.bf16.mxu0 0
  %592 = vmatpush1.bf16.msra.mxu0 0
  %593 = vmatprep.subr.bf16.mxu0 0
  %594 = vmatpush1.bf16.msra.mxu0 0
  %595 = vmatprep.subr.bf16.mxu0 0
  %596 = vmatpush1.bf16.msra.mxu0 0
  %597 = vmatprep.subr.bf16.mxu0 0
  %598 = vmatpush1.bf16.msra.mxu0 0
  %599 = vmatprep.subr.bf16.mxu0 0
  %600 = vmatpush1.bf16.msra.mxu0 0
  %601 = vmatprep.mubr.bf16.mxu0 0
  %602 = vmatmul.mubr.bf16.gmra.mrb[0].mxu0 %v567
  %v603 = vpop.f32.mrb[0].mxu0
  %v604 = vadd.f32 0.0, %v603
  %v605 = vpop.f32.mrb[0].mxu0
  %v606 = vadd.f32 0.0, %v605
  %v607 = vpop.f32.mrb[0].mxu0
  %v608 = vpop.f32.mrb[0].mxu0
  %609 = vdwg.mxu0
  %610 = vmatprep.subr.bf16.mxu0 0
  %611 = vmatpush1.bf16.msra.mxu0 %v402
  %612 = vmatprep.subr.bf16.mxu0 0
  %613 = vmatpush1.bf16.msra.mxu0 %v405
  %614 = vmatprep.subr.bf16.mxu0 0
  %615 = vmatpush1.bf16.msra.mxu0 %v408
  %616 = vmatprep.subr.bf16.mxu0 0
  %617 = vmatpush1.bf16.msra.mxu0 %v411
  %618 = vmatprep.subr.bf16.mxu0 0
  %619 = vmatpush1.bf16.msra.mxu0 %v414
  %620 = vmatprep.subr.bf16.mxu0 0
  %621 = vmatpush1.bf16.msra.mxu0 %v417
  %622 = vmatprep.subr.bf16.mxu0 0
  %623 = vmatpush1.bf16.msra.mxu0 %v420
  %624 = vmatprep.subr.bf16.mxu0 0
  %625 = vmatpush1.bf16.msra.mxu0 %v423
  %626 = vmatprep.subr.bf16.mxu0 0
  %627 = vmatpush1.bf16.msra.mxu0 0
  %628 = vmatprep.subr.bf16.mxu0 0
  %629 = vmatpush1.bf16.msra.mxu0 0
  %630 = vmatprep.subr.bf16.mxu0 0
  %631 = vmatpush1.bf16.msra.mxu0 0
  %632 = vmatprep.subr.bf16.mxu0 0
  %633 = vmatpush1.bf16.msra.mxu0 0
  %634 = vmatprep.subr.bf16.mxu0 0
  %635 = vmatpush1.bf16.msra.mxu0 0
  %636 = vmatprep.subr.bf16.mxu0 0
  %637 = vmatpush1.bf16.msra.mxu0 0
  %638 = vmatprep.subr.bf16.mxu0 0
  %639 = vmatpush1.bf16.msra.mxu0 0
  %640 = vmatprep.subr.bf16.mxu0 0
  %641 = vmatpush1.bf16.msra.mxu0 0
  %642 = vmatprep.mubr.bf16.mxu0 0
  %643 = vmatmul.mubr.bf16.gmra.mrb[0].mxu0 %v567
  %v644 = vpop.f32.mrb[0].mxu0
  %v645 = vadd.f32 0.0, %v644
  %v646 = vpop.f32.mrb[0].mxu0
  %v647 = vpop.f32.mrb[0].mxu0
  %v648 = vpop.f32.mrb[0].mxu0
  %649 = vdwg.mxu0
  %v650 = vadd.f32 %v211, %v604
  %v651 = vxor.u32 %v650, 2147483648
  %v652 = vmul.f32 %v651, 1.442695
  %v653 = vpow.pop %v652
  %v654 = vadd.f32 %v653, 1.0
  %v655 = vrcp.pop %v654
  %v656 = vmul.f32 1.0, %v655
  %v657 = vadd.f32 %v213, %v606
  %v658 = vxor.u32 %v657, 2147483648
  %v659 = vmul.f32 %v658, 1.442695
  %v660 = vpow.pop %v659
  %v661 = vadd.f32 %v660, 1.0
  %v662 = vrcp.pop %v661
  %v663 = vmul.f32 1.0, %v662
  %v664 = vadd.f32 %v645, %v80
  %v665 = vmul.f32 %v656, %v664
  %v666 = vadd.f32 %v283, %v665
  %v667 = vtanh.pop %v666
  %v668 = vsub.f32 1.0, %v663
  %v669 = vmul.f32 %v668, %v667
  %v670 = vmul.f32 %v663, %v550
  %v671 = vadd.f32 %v669, %v670
  %v672 = vmul.f32 %v671, %v317
  %v673 = vrot.slane %v672, 4
  %v674 = vadd.f32 %v672, %v673
  %v675 = vrot.slane %v674, 2
  %v676 = vadd.f32 %v674, %v675
  %v677 = vrot.slane %v676, 1
  %v678 = vadd.f32 %v676, %v677
  %v679 = vadd.f32 %v558, %v678
  %v680 = vmul.f32 %v672, %v672
  %v681 = vrot.slane %v680, 4
  %v682 = vadd.f32 %v680, %v681
  %v683 = vrot.slane %v682, 2
  %v684 = vadd.f32 %v682, %v683
  %v685 = vrot.slane %v684, 1
  %v686 = vadd.f32 %v684, %v685
  %v687 = vadd.f32 %v566, %v686
  %v688 = vpack.c.bf16 %v671, %v671
  %s689 = scalar_lea.vmem %s6, 4
  %690 = vst [vmem:[%s689] sm:$0xf] %v688
  %691 = vmatprep.subr.bf16.mxu0 %v401
  %692 = vmatpush1.bf16.msra.mxu0 %v400
  %693 = vmatprep.subr.bf16.mxu0 %v404
  %694 = vmatpush1.bf16.msra.mxu0 %v403
  %695 = vmatprep.subr.bf16.mxu0 %v407
  %696 = vmatpush1.bf16.msra.mxu0 %v406
  %697 = vmatprep.subr.bf16.mxu0 %v410
  %698 = vmatpush1.bf16.msra.mxu0 %v409
  %699 = vmatprep.subr.bf16.mxu0 %v413
  %700 = vmatpush1.bf16.msra.mxu0 %v412
  %701 = vmatprep.subr.bf16.mxu0 %v416
  %702 = vmatpush1.bf16.msra.mxu0 %v415
  %703 = vmatprep.subr.bf16.mxu0 %v419
  %704 = vmatpush1.bf16.msra.mxu0 %v418
  %705 = vmatprep.subr.bf16.mxu0 %v422
  %706 = vmatpush1.bf16.msra.mxu0 %v421
  %707 = vmatprep.subr.bf16.mxu0 0
  %708 = vmatpush1.bf16.msra.mxu0 0
  %709 = vmatprep.subr.bf16.mxu0 0
  %710 = vmatpush1.bf16.msra.mxu0 0
  %711 = vmatprep.subr.bf16.mxu0 0
  %712 = vmatpush1.bf16.msra.mxu0 0
  %713 = vmatprep.subr.bf16.mxu0 0
  %714 = vmatpush1.bf16.msra.mxu0 0
  %715 = vmatprep.subr.bf16.mxu0 0
  %716 = vmatpush1.bf16.msra.mxu0 0
  %717 = vmatprep.subr.bf16.mxu0 0
  %718 = vmatpush1.bf16.msra.mxu0 0
  %719 = vmatprep.subr.bf16.mxu0 0
  %720 = vmatpush1.bf16.msra.mxu0 0
  %721 = vmatprep.subr.bf16.mxu0 0
  %722 = vmatpush1.bf16.msra.mxu0 0
  %723 = vmatprep.mubr.bf16.mxu0 0
  %724 = vmatmul.mubr.bf16.gmra.mrb[0].mxu0 %v688
  %v725 = vpop.f32.mrb[0].mxu0
  %v726 = vadd.f32 0.0, %v725
  %v727 = vpop.f32.mrb[0].mxu0
  %v728 = vadd.f32 0.0, %v727
  %v729 = vpop.f32.mrb[0].mxu0
  %v730 = vpop.f32.mrb[0].mxu0
  %731 = vdwg.mxu0
  %732 = vmatprep.subr.bf16.mxu0 0
  %733 = vmatpush1.bf16.msra.mxu0 %v402
  %734 = vmatprep.subr.bf16.mxu0 0
  %735 = vmatpush1.bf16.msra.mxu0 %v405
  %736 = vmatprep.subr.bf16.mxu0 0
  %737 = vmatpush1.bf16.msra.mxu0 %v408
  %738 = vmatprep.subr.bf16.mxu0 0
  %739 = vmatpush1.bf16.msra.mxu0 %v411
  %740 = vmatprep.subr.bf16.mxu0 0
  %741 = vmatpush1.bf16.msra.mxu0 %v414
  %742 = vmatprep.subr.bf16.mxu0 0
  %743 = vmatpush1.bf16.msra.mxu0 %v417
  %744 = vmatprep.subr.bf16.mxu0 0
  %745 = vmatpush1.bf16.msra.mxu0 %v420
  %746 = vmatprep.subr.bf16.mxu0 0
  %747 = vmatpush1.bf16.msra.mxu0 %v423
  %748 = vmatprep.subr.bf16.mxu0 0
  %749 = vmatpush1.bf16.msra.mxu0 0
  %750 = vmatprep.subr.bf16.mxu0 0
  %751 = vmatpush1.bf16.msra.mxu0 0
  %752 = vmatprep.subr.bf16.mxu0 0
  %753 = vmatpush1.bf16.msra.mxu0 0
  %754 = vmatprep.subr.bf16.mxu0 0
  %755 = vmatpush1.bf16.msra.mxu0 0
  %756 = vmatprep.subr.bf16.mxu0 0
  %757 = vmatpush1.bf16.msra.mxu0 0
  %758 = vmatprep.subr.bf16.mxu0 0
  %759 = vmatpush1.bf16.msra.mxu0 0
  %760 = vmatprep.subr.bf16.mxu0 0
  %761 = vmatpush1.bf16.msra.mxu0 0
  %762 = vmatprep.subr.bf16.mxu0 0
  %763 = vmatpush1.bf16.msra.mxu0 0
  %764 = vmatprep.mubr.bf16.mxu0 0
  %765 = vmatmul.mubr.bf16.gmra.mrb[0].mxu0 %v688
  %v766 = vpop.f32.mrb[0].mxu0
  %v767 = vadd.f32 0.0, %v766
  %v768 = vpop.f32.mrb[0].mxu0
  %v769 = vpop.f32.mrb[0].mxu0
  %v770 = vpop.f32.mrb[0].mxu0
  %771 = vdwg.mxu0
  %v772 = vadd.f32 %v217, %v726
  %v773 = vxor.u32 %v772, 2147483648
  %v774 = vmul.f32 %v773, 1.442695
  %v775 = vpow.pop %v774
  %v776 = vadd.f32 %v775, 1.0
  %v777 = vrcp.pop %v776
  %v778 = vmul.f32 1.0, %v777
  %v779 = vadd.f32 %v219, %v728
  %v780 = vxor.u32 %v779, 2147483648
  %v781 = vmul.f32 %v780, 1.442695
  %v782 = vpow.pop %v781
  %v783 = vadd.f32 %v782, 1.0
  %v784 = vrcp.pop %v783
  %v785 = vmul.f32 1.0, %v784
  %v786 = vadd.f32 %v767, %v80
  %v787 = vmul.f32 %v778, %v786
  %v788 = vadd.f32 %v288, %v787
  %v789 = vtanh.pop %v788
  %v790 = vsub.f32 1.0, %v785
  %v791 = vmul.f32 %v790, %v789
  %v792 = vmul.f32 %v785, %v671
  %v793 = vadd.f32 %v791, %v792
  %v794 = vmul.f32 %v793, %v317
  %v795 = vrot.slane %v794, 4
  %v796 = vadd.f32 %v794, %v795
  %v797 = vrot.slane %v796, 2
  %v798 = vadd.f32 %v796, %v797
  %v799 = vrot.slane %v798, 1
  %v800 = vadd.f32 %v798, %v799
  %v801 = vadd.f32 %v679, %v800
  %v802 = vmul.f32 %v794, %v794
  %v803 = vrot.slane %v802, 4
  %v804 = vadd.f32 %v802, %v803
  %v805 = vrot.slane %v804, 2
  %v806 = vadd.f32 %v804, %v805
  %v807 = vrot.slane %v806, 1
  %v808 = vadd.f32 %v806, %v807
  %v809 = vadd.f32 %v687, %v808
  %v810 = vpack.c.bf16 %v793, %v793
  %s811 = scalar_lea.vmem %s6, 8
  %812 = vst [vmem:[%s811] sm:$0xf] %v810
  %813 = vmatprep.subr.bf16.mxu0 %v401
  %814 = vmatpush1.bf16.msra.mxu0 %v400
  %815 = vmatprep.subr.bf16.mxu0 %v404
  %816 = vmatpush1.bf16.msra.mxu0 %v403
  %817 = vmatprep.subr.bf16.mxu0 %v407
  %818 = vmatpush1.bf16.msra.mxu0 %v406
  %819 = vmatprep.subr.bf16.mxu0 %v410
  %820 = vmatpush1.bf16.msra.mxu0 %v409
  %821 = vmatprep.subr.bf16.mxu0 %v413
  %822 = vmatpush1.bf16.msra.mxu0 %v412
  %823 = vmatprep.subr.bf16.mxu0 %v416
  %824 = vmatpush1.bf16.msra.mxu0 %v415
  %825 = vmatprep.subr.bf16.mxu0 %v419
  %826 = vmatpush1.bf16.msra.mxu0 %v418
  %827 = vmatprep.subr.bf16.mxu0 %v422
  %828 = vmatpush1.bf16.msra.mxu0 %v421
  %829 = vmatprep.subr.bf16.mxu0 0
  %830 = vmatpush1.bf16.msra.mxu0 0
  %831 = vmatprep.subr.bf16.mxu0 0
  %832 = vmatpush1.bf16.msra.mxu0 0
  %833 = vmatprep.subr.bf16.mxu0 0
  %834 = vmatpush1.bf16.msra.mxu0 0
  %835 = vmatprep.subr.bf16.mxu0 0
  %836 = vmatpush1.bf16.msra.mxu0 0
  %837 = vmatprep.subr.bf16.mxu0 0
  %838 = vmatpush1.bf16.msra.mxu0 0
  %839 = vmatprep.subr.bf16.mxu0 0
  %840 = vmatpush1.bf16.msra.mxu0 0
  %841 = vmatprep.subr.bf16.mxu0 0
  %842 = vmatpush1.bf16.msra.mxu0 0
  %843 = vmatprep.subr.bf16.mxu0 0
  %844 = vmatpush1.bf16.msra.mxu0 0
  %845 = vmatprep.mubr.bf16.mxu0 0
  %846 = vmatmul.mubr.bf16.gmra.mrb[0].mxu0 %v810
  %v847 = vpop.f32.mrb[0].mxu0
  %v848 = vadd.f32 0.0, %v847
  %v849 = vpop.f32.mrb[0].mxu0
  %v850 = vadd.f32 0.0, %v849
  %v851 = vpop.f32.mrb[0].mxu0
  %v852 = vpop.f32.mrb[0].mxu0
  %853 = vdwg.mxu0
  %854 = vmatprep.subr.bf16.mxu0 0
  %855 = vmatpush1.bf16.msra.mxu0 %v402
  %856 = vmatprep.subr.bf16.mxu0 0
  %857 = vmatpush1.bf16.msra.mxu0 %v405
  %858 = vmatprep.subr.bf16.mxu0 0
  %859 = vmatpush1.bf16.msra.mxu0 %v408
  %860 = vmatprep.subr.bf16.mxu0 0
  %861 = vmatpush1.bf16.msra.mxu0 %v411
  %862 = vmatprep.subr.bf16.mxu0 0
  %863 = vmatpush1.bf16.msra.mxu0 %v414
  %864 = vmatprep.subr.bf16.mxu0 0
  %865 = vmatpush1.bf16.msra.mxu0 %v417
  %866 = vmatprep.subr.bf16.mxu0 0
  %867 = vmatpush1.bf16.msra.mxu0 %v420
  %868 = vmatprep.subr.bf16.mxu0 0
  %869 = vmatpush1.bf16.msra.mxu0 %v423
  %870 = vmatprep.subr.bf16.mxu0 0
  %871 = vmatpush1.bf16.msra.mxu0 0
  %872 = vmatprep.subr.bf16.mxu0 0
  %873 = vmatpush1.bf16.msra.mxu0 0
  %874 = vmatprep.subr.bf16.mxu0 0
  %875 = vmatpush1.bf16.msra.mxu0 0
  %876 = vmatprep.subr.bf16.mxu0 0
  %877 = vmatpush1.bf16.msra.mxu0 0
  %878 = vmatprep.subr.bf16.mxu0 0
  %879 = vmatpush1.bf16.msra.mxu0 0
  %880 = vmatprep.subr.bf16.mxu0 0
  %881 = vmatpush1.bf16.msra.mxu0 0
  %882 = vmatprep.subr.bf16.mxu0 0
  %883 = vmatpush1.bf16.msra.mxu0 0
  %884 = vmatprep.subr.bf16.mxu0 0
  %885 = vmatpush1.bf16.msra.mxu0 0
  %886 = vmatprep.mubr.bf16.mxu0 0
  %887 = vmatmul.mubr.bf16.gmra.mrb[0].mxu0 %v810
  %v888 = vpop.f32.mrb[0].mxu0
  %v889 = vadd.f32 0.0, %v888
  %v890 = vpop.f32.mrb[0].mxu0
  %v891 = vpop.f32.mrb[0].mxu0
  %v892 = vpop.f32.mrb[0].mxu0
  %893 = vdwg.mxu0
  %v894 = vadd.f32 %v221, %v848
  %v895 = vxor.u32 %v894, 2147483648
  %v896 = vmul.f32 %v895, 1.442695
  %v897 = vpow.pop %v896
  %v898 = vadd.f32 %v897, 1.0
  %v899 = vrcp.pop %v898
  %v900 = vmul.f32 1.0, %v899
  %v901 = vadd.f32 %v223, %v850
  %v902 = vxor.u32 %v901, 2147483648
  %v903 = vmul.f32 %v902, 1.442695
  %v904 = vpow.pop %v903
  %v905 = vadd.f32 %v904, 1.0
  %v906 = vrcp.pop %v905
  %v907 = vmul.f32 1.0, %v906
  %v908 = vadd.f32 %v889, %v80
  %v909 = vmul.f32 %v900, %v908
  %v910 = vadd.f32 %v291, %v909
  %v911 = vtanh.pop %v910
  %v912 = vsub.f32 1.0, %v907
  %v913 = vmul.f32 %v912, %v911
  %v914 = vmul.f32 %v907, %v793
  %v915 = vadd.f32 %v913, %v914
  %v916 = vmul.f32 %v915, %v317
  %v917 = vrot.slane %v916, 4
  %v918 = vadd.f32 %v916, %v917
  %v919 = vrot.slane %v918, 2
  %v920 = vadd.f32 %v918, %v919
  %v921 = vrot.slane %v920, 1
  %v922 = vadd.f32 %v920, %v921
  %v923 = vadd.f32 %v801, %v922
  %v924 = vmul.f32 %v916, %v916
  %v925 = vrot.slane %v924, 4
  %v926 = vadd.f32 %v924, %v925
  %v927 = vrot.slane %v926, 2
  %v928 = vadd.f32 %v926, %v927
  %v929 = vrot.slane %v928, 1
  %v930 = vadd.f32 %v928, %v929
  %v931 = vadd.f32 %v809, %v930
  %v932 = vpack.c.bf16 %v915, %v915
  %s933 = scalar_lea.vmem %s6, 12
  %934 = vst [vmem:[%s933] sm:$0xf] %v932
  %935 = vmatprep.subr.bf16.mxu0 %v401
  %936 = vmatpush1.bf16.msra.mxu0 %v400
  %937 = vmatprep.subr.bf16.mxu0 %v404
  %938 = vmatpush1.bf16.msra.mxu0 %v403
  %939 = vmatprep.subr.bf16.mxu0 %v407
  %940 = vmatpush1.bf16.msra.mxu0 %v406
  %941 = vmatprep.subr.bf16.mxu0 %v410
  %942 = vmatpush1.bf16.msra.mxu0 %v409
  %943 = vmatprep.subr.bf16.mxu0 %v413
  %944 = vmatpush1.bf16.msra.mxu0 %v412
  %945 = vmatprep.subr.bf16.mxu0 %v416
  %946 = vmatpush1.bf16.msra.mxu0 %v415
  %947 = vmatprep.subr.bf16.mxu0 %v419
  %948 = vmatpush1.bf16.msra.mxu0 %v418
  %949 = vmatprep.subr.bf16.mxu0 %v422
  %950 = vmatpush1.bf16.msra.mxu0 %v421
  %951 = vmatprep.subr.bf16.mxu0 0
  %952 = vmatpush1.bf16.msra.mxu0 0
  %953 = vmatprep.subr.bf16.mxu0 0
  %954 = vmatpush1.bf16.msra.mxu0 0
  %955 = vmatprep.subr.bf16.mxu0 0
  %956 = vmatpush1.bf16.msra.mxu0 0
  %957 = vmatprep.subr.bf16.mxu0 0
  %958 = vmatpush1.bf16.msra.mxu0 0
  %959 = vmatprep.subr.bf16.mxu0 0
  %960 = vmatpush1.bf16.msra.mxu0 0
  %961 = vmatprep.subr.bf16.mxu0 0
  %962 = vmatpush1.bf16.msra.mxu0 0
  %963 = vmatprep.subr.bf16.mxu0 0
  %964 = vmatpush1.bf16.msra.mxu0 0
  %965 = vmatprep.subr.bf16.mxu0 0
  %966 = vmatpush1.bf16.msra.mxu0 0
  %967 = vmatprep.mubr.bf16.mxu0 0
  %968 = vmatmul.mubr.bf16.gmra.mrb[0].mxu0 %v932
  %v969 = vpop.f32.mrb[0].mxu0
  %v970 = vadd.f32 0.0, %v969
  %v971 = vpop.f32.mrb[0].mxu0
  %v972 = vadd.f32 0.0, %v971
  %v973 = vpop.f32.mrb[0].mxu0
  %v974 = vpop.f32.mrb[0].mxu0
  %975 = vdwg.mxu0
  %976 = vmatprep.subr.bf16.mxu0 0
  %977 = vmatpush1.bf16.msra.mxu0 %v402
  %978 = vmatprep.subr.bf16.mxu0 0
  %979 = vmatpush1.bf16.msra.mxu0 %v405
  %980 = vmatprep.subr.bf16.mxu0 0
  %981 = vmatpush1.bf16.msra.mxu0 %v408
  %982 = vmatprep.subr.bf16.mxu0 0
  %983 = vmatpush1.bf16.msra.mxu0 %v411
  %984 = vmatprep.subr.bf16.mxu0 0
  %985 = vmatpush1.bf16.msra.mxu0 %v414
  %986 = vmatprep.subr.bf16.mxu0 0
  %987 = vmatpush1.bf16.msra.mxu0 %v417
  %988 = vmatprep.subr.bf16.mxu0 0
  %989 = vmatpush1.bf16.msra.mxu0 %v420
  %990 = vmatprep.subr.bf16.mxu0 0
  %991 = vmatpush1.bf16.msra.mxu0 %v423
  %992 = vmatprep.subr.bf16.mxu0 0
  %993 = vmatpush1.bf16.msra.mxu0 0
  %994 = vmatprep.subr.bf16.mxu0 0
  %995 = vmatpush1.bf16.msra.mxu0 0
  %996 = vmatprep.subr.bf16.mxu0 0
  %997 = vmatpush1.bf16.msra.mxu0 0
  %998 = vmatprep.subr.bf16.mxu0 0
  %999 = vmatpush1.bf16.msra.mxu0 0
  %1000 = vmatprep.subr.bf16.mxu0 0
  %1001 = vmatpush1.bf16.msra.mxu0 0
  %1002 = vmatprep.subr.bf16.mxu0 0
  %1003 = vmatpush1.bf16.msra.mxu0 0
  %1004 = vmatprep.subr.bf16.mxu0 0
  %1005 = vmatpush1.bf16.msra.mxu0 0
  %1006 = vmatprep.subr.bf16.mxu0 0
  %1007 = vmatpush1.bf16.msra.mxu0 0
  %1008 = vmatprep.mubr.bf16.mxu0 0
  %1009 = vmatmul.mubr.bf16.gmra.mrb[0].mxu0 %v932
  %v1010 = vpop.f32.mrb[0].mxu0
  %v1011 = vadd.f32 0.0, %v1010
  %v1012 = vpop.f32.mrb[0].mxu0
  %v1013 = vpop.f32.mrb[0].mxu0
  %v1014 = vpop.f32.mrb[0].mxu0
  %1015 = vdwg.mxu0
  %v1016 = vadd.f32 %v227, %v970
  %v1017 = vxor.u32 %v1016, 2147483648
  %v1018 = vmul.f32 %v1017, 1.442695
  %v1019 = vpow.pop %v1018
  %v1020 = vadd.f32 %v1019, 1.0
  %v1021 = vrcp.pop %v1020
  %v1022 = vmul.f32 1.0, %v1021
  %v1023 = vadd.f32 %v229, %v972
  %v1024 = vxor.u32 %v1023, 2147483648
  %v1025 = vmul.f32 %v1024, 1.442695
  %v1026 = vpow.pop %v1025
  %v1027 = vadd.f32 %v1026, 1.0
  %v1028 = vrcp.pop %v1027
  %v1029 = vmul.f32 1.0, %v1028
  %v1030 = vadd.f32 %v1011, %v80
  %v1031 = vmul.f32 %v1022, %v1030
  %v1032 = vadd.f32 %v296, %v1031
  %v1033 = vtanh.pop %v1032
  %v1034 = vsub.f32 1.0, %v1029
  %v1035 = vmul.f32 %v1034, %v1033
  %v1036 = vmul.f32 %v1029, %v915
  %v1037 = vadd.f32 %v1035, %v1036
  %v1038 = vmul.f32 %v1037, %v317
  %v1039 = vrot.slane %v1038, 4
  %v1040 = vadd.f32 %v1038, %v1039
  %v1041 = vrot.slane %v1040, 2
  %v1042 = vadd.f32 %v1040, %v1041
  %v1043 = vrot.slane %v1042, 1
  %v1044 = vadd.f32 %v1042, %v1043
  %v1045 = vadd.f32 %v923, %v1044
  %v1046 = vmul.f32 %v1038, %v1038
  %v1047 = vrot.slane %v1046, 4
  %v1048 = vadd.f32 %v1046, %v1047
  %v1049 = vrot.slane %v1048, 2
  %v1050 = vadd.f32 %v1048, %v1049
  %v1051 = vrot.slane %v1050, 1
  %v1052 = vadd.f32 %v1050, %v1051
  %v1053 = vadd.f32 %v931, %v1052
  %v1054 = vpack.c.bf16 %v1037, %v1037
  %s1055 = scalar_lea.vmem %s6, 16
  %1056 = vst [vmem:[%s1055] sm:$0xf] %v1054
  %1057 = vmatprep.subr.bf16.mxu0 %v401
  %1058 = vmatpush1.bf16.msra.mxu0 %v400
  %1059 = vmatprep.subr.bf16.mxu0 %v404
  %1060 = vmatpush1.bf16.msra.mxu0 %v403
  %1061 = vmatprep.subr.bf16.mxu0 %v407
  %1062 = vmatpush1.bf16.msra.mxu0 %v406
  %1063 = vmatprep.subr.bf16.mxu0 %v410
  %1064 = vmatpush1.bf16.msra.mxu0 %v409
  %1065 = vmatprep.subr.bf16.mxu0 %v413
  %1066 = vmatpush1.bf16.msra.mxu0 %v412
  %1067 = vmatprep.subr.bf16.mxu0 %v416
  %1068 = vmatpush1.bf16.msra.mxu0 %v415
  %1069 = vmatprep.subr.bf16.mxu0 %v419
  %1070 = vmatpush1.bf16.msra.mxu0 %v418
  %1071 = vmatprep.subr.bf16.mxu0 %v422
  %1072 = vmatpush1.bf16.msra.mxu0 %v421
  %1073 = vmatprep.subr.bf16.mxu0 0
  %1074 = vmatpush1.bf16.msra.mxu0 0
  %1075 = vmatprep.subr.bf16.mxu0 0
  %1076 = vmatpush1.bf16.msra.mxu0 0
  %1077 = vmatprep.subr.bf16.mxu0 0
  %1078 = vmatpush1.bf16.msra.mxu0 0
  %1079 = vmatprep.subr.bf16.mxu0 0
  %1080 = vmatpush1.bf16.msra.mxu0 0
  %1081 = vmatprep.subr.bf16.mxu0 0
  %1082 = vmatpush1.bf16.msra.mxu0 0
  %1083 = vmatprep.subr.bf16.mxu0 0
  %1084 = vmatpush1.bf16.msra.mxu0 0
  %1085 = vmatprep.subr.bf16.mxu0 0
  %1086 = vmatpush1.bf16.msra.mxu0 0
  %1087 = vmatprep.subr.bf16.mxu0 0
  %1088 = vmatpush1.bf16.msra.mxu0 0
  %1089 = vmatprep.mubr.bf16.mxu0 0
  %1090 = vmatmul.mubr.bf16.gmra.mrb[0].mxu0 %v1054
  %v1091 = vpop.f32.mrb[0].mxu0
  %v1092 = vadd.f32 0.0, %v1091
  %v1093 = vpop.f32.mrb[0].mxu0
  %v1094 = vadd.f32 0.0, %v1093
  %v1095 = vpop.f32.mrb[0].mxu0
  %v1096 = vpop.f32.mrb[0].mxu0
  %1097 = vdwg.mxu0
  %1098 = vmatprep.subr.bf16.mxu0 0
  %1099 = vmatpush1.bf16.msra.mxu0 %v402
  %1100 = vmatprep.subr.bf16.mxu0 0
  %1101 = vmatpush1.bf16.msra.mxu0 %v405
  %1102 = vmatprep.subr.bf16.mxu0 0
  %1103 = vmatpush1.bf16.msra.mxu0 %v408
  %1104 = vmatprep.subr.bf16.mxu0 0
  %1105 = vmatpush1.bf16.msra.mxu0 %v411
  %1106 = vmatprep.subr.bf16.mxu0 0
  %1107 = vmatpush1.bf16.msra.mxu0 %v414
  %1108 = vmatprep.subr.bf16.mxu0 0
  %1109 = vmatpush1.bf16.msra.mxu0 %v417
  %1110 = vmatprep.subr.bf16.mxu0 0
  %1111 = vmatpush1.bf16.msra.mxu0 %v420
  %1112 = vmatprep.subr.bf16.mxu0 0
  %1113 = vmatpush1.bf16.msra.mxu0 %v423
  %1114 = vmatprep.subr.bf16.mxu0 0
  %1115 = vmatpush1.bf16.msra.mxu0 0
  %1116 = vmatprep.subr.bf16.mxu0 0
  %1117 = vmatpush1.bf16.msra.mxu0 0
  %1118 = vmatprep.subr.bf16.mxu0 0
  %1119 = vmatpush1.bf16.msra.mxu0 0
  %1120 = vmatprep.subr.bf16.mxu0 0
  %1121 = vmatpush1.bf16.msra.mxu0 0
  %1122 = vmatprep.subr.bf16.mxu0 0
  %1123 = vmatpush1.bf16.msra.mxu0 0
  %1124 = vmatprep.subr.bf16.mxu0 0
  %1125 = vmatpush1.bf16.msra.mxu0 0
  %1126 = vmatprep.subr.bf16.mxu0 0
  %1127 = vmatpush1.bf16.msra.mxu0 0
  %1128 = vmatprep.subr.bf16.mxu0 0
  %1129 = vmatpush1.bf16.msra.mxu0 0
  %1130 = vmatprep.mubr.bf16.mxu0 0
  %1131 = vmatmul.mubr.bf16.gmra.mrb[0].mxu0 %v1054
  %v1132 = vpop.f32.mrb[0].mxu0
  %v1133 = vadd.f32 0.0, %v1132
  %v1134 = vpop.f32.mrb[0].mxu0
  %v1135 = vpop.f32.mrb[0].mxu0
  %v1136 = vpop.f32.mrb[0].mxu0
  %1137 = vdwg.mxu0
  %v1138 = vadd.f32 %v231, %v1092
  %v1139 = vxor.u32 %v1138, 2147483648
  %v1140 = vmul.f32 %v1139, 1.442695
  %v1141 = vpow.pop %v1140
  %v1142 = vadd.f32 %v1141, 1.0
  %v1143 = vrcp.pop %v1142
  %v1144 = vmul.f32 1.0, %v1143
  %v1145 = vadd.f32 %v233, %v1094
  %v1146 = vxor.u32 %v1145, 2147483648
  %v1147 = vmul.f32 %v1146, 1.442695
  %v1148 = vpow.pop %v1147
  %v1149 = vadd.f32 %v1148, 1.0
  %v1150 = vrcp.pop %v1149
  %v1151 = vmul.f32 1.0, %v1150
  %v1152 = vadd.f32 %v1133, %v80
  %v1153 = vmul.f32 %v1144, %v1152
  %v1154 = vadd.f32 %v299, %v1153
  %v1155 = vtanh.pop %v1154
  %v1156 = vsub.f32 1.0, %v1151
  %v1157 = vmul.f32 %v1156, %v1155
  %v1158 = vmul.f32 %v1151, %v1037
  %v1159 = vadd.f32 %v1157, %v1158
  %v1160 = vmul.f32 %v1159, %v317
  %v1161 = vrot.slane %v1160, 4
  %v1162 = vadd.f32 %v1160, %v1161
  %v1163 = vrot.slane %v1162, 2
  %v1164 = vadd.f32 %v1162, %v1163
  %v1165 = vrot.slane %v1164, 1
  %v1166 = vadd.f32 %v1164, %v1165
  %v1167 = vadd.f32 %v1045, %v1166
  %v1168 = vmul.f32 %v1160, %v1160
  %v1169 = vrot.slane %v1168, 4
  %v1170 = vadd.f32 %v1168, %v1169
  %v1171 = vrot.slane %v1170, 2
  %v1172 = vadd.f32 %v1170, %v1171
  %v1173 = vrot.slane %v1172, 1
  %v1174 = vadd.f32 %v1172, %v1173
  %v1175 = vadd.f32 %v1053, %v1174
  %v1176 = vpack.c.bf16 %v1159, %v1159
  %s1177 = scalar_lea.vmem %s6, 20
  %1178 = vst [vmem:[%s1177] sm:$0xf] %v1176
  %1179 = vmatprep.subr.bf16.mxu0 %v401
  %1180 = vmatpush1.bf16.msra.mxu0 %v400
  %1181 = vmatprep.subr.bf16.mxu0 %v404
  %1182 = vmatpush1.bf16.msra.mxu0 %v403
  %1183 = vmatprep.subr.bf16.mxu0 %v407
  %1184 = vmatpush1.bf16.msra.mxu0 %v406
  %1185 = vmatprep.subr.bf16.mxu0 %v410
  %1186 = vmatpush1.bf16.msra.mxu0 %v409
  %1187 = vmatprep.subr.bf16.mxu0 %v413
  %1188 = vmatpush1.bf16.msra.mxu0 %v412
  %1189 = vmatprep.subr.bf16.mxu0 %v416
  %1190 = vmatpush1.bf16.msra.mxu0 %v415
  %1191 = vmatprep.subr.bf16.mxu0 %v419
  %1192 = vmatpush1.bf16.msra.mxu0 %v418
  %1193 = vmatprep.subr.bf16.mxu0 %v422
  %1194 = vmatpush1.bf16.msra.mxu0 %v421
  %1195 = vmatprep.subr.bf16.mxu0 0
  %1196 = vmatpush1.bf16.msra.mxu0 0
  %1197 = vmatprep.subr.bf16.mxu0 0
  %1198 = vmatpush1.bf16.msra.mxu0 0
  %1199 = vmatprep.subr.bf16.mxu0 0
  %1200 = vmatpush1.bf16.msra.mxu0 0
  %1201 = vmatprep.subr.bf16.mxu0 0
  %1202 = vmatpush1.bf16.msra.mxu0 0
  %1203 = vmatprep.subr.bf16.mxu0 0
  %1204 = vmatpush1.bf16.msra.mxu0 0
  %1205 = vmatprep.subr.bf16.mxu0 0
  %1206 = vmatpush1.bf16.msra.mxu0 0
  %1207 = vmatprep.subr.bf16.mxu0 0
  %1208 = vmatpush1.bf16.msra.mxu0 0
  %1209 = vmatprep.subr.bf16.mxu0 0
  %1210 = vmatpush1.bf16.msra.mxu0 0
  %1211 = vmatprep.mubr.bf16.mxu0 0
  %1212 = vmatmul.mubr.bf16.gmra.mrb[0].mxu0 %v1176
  %v1213 = vpop.f32.mrb[0].mxu0
  %v1214 = vadd.f32 0.0, %v1213
  %v1215 = vpop.f32.mrb[0].mxu0
  %v1216 = vadd.f32 0.0, %v1215
  %v1217 = vpop.f32.mrb[0].mxu0
  %v1218 = vpop.f32.mrb[0].mxu0
  %1219 = vdwg.mxu0
  %1220 = vmatprep.subr.bf16.mxu0 0
  %1221 = vmatpush1.bf16.msra.mxu0 %v402
  %1222 = vmatprep.subr.bf16.mxu0 0
  %1223 = vmatpush1.bf16.msra.mxu0 %v405
  %1224 = vmatprep.subr.bf16.mxu0 0
  %1225 = vmatpush1.bf16.msra.mxu0 %v408
  %1226 = vmatprep.subr.bf16.mxu0 0
  %1227 = vmatpush1.bf16.msra.mxu0 %v411
  %1228 = vmatprep.subr.bf16.mxu0 0
  %1229 = vmatpush1.bf16.msra.mxu0 %v414
  %1230 = vmatprep.subr.bf16.mxu0 0
  %1231 = vmatpush1.bf16.msra.mxu0 %v417
  %1232 = vmatprep.subr.bf16.mxu0 0
  %1233 = vmatpush1.bf16.msra.mxu0 %v420
  %1234 = vmatprep.subr.bf16.mxu0 0
  %1235 = vmatpush1.bf16.msra.mxu0 %v423
  %1236 = vmatprep.subr.bf16.mxu0 0
  %1237 = vmatpush1.bf16.msra.mxu0 0
  %1238 = vmatprep.subr.bf16.mxu0 0
  %1239 = vmatpush1.bf16.msra.mxu0 0
  %1240 = vmatprep.subr.bf16.mxu0 0
  %1241 = vmatpush1.bf16.msra.mxu0 0
  %1242 = vmatprep.subr.bf16.mxu0 0
  %1243 = vmatpush1.bf16.msra.mxu0 0
  %1244 = vmatprep.subr.bf16.mxu0 0
  %1245 = vmatpush1.bf16.msra.mxu0 0
  %1246 = vmatprep.subr.bf16.mxu0 0
  %1247 = vmatpush1.bf16.msra.mxu0 0
  %1248 = vmatprep.subr.bf16.mxu0 0
  %1249 = vmatpush1.bf16.msra.mxu0 0
  %1250 = vmatprep.subr.bf16.mxu0 0
  %1251 = vmatpush1.bf16.msra.mxu0 0
  %1252 = vmatprep.mubr.bf16.mxu0 0
  %1253 = vmatmul.mubr.bf16.gmra.mrb[0].mxu0 %v1176
  %v1254 = vpop.f32.mrb[0].mxu0
  %v1255 = vadd.f32 0.0, %v1254
  %v1256 = vpop.f32.mrb[0].mxu0
  %v1257 = vpop.f32.mrb[0].mxu0
  %v1258 = vpop.f32.mrb[0].mxu0
  %1259 = vdwg.mxu0
  %v1260 = vadd.f32 %v237, %v1214
  %v1261 = vxor.u32 %v1260, 2147483648
  %v1262 = vmul.f32 %v1261, 1.442695
  %v1263 = vpow.pop %v1262
  %v1264 = vadd.f32 %v1263, 1.0
  %v1265 = vrcp.pop %v1264
  %v1266 = vmul.f32 1.0, %v1265
  %v1267 = vadd.f32 %v239, %v1216
  %v1268 = vxor.u32 %v1267, 2147483648
  %v1269 = vmul.f32 %v1268, 1.442695
  %v1270 = vpow.pop %v1269
  %v1271 = vadd.f32 %v1270, 1.0
  %v1272 = vrcp.pop %v1271
  %v1273 = vmul.f32 1.0, %v1272
  %v1274 = vadd.f32 %v1255, %v80
  %v1275 = vmul.f32 %v1266, %v1274
  %v1276 = vadd.f32 %v304, %v1275
  %v1277 = vtanh.pop %v1276
  %v1278 = vsub.f32 1.0, %v1273
  %v1279 = vmul.f32 %v1278, %v1277
  %v1280 = vmul.f32 %v1273, %v1159
  %v1281 = vadd.f32 %v1279, %v1280
  %v1282 = vmul.f32 %v1281, %v317
  %v1283 = vrot.slane %v1282, 4
  %v1284 = vadd.f32 %v1282, %v1283
  %v1285 = vrot.slane %v1284, 2
  %v1286 = vadd.f32 %v1284, %v1285
  %v1287 = vrot.slane %v1286, 1
  %v1288 = vadd.f32 %v1286, %v1287
  %v1289 = vadd.f32 %v1167, %v1288
  %v1290 = vmul.f32 %v1282, %v1282
  %v1291 = vrot.slane %v1290, 4
  %v1292 = vadd.f32 %v1290, %v1291
  %v1293 = vrot.slane %v1292, 2
  %v1294 = vadd.f32 %v1292, %v1293
  %v1295 = vrot.slane %v1294, 1
  %v1296 = vadd.f32 %v1294, %v1295
  %v1297 = vadd.f32 %v1175, %v1296
  %v1298 = vpack.c.bf16 %v1281, %v1281
  %s1299 = scalar_lea.vmem %s6, 24
  %1300 = vst [vmem:[%s1299] sm:$0xf] %v1298
  %1301 = vmatprep.subr.bf16.mxu0 %v401
  %1302 = vmatpush1.bf16.msra.mxu0 %v400
  %1303 = vmatprep.subr.bf16.mxu0 %v404
  %1304 = vmatpush1.bf16.msra.mxu0 %v403
  %1305 = vmatprep.subr.bf16.mxu0 %v407
  %1306 = vmatpush1.bf16.msra.mxu0 %v406
  %1307 = vmatprep.subr.bf16.mxu0 %v410
  %1308 = vmatpush1.bf16.msra.mxu0 %v409
  %1309 = vmatprep.subr.bf16.mxu0 %v413
  %1310 = vmatpush1.bf16.msra.mxu0 %v412
  %1311 = vmatprep.subr.bf16.mxu0 %v416
  %1312 = vmatpush1.bf16.msra.mxu0 %v415
  %1313 = vmatprep.subr.bf16.mxu0 %v419
  %1314 = vmatpush1.bf16.msra.mxu0 %v418
  %1315 = vmatprep.subr.bf16.mxu0 %v422
  %1316 = vmatpush1.bf16.msra.mxu0 %v421
  %1317 = vmatprep.subr.bf16.mxu0 0
  %1318 = vmatpush1.bf16.msra.mxu0 0
  %1319 = vmatprep.subr.bf16.mxu0 0
  %1320 = vmatpush1.bf16.msra.mxu0 0
  %1321 = vmatprep.subr.bf16.mxu0 0
  %1322 = vmatpush1.bf16.msra.mxu0 0
  %1323 = vmatprep.subr.bf16.mxu0 0
  %1324 = vmatpush1.bf16.msra.mxu0 0
  %1325 = vmatprep.subr.bf16.mxu0 0
  %1326 = vmatpush1.bf16.msra.mxu0 0
  %1327 = vmatprep.subr.bf16.mxu0 0
  %1328 = vmatpush1.bf16.msra.mxu0 0
  %1329 = vmatprep.subr.bf16.mxu0 0
  %1330 = vmatpush1.bf16.msra.mxu0 0
  %1331 = vmatprep.subr.bf16.mxu0 0
  %1332 = vmatpush1.bf16.msra.mxu0 0
  %1333 = vmatprep.mubr.bf16.mxu0 0
  %1334 = vmatmul.mubr.bf16.gmra.mrb[0].mxu0 %v1298
  %v1335 = vpop.f32.mrb[0].mxu0
  %v1336 = vadd.f32 0.0, %v1335
  %v1337 = vpop.f32.mrb[0].mxu0
  %v1338 = vadd.f32 0.0, %v1337
  %v1339 = vpop.f32.mrb[0].mxu0
  %v1340 = vpop.f32.mrb[0].mxu0
  %1341 = vdwg.mxu0
  %1342 = vmatprep.subr.bf16.mxu0 0
  %1343 = vmatpush1.bf16.msra.mxu0 %v402
  %1344 = vmatprep.subr.bf16.mxu0 0
  %1345 = vmatpush1.bf16.msra.mxu0 %v405
  %1346 = vmatprep.subr.bf16.mxu0 0
  %1347 = vmatpush1.bf16.msra.mxu0 %v408
  %1348 = vmatprep.subr.bf16.mxu0 0
  %1349 = vmatpush1.bf16.msra.mxu0 %v411
  %1350 = vmatprep.subr.bf16.mxu0 0
  %1351 = vmatpush1.bf16.msra.mxu0 %v414
  %1352 = vmatprep.subr.bf16.mxu0 0
  %1353 = vmatpush1.bf16.msra.mxu0 %v417
  %1354 = vmatprep.subr.bf16.mxu0 0
  %1355 = vmatpush1.bf16.msra.mxu0 %v420
  %1356 = vmatprep.subr.bf16.mxu0 0
  %1357 = vmatpush1.bf16.msra.mxu0 %v423
  %1358 = vmatprep.subr.bf16.mxu0 0
  %1359 = vmatpush1.bf16.msra.mxu0 0
  %1360 = vmatprep.subr.bf16.mxu0 0
  %1361 = vmatpush1.bf16.msra.mxu0 0
  %1362 = vmatprep.subr.bf16.mxu0 0
  %1363 = vmatpush1.bf16.msra.mxu0 0
  %1364 = vmatprep.subr.bf16.mxu0 0
  %1365 = vmatpush1.bf16.msra.mxu0 0
  %1366 = vmatprep.subr.bf16.mxu0 0
  %1367 = vmatpush1.bf16.msra.mxu0 0
  %1368 = vmatprep.subr.bf16.mxu0 0
  %1369 = vmatpush1.bf16.msra.mxu0 0
  %1370 = vmatprep.subr.bf16.mxu0 0
  %1371 = vmatpush1.bf16.msra.mxu0 0
  %1372 = vmatprep.subr.bf16.mxu0 0
  %1373 = vmatpush1.bf16.msra.mxu0 0
  %1374 = vmatprep.mubr.bf16.mxu0 0
  %1375 = vmatmul.mubr.bf16.gmra.mrb[0].mxu0 %v1298
  %v1376 = vpop.f32.mrb[0].mxu0
  %v1377 = vadd.f32 0.0, %v1376
  %v1378 = vpop.f32.mrb[0].mxu0
  %v1379 = vpop.f32.mrb[0].mxu0
  %v1380 = vpop.f32.mrb[0].mxu0
  %1381 = vdwg.mxu0
  %v1382 = vadd.f32 %v241, %v1336
  %v1383 = vxor.u32 %v1382, 2147483648
  %v1384 = vmul.f32 %v1383, 1.442695
  %v1385 = vpow.pop %v1384
  %v1386 = vadd.f32 %v1385, 1.0
  %v1387 = vrcp.pop %v1386
  %v1388 = vmul.f32 1.0, %v1387
  %v1389 = vadd.f32 %v243, %v1338
  %v1390 = vxor.u32 %v1389, 2147483648
  %v1391 = vmul.f32 %v1390, 1.442695
  %v1392 = vpow.pop %v1391
  %v1393 = vadd.f32 %v1392, 1.0
  %v1394 = vrcp.pop %v1393
  %v1395 = vmul.f32 1.0, %v1394
  %v1396 = vadd.f32 %v1377, %v80
  %v1397 = vmul.f32 %v1388, %v1396
  %v1398 = vadd.f32 %v307, %v1397
  %v1399 = vtanh.pop %v1398
  %v1400 = vsub.f32 1.0, %v1395
  %v1401 = vmul.f32 %v1400, %v1399
  %v1402 = vmul.f32 %v1395, %v1281
  %v1403 = vadd.f32 %v1401, %v1402
  %v1404 = vmul.f32 %v1403, %v317
  %v1405 = vrot.slane %v1404, 4
  %v1406 = vadd.f32 %v1404, %v1405
  %v1407 = vrot.slane %v1406, 2
  %v1408 = vadd.f32 %v1406, %v1407
  %v1409 = vrot.slane %v1408, 1
  %v1410 = vadd.f32 %v1408, %v1409
  %v1411 = vadd.f32 %v1289, %v1410
  %v1412 = vmul.f32 %v1404, %v1404
  %v1413 = vrot.slane %v1412, 4
  %v1414 = vadd.f32 %v1412, %v1413
  %v1415 = vrot.slane %v1414, 2
  %v1416 = vadd.f32 %v1414, %v1415
  %v1417 = vrot.slane %v1416, 1
  %v1418 = vadd.f32 %v1416, %v1417
  %v1419 = vadd.f32 %v1297, %v1418
  %v1420 = vpack.c.bf16 %v1403, %v1403
  %s1421 = scalar_lea.vmem %s6, 28
  %1422 = vst [vmem:[%s1421] sm:$0xf] %v1420
  %1423 = vst [vmem:[#allocation2] sm:$0xff] %v1403
  %v1424 = vld [vmem:[%s7] sm:$0x1]
  %v1425 = vadd.f32 %v1424, %v1411
  %1426 = vst [vmem:[%s7] sm:$0x1] %v1425
  %v1427 = vld [vmem:[%s8] sm:$0x1]
  %v1428 = vadd.f32 %v1427, %v1419
  %1429 = vst [vmem:[%s8] sm:$0x1] %v1428
  // Predicated region
  $region30: #{seq2seq_forward.4} parent=0 // pred_check
    _
  $region31: #{seq2seq_forward.4} parent=0 // pred_check_branch
    %1431 = sbr.rel (0) target = $region33
  $region32: #{seq2seq_forward.4} parent=0 // pred_region
    _
  $region33: #{seq2seq_forward.4} parent=0 // pred_fallthru
    _
  // Predicated region
  $region34: #{seq2seq_forward.4} parent=0 // pred_check
    _
  $region35: #{seq2seq_forward.4} parent=0 // pred_check_branch
    %1433 = sbr.rel (0) target = $region37
  $region36: #{seq2seq_forward.4} parent=0 // pred_region
    _
  $region37: #{seq2seq_forward.4} parent=0 // pred_fallthru
    _
  // Predicated region
  $region38: #{seq2seq_forward.4} parent=0 // pred_check
    _
  $region39: #{seq2seq_forward.4} parent=0 // pred_check_branch
    %1435 = sbr.rel (0) target = $region41
  $region40: #{seq2seq_forward.4} parent=0 // pred_region
    _
  $region41: #{seq2seq_forward.4} parent=0 // pred_fallthru
    _
  // Predicated region
  $region42: #{seq2seq_forward.4} parent=0 // pred_check
    _
  $region43: #{seq2seq_forward.4} parent=0 // pred_check_branch
    %1437 = sbr.rel (0) target = $region45
  $region44: #{seq2seq_forward.4} parent=0 // pred_region
    _
  $region45: #{seq2seq_forward.4} parent=0 // pred_fallthru
    _
  // Predicated region
  $region46: #{seq2seq_forward.4} parent=0 // pred_check
    _
  $region47: #{seq2seq_forward.4} parent=0 // pred_check_branch
    %1439 = sbr.rel (0) target = $region49
  $region48: #{seq2seq_forward.4} parent=0 // pred_region
    _
  $region49: #{seq2seq_forward.4} parent=0 // pred_fallthru
    _
  // Predicated region
  $region50: #{seq2seq_forward.4} parent=0 // pred_check
    _
  $region51: #{seq2seq_forward.4} parent=0 // pred_check_branch
    %1441 = sbr.rel (0) target = $region53
  $region52: #{seq2seq_forward.4} parent=0 // pred_region
    _
  $region53: #{seq2seq_forward.4} parent=0 // pred_fallthru
    _

</llo_original>
